<compile_context>
chip_gen: v7x
topology: tpu7x:2x2x1
jax: 0.10.0
libtpu: 0.0.40
codegen_flags: <defaults>
</compile_context>

<pallas_src>
import functools

import jax
import jax.numpy as jnp
from jax import lax
from jax.experimental import pallas as pl
from jax.experimental.pallas import tpu as pltpu


# ----------------------------------------------------------------------------
# Pallas kernels
# ----------------------------------------------------------------------------
def _conv_act_kernel(w_ref, x_ref, o_ref, *, act):
    """One M-tile: act(W @ patches).  Layers without BN (conv1, conv6)."""
    y = jnp.dot(w_ref[...].astype(jnp.bfloat16), x_ref[...],
                preferred_element_type=jnp.float32)
    if act == "leaky":
        y = jnp.where(y > 0, y, 0.2 * y)
    elif act == "sigmoid":
        y = jax.nn.sigmoid(y)
    o_ref[...] = y.astype(o_ref.dtype)


def _conv_bn_leaky_kernel(w_ref, x_ref, g_ref, b_ref, o_ref, *, inv_count, eps):
    """One Cout-slice: y = W @ patches over the FULL M extent, then fused
    BN (batch statistics) + affine + LeakyReLU(0.2), single store.

    Per-channel stats are computed from the in-register f32 y, so splitting
    the grid over Cout ("parallel") is race-free."""
    y = jnp.dot(w_ref[...].astype(jnp.bfloat16), x_ref[...],
                preferred_element_type=jnp.float32)            # (cblk, M) f32
    mean = jnp.sum(y, axis=1, keepdims=True) * inv_count       # (cblk, 1)
    # E[y^2] - mean^2 in f32; clamp guards tiny negative cancellation.
    # TODO(synk): switch to a shifted variance if activation magnitudes grow.
    var = jnp.maximum(jnp.sum(y * y, axis=1, keepdims=True) * inv_count
                      - mean * mean, 0.0)
    scale = g_ref[...] * lax.rsqrt(var + eps)                  # EUP
    bias = b_ref[...] - mean * scale
    z = y * scale + bias                                       # lane broadcast
    o_ref[...] = jnp.where(z > 0, z, 0.2 * z).astype(o_ref.dtype)


# ----------------------------------------------------------------------------
# Pallas wrappers
# ----------------------------------------------------------------------------
def conv_act(w_mat, patches, act, out_dtype, m_steps=1):
    """y (Cout, M) = act(W (Cout,K) @ patches (K,M)), optionally tiled over M."""
    Cout, K = w_mat.shape
    _, M = patches.shape
    if m_steps <= 1 or M % m_steps or (M // m_steps) % 128:
        m_steps = 1
    tm = M // m_steps
    return pl.pallas_call(
        functools.partial(_conv_act_kernel, act=act),
        out_shape=jax.ShapeDtypeStruct((Cout, M), out_dtype),
        grid_spec=pltpu.PrefetchScalarGridSpec(
            num_scalar_prefetch=0,
            grid=(m_steps,),
            in_specs=[
                pl.BlockSpec((Cout, K), lambda i: (0, 0)),
                pl.BlockSpec((K, tm), lambda i: (0, i)),
            ],
            out_specs=pl.BlockSpec((Cout, tm), lambda i: (0, i)),
        ),
        compiler_params=pltpu.CompilerParams(dimension_semantics=("parallel",)),
    )(w_mat, patches.astype(jnp.bfloat16))


def conv_bn_leaky(w_mat, patches, gamma, beta, count, eps=1e-5):
    """Fused conv + BatchNorm(train) + LeakyReLU.  Grid splits Cout into two
    "parallel" steps (v7x megacore) whenever the halves stay >= 16 sublanes;
    the patch block index is constant so it is DMA'd only once."""
    Cout, K = w_mat.shape
    _, M = patches.shape
    c_steps = 2 if (Cout % 2 == 0 and Cout // 2 >= 16) else 1
    cblk = Cout // c_steps
    g = gamma.reshape(Cout, 1).astype(jnp.float32)
    b = beta.reshape(Cout, 1).astype(jnp.float32)
    return pl.pallas_call(
        functools.partial(_conv_bn_leaky_kernel,
                          inv_count=1.0 / float(count), eps=float(eps)),
        out_shape=jax.ShapeDtypeStruct((Cout, M), jnp.bfloat16),
        grid_spec=pltpu.PrefetchScalarGridSpec(
            num_scalar_prefetch=0,
            grid=(c_steps,),
            in_specs=[
                pl.BlockSpec((cblk, K), lambda i: (i, 0)),   # weight slice
                pl.BlockSpec((K, M), lambda i: (0, 0)),      # full patches
                pl.BlockSpec((cblk, 1), lambda i: (i, 0)),   # gamma slice
                pl.BlockSpec((cblk, 1), lambda i: (i, 0)),   # beta slice
            ],
            out_specs=pl.BlockSpec((cblk, M), lambda i: (i, 0)),
        ),
        compiler_params=pltpu.CompilerParams(dimension_semantics=("parallel",)),
    )(w_mat, patches.astype(jnp.bfloat16), g, b)


# ----------------------------------------------------------------------------
# Layer glue (im2col / weight reshape) in plain JAX
# ----------------------------------------------------------------------------
def im2col_nchw(x_nchw, kh, kw, stride, pad):
    """im2col straight from NCHW (no standalone input permute):
    (N,C,H,W) -> patches (C*kh*kw, N*Ho*Wo), K ordered (cin, kh, kw)."""
    N, C, H, W = x_nchw.shape
    xp = jnp.pad(x_nchw, ((0, 0), (0, 0), (pad, pad), (pad, pad)))
    Ho = (H + 2 * pad - kh) // stride + 1
    Wo = (W + 2 * pad - kw) // stride + 1
    taps = []
    for i in range(kh):
        for j in range(kw):
            taps.append(xp[:, :, i:i + stride * Ho:stride, j:j + stride * Wo:stride])
    pat = jnp.stack(taps, axis=2)            # (N, C, kh*kw, Ho, Wo)
    pat = pat.transpose(1, 2, 0, 3, 4)       # (C, kh*kw, N, Ho, Wo)
    return pat.reshape(C * kh * kw, N * Ho * Wo), (N, Ho, Wo)


def im2col_cf(x_cnhw, kh, kw, stride, pad):
    """Channels-first im2col: (C,N,H,W) -> patches (C*kh*kw, N*Ho*Wo)."""
    C, N, H, W = x_cnhw.shape
    xp = jnp.pad(x_cnhw, ((0, 0), (0, 0), (pad, pad), (pad, pad)))
    Ho = (H + 2 * pad - kh) // stride + 1
    Wo = (W + 2 * pad - kw) // stride + 1
    taps = []
    for i in range(kh):
        for j in range(kw):
            taps.append(xp[:, :, i:i + stride * Ho:stride, j:j + stride * Wo:stride])
    patches = jnp.stack(taps, axis=1)        # (C, kh*kw, N, Ho, Wo)
    return patches.reshape(C * kh * kw, N * Ho * Wo), (N, Ho, Wo)


@jax.jit
def discriminator128_forward(x_nchw, params):
    # layer 1: conv -> LeakyReLU (no BN); im2col reads NCHW directly.
    p, (N, Ho, Wo) = im2col_nchw(x_nchw, 4, 4, 2, 1)
    w = params["w1"].reshape(params["w1"].shape[0], -1)
    y = conv_act(w, p, act="leaky", out_dtype=jnp.bfloat16, m_steps=2)
    x = y.reshape(-1, N, Ho, Wo)             # (C, N, H, W) layout, bf16

    # layers 2-5: fused conv + BN(train) + LeakyReLU in one pallas_call each.
    for i in (2, 3, 4, 5):
        p, (N, Ho, Wo) = im2col_cf(x, 4, 4, 2, 1)
        w = params[f"w{i}"].reshape(params[f"w{i}"].shape[0], -1)
        z = conv_bn_leaky(w, p, params[f"g{i}"], params[f"b{i}"],
                          count=N * Ho * Wo)
        x = z.reshape(-1, N, Ho, Wo)

    # layer 6: conv -> Sigmoid
    p, (N, Ho, Wo) = im2col_cf(x, 4, 4, 1, 0)
    w = params["w6"].reshape(1, -1)
    y = conv_act(w, p, act="sigmoid", out_dtype=jnp.float32)   # (1, N)
    return jnp.transpose(y, (1, 0)).reshape(N, 1, 1, 1)


# ----------------------------------------------------------------------------
# Pure-JAX f32 reference (for correctness check)
# ----------------------------------------------------------------------------
def reference_forward(x, params, eps=1e-5):
    def conv(x, w, stride, pad):
        return lax.conv_general_dilated(
            x, w, (stride, stride), [(pad, pad), (pad, pad)],
            dimension_numbers=("NCHW", "OIHW", "NCHW"))

    def leaky(v):
        return jnp.where(v > 0, v, 0.2 * v)

    def bn(v, g, b):
        mean = jnp.mean(v, axis=(0, 2, 3), keepdims=True)
        var = jnp.var(v, axis=(0, 2, 3), keepdims=True)
        return (v - mean) / jnp.sqrt(var + eps) * g.reshape(1, -1, 1, 1) + \
               b.reshape(1, -1, 1, 1)

    x = leaky(conv(x, params["w1"], 2, 1))
    for i in (2, 3, 4, 5):
        x = leaky(bn(conv(x, params[f"w{i}"], 2, 1),
                     params[f"g{i}"], params[f"b{i}"]))
    return jax.nn.sigmoid(conv(x, params["w6"], 1, 0))


# ----------------------------------------------------------------------------
# Parameter init (deterministic, DCGAN-style) and driver
# ----------------------------------------------------------------------------
def init_params(key, nc, ndf):
    ks = jax.random.split(key, 10)
    p = {}
    shapes = {
        "w1": (ndf, nc, 4, 4),
        "w2": (ndf * 2, ndf, 4, 4),
        "w3": (ndf * 4, ndf * 2, 4, 4),
        "w4": (ndf * 8, ndf * 4, 4, 4),
        "w5": (ndf * 4, ndf * 8, 4, 4),
        "w6": (1, ndf * 4, 4, 4),
    }
    for i, (name, shp) in enumerate(shapes.items()):
        p[name] = 0.02 * jax.random.normal(ks[i], shp, jnp.float32)
    bn_c = {2: ndf * 2, 3: ndf * 4, 4: ndf * 8, 5: ndf * 4}
    for j, (i, c) in enumerate(bn_c.items()):
        p[f"g{i}"] = 1.0 + 0.02 * jax.random.normal(ks[6 + j], (c,), jnp.float32)
        p[f"b{i}"] = jnp.zeros((c,), jnp.float32)
    return p


if __name__ == "__main__":
    nc, ndf = 3, 8          # small channel counts; spatial must be 128 (arch)
    N = 2
    key = jax.random.PRNGKey(0)
    k_x, k_p = jax.random.split(key)
    x = jax.random.normal(k_x, (N, nc, 128, 128), jnp.float32)
    params = init_params(k_p, nc, ndf)

    out = jax.block_until_ready(discriminator128_forward(x, params))
    ref = jax.block_until_ready(reference_forward(x, params))

    assert out.shape == (N, 1, 1, 1), out.shape
    # Tolerance accounts for bf16 MXU inputs / bf16 inter-layer activations
    # (reference is pure f32); output is a sigmoid in [0, 1].
    max_err = float(jnp.max(jnp.abs(out - ref)))
    assert max_err < 2e-2, f"max abs error {max_err}"
    print("KERNEL_OK")
</pallas_src>

<mosaic_0001>
module attributes {stable_mosaic.version = 11 : i64} {
  func.func @_conv_act_kernel(%arg0: i32, %arg1: memref<8x48xf32, #tpu.memory_space<vmem>>, %arg2: memref<48x4096xbf16, #tpu.memory_space<vmem>>, %arg3: memref<8x4096xbf16, #tpu.memory_space<vmem>>) attributes {dimension_semantics = [#tpu.dimension_semantics<parallel>], iteration_bounds = array<i64: 2>, scalar_prefetch = 0 : i64, scratch_operands = 0 : i64, tpu.core_type = #tpu.core_type<tc>, window_params = [{pipeline_mode = #tpu.pipeline_mode<synchronous>, transform_indices = @transform_0, window_bounds = array<i64: 8, 48>}, {transform_indices = @transform_1, window_bounds = array<i64: 48, 4096>}, {transform_indices = @transform_2, window_bounds = array<i64: 8, 4096>}]} {
    %c0 = arith.constant 0 : index
    %c0_0 = arith.constant 0 : index
    %0 = vector.load %arg1[%c0, %c0_0] : memref<8x48xf32, #tpu.memory_space<vmem>>, vector<8x48xf32>
    %1 = arith.truncf %0 : vector<8x48xf32> to vector<8x48xbf16>
    %c0_1 = arith.constant 0 : index
    %c0_2 = arith.constant 0 : index
    %2 = vector.load %arg2[%c0_1, %c0_2] : memref<48x4096xbf16, #tpu.memory_space<vmem>>, vector<48x4096xbf16>
    %cst = arith.constant dense<0.000000e+00> : vector<8x4096xf32>
    %3 = tpu.matmul %1, %2, %cst {dimension_numbers = #tpu.dot_dimension_numbers<[1], [0], [0], [1], [0, 0, 1, 1], [], []>} : vector<8x48xbf16>, vector<48x4096xbf16>, vector<8x4096xf32> -> vector<8x4096xf32>
    %cst_3 = arith.constant 0.000000e+00 : f32
    %4 = vector.broadcast %cst_3 : f32 to vector<8x4096xf32>
    %5 = arith.cmpf ogt, %3, %4 : vector<8x4096xf32>
    %cst_4 = arith.constant 2.000000e-01 : f32
    %6 = vector.broadcast %cst_4 : f32 to vector<8x4096xf32>
    %7 = arith.mulf %6, %3 : vector<8x4096xf32>
    %8 = arith.select %5, %3, %7 : vector<8x4096xi1>, vector<8x4096xf32>
    %9 = arith.truncf %8 : vector<8x4096xf32> to vector<8x4096xbf16>
    %c0_5 = arith.constant 0 : index
    %c0_6 = arith.constant 0 : index
    %10 = vector.load %arg3[%c0_5, %c0_6] : memref<8x4096xbf16, #tpu.memory_space<vmem>>, vector<8x4096xbf16>
    tpu.vector_store %arg3[%c0_5, %c0_6], %9 {strides = array<i32>} : memref<8x4096xbf16, #tpu.memory_space<vmem>>, vector<8x4096xbf16>,
    return
  }
  func.func @transform_0(%arg0: i32) -> (i32, i32) {
    %c0_i32 = arith.constant 0 : i32
    %c0_i32_0 = arith.constant 0 : i32
    %c0_i32_1 = arith.constant 0 : i32
    return %c0_i32, %c0_i32_0 : i32, i32
  }
  func.func @transform_1(%arg0: i32) -> (i32, i32) {
    %c0_i32 = arith.constant 0 : i32
    %c0_i32_0 = arith.constant 0 : i32
    return %c0_i32, %arg0 : i32, i32
  }
  func.func @transform_2(%arg0: i32) -> (i32, i32) {
    %c0_i32 = arith.constant 0 : i32
    %c0_i32_0 = arith.constant 0 : i32
    return %c0_i32, %arg0 : i32, i32
  }
}

module attributes {stable_mosaic.version = 11 : i64} {
  func.func @_conv_bn_leaky_kernel(%arg0: i32, %arg1: memref<16x128xf32, #tpu.memory_space<vmem>>, %arg2: memref<128x2048xbf16, #tpu.memory_space<vmem>>, %arg3: memref<16x1xf32, #tpu.memory_space<vmem>>, %arg4: memref<16x1xf32, #tpu.memory_space<vmem>>, %arg5: memref<16x2048xbf16, #tpu.memory_space<vmem>>) attributes {dimension_semantics = [#tpu.dimension_semantics<parallel>], iteration_bounds = array<i64: 1>, scalar_prefetch = 0 : i64, scratch_operands = 0 : i64, tpu.core_type = #tpu.core_type<tc>, window_params = [{transform_indices = @transform_0, window_bounds = array<i64: 16, 128>}, {pipeline_mode = #tpu.pipeline_mode<synchronous>, transform_indices = @transform_1, window_bounds = array<i64: 128, 2048>}, {transform_indices = @transform_2, window_bounds = array<i64: 16, 1>}, {transform_indices = @transform_3, window_bounds = array<i64: 16, 1>}, {transform_indices = @transform_4, window_bounds = array<i64: 16, 2048>}]} {
    %c0 = arith.constant 0 : index
    %c0_0 = arith.constant 0 : index
    %0 = vector.load %arg1[%c0, %c0_0] : memref<16x128xf32, #tpu.memory_space<vmem>>, vector<16x128xf32>
    %1 = arith.truncf %0 : vector<16x128xf32> to vector<16x128xbf16>
    %c0_1 = arith.constant 0 : index
    %c0_2 = arith.constant 0 : index
    %2 = vector.load %arg2[%c0_1, %c0_2] : memref<128x2048xbf16, #tpu.memory_space<vmem>>, vector<128x2048xbf16>
    %cst = arith.constant dense<0.000000e+00> : vector<16x2048xf32>
    %3 = tpu.matmul %1, %2, %cst {dimension_numbers = #tpu.dot_dimension_numbers<[1], [0], [0], [1], [0, 0, 1, 1], [], []>} : vector<16x128xbf16>, vector<128x2048xbf16>, vector<16x2048xf32> -> vector<16x2048xf32>
    %cst_3 = arith.constant dense<0.000000e+00> : vector<16xf32>
    %4 = vector.multi_reduction <add>, %3, %cst_3 [1] : vector<16x2048xf32> to vector<16xf32>
    %5 = vector.shape_cast %4 : vector<16xf32> to vector<16x1xf32>
    %cst_4 = arith.constant 4.8828125E-4 : f32
    %6 = vector.broadcast %cst_4 : f32 to vector<16x1xf32>
    %7 = arith.mulf %5, %6 : vector<16x1xf32>
    %8 = arith.mulf %3, %3 : vector<16x2048xf32>
    %cst_5 = arith.constant dense<0.000000e+00> : vector<16xf32>
    %9 = vector.multi_reduction <add>, %8, %cst_5 [1] : vector<16x2048xf32> to vector<16xf32>
    %10 = vector.shape_cast %9 : vector<16xf32> to vector<16x1xf32>
    %cst_6 = arith.constant 4.8828125E-4 : f32
    %11 = vector.broadcast %cst_6 : f32 to vector<16x1xf32>
    %12 = arith.mulf %10, %11 : vector<16x1xf32>
    %13 = arith.mulf %7, %7 : vector<16x1xf32>
    %14 = arith.subf %12, %13 : vector<16x1xf32>
    %cst_7 = arith.constant 0.000000e+00 : f32
    %15 = vector.broadcast %cst_7 : f32 to vector<16x1xf32>
    %16 = arith.maximumf %14, %15 : vector<16x1xf32>
    %c0_8 = arith.constant 0 : index
    %c0_9 = arith.constant 0 : index
    %17 = vector.load %arg3[%c0_8, %c0_9] : memref<16x1xf32, #tpu.memory_space<vmem>>, vector<16x1xf32>
    %cst_10 = arith.constant 9.99999974E-6 : f32
    %18 = vector.broadcast %cst_10 : f32 to vector<16x1xf32>
    %19 = arith.addf %16, %18 : vector<16x1xf32>
    %20 = math.rsqrt %19 : vector<16x1xf32>
    %21 = arith.mulf %17, %20 : vector<16x1xf32>
    %c0_11 = arith.constant 0 : index
    %c0_12 = arith.constant 0 : index
    %22 = vector.load %arg4[%c0_11, %c0_12] : memref<16x1xf32, #tpu.memory_space<vmem>>, vector<16x1xf32>
    %23 = arith.mulf %7, %21 : vector<16x1xf32>
    %24 = arith.subf %22, %23 : vector<16x1xf32>
    %25 = vector.broadcast %21 : vector<16x1xf32> to vector<16x2048xf32>
    %26 = arith.mulf %3, %25 : vector<16x2048xf32>
    %27 = vector.broadcast %24 : vector<16x1xf32> to vector<16x2048xf32>
    %28 = arith.addf %26, %27 : vector<16x2048xf32>
    %cst_13 = arith.constant 0.000000e+00 : f32
    %29 = vector.broadcast %cst_13 : f32 to vector<16x2048xf32>
    %30 = arith.cmpf ogt, %28, %29 : vector<16x2048xf32>
    %cst_14 = arith.constant 2.000000e-01 : f32
    %31 = vector.broadcast %cst_14 : f32 to vector<16x2048xf32>
    %32 = arith.mulf %31, %28 : vector<16x2048xf32>
    %33 = arith.select %30, %28, %32 : vector<16x2048xi1>, vector<16x2048xf32>
    %34 = arith.truncf %33 : vector<16x2048xf32> to vector<16x2048xbf16>
    %c0_15 = arith.constant 0 : index
    %c0_16 = arith.constant 0 : index
    %35 = vector.load %arg5[%c0_15, %c0_16] : memref<16x2048xbf16, #tpu.memory_space<vmem>>, vector<16x2048xbf16>
    tpu.vector_store %arg5[%c0_15, %c0_16], %34 {strides = array<i32>} : memref<16x2048xbf16, #tpu.memory_space<vmem>>, vector<16x2048xbf16>,
    return
  }
  func.func @transform_0(%arg0: i32) -> (i32, i32) {
    %c0_i32 = arith.constant 0 : i32
    %c0_i32_0 = arith.constant 0 : i32
    return %arg0, %c0_i32 : i32, i32
  }
  func.func @transform_1(%arg0: i32) -> (i32, i32) {
    %c0_i32 = arith.constant 0 : i32
    %c0_i32_0 = arith.constant 0 : i32
    %c0_i32_1 = arith.constant 0 : i32
    return %c0_i32, %c0_i32_0 : i32, i32
  }
  func.func @transform_2(%arg0: i32) -> (i32, i32) {
    %c0_i32 = arith.constant 0 : i32
    %c0_i32_0 = arith.constant 0 : i32
    return %arg0, %c0_i32 : i32, i32
  }
  func.func @transform_3(%arg0: i32) -> (i32, i32) {
    %c0_i32 = arith.constant 0 : i32
    %c0_i32_0 = arith.constant 0 : i32
    return %arg0, %c0_i32 : i32, i32
  }
  func.func @transform_4(%arg0: i32) -> (i32, i32) {
    %c0_i32 = arith.constant 0 : i32
    %c0_i32_0 = arith.constant 0 : i32
    return %arg0, %c0_i32 : i32, i32
  }
}

module attributes {stable_mosaic.version = 11 : i64} {
  func.func @_conv_bn_leaky_kernel(%arg0: i32, %arg1: memref<16x256xf32, #tpu.memory_space<vmem>>, %arg2: memref<256x512xbf16, #tpu.memory_space<vmem>>, %arg3: memref<16x1xf32, #tpu.memory_space<vmem>>, %arg4: memref<16x1xf32, #tpu.memory_space<vmem>>, %arg5: memref<16x512xbf16, #tpu.memory_space<vmem>>) attributes {dimension_semantics = [#tpu.dimension_semantics<parallel>], iteration_bounds = array<i64: 2>, scalar_prefetch = 0 : i64, scratch_operands = 0 : i64, tpu.core_type = #tpu.core_type<tc>, window_params = [{transform_indices = @transform_0, window_bounds = array<i64: 16, 256>}, {pipeline_mode = #tpu.pipeline_mode<synchronous>, transform_indices = @transform_1, window_bounds = array<i64: 256, 512>}, {transform_indices = @transform_2, window_bounds = array<i64: 16, 1>}, {transform_indices = @transform_3, window_bounds = array<i64: 16, 1>}, {transform_indices = @transform_4, window_bounds = array<i64: 16, 512>}]} {
    %c0 = arith.constant 0 : index
    %c0_0 = arith.constant 0 : index
    %0 = vector.load %arg1[%c0, %c0_0] : memref<16x256xf32, #tpu.memory_space<vmem>>, vector<16x256xf32>
    %1 = arith.truncf %0 : vector<16x256xf32> to vector<16x256xbf16>
    %c0_1 = arith.constant 0 : index
    %c0_2 = arith.constant 0 : index
    %2 = vector.load %arg2[%c0_1, %c0_2] : memref<256x512xbf16, #tpu.memory_space<vmem>>, vector<256x512xbf16>
    %cst = arith.constant dense<0.000000e+00> : vector<16x512xf32>
    %3 = tpu.matmul %1, %2, %cst {dimension_numbers = #tpu.dot_dimension_numbers<[1], [0], [0], [1], [0, 0, 1, 1], [], []>} : vector<16x256xbf16>, vector<256x512xbf16>, vector<16x512xf32> -> vector<16x512xf32>
    %cst_3 = arith.constant dense<0.000000e+00> : vector<16xf32>
    %4 = vector.multi_reduction <add>, %3, %cst_3 [1] : vector<16x512xf32> to vector<16xf32>
    %5 = vector.shape_cast %4 : vector<16xf32> to vector<16x1xf32>
    %cst_4 = arith.constant 0.001953125 : f32
    %6 = vector.broadcast %cst_4 : f32 to vector<16x1xf32>
    %7 = arith.mulf %5, %6 : vector<16x1xf32>
    %8 = arith.mulf %3, %3 : vector<16x512xf32>
    %cst_5 = arith.constant dense<0.000000e+00> : vector<16xf32>
    %9 = vector.multi_reduction <add>, %8, %cst_5 [1] : vector<16x512xf32> to vector<16xf32>
    %10 = vector.shape_cast %9 : vector<16xf32> to vector<16x1xf32>
    %cst_6 = arith.constant 0.001953125 : f32
    %11 = vector.broadcast %cst_6 : f32 to vector<16x1xf32>
    %12 = arith.mulf %10, %11 : vector<16x1xf32>
    %13 = arith.mulf %7, %7 : vector<16x1xf32>
    %14 = arith.subf %12, %13 : vector<16x1xf32>
    %cst_7 = arith.constant 0.000000e+00 : f32
    %15 = vector.broadcast %cst_7 : f32 to vector<16x1xf32>
    %16 = arith.maximumf %14, %15 : vector<16x1xf32>
    %c0_8 = arith.constant 0 : index
    %c0_9 = arith.constant 0 : index
    %17 = vector.load %arg3[%c0_8, %c0_9] : memref<16x1xf32, #tpu.memory_space<vmem>>, vector<16x1xf32>
    %cst_10 = arith.constant 9.99999974E-6 : f32
    %18 = vector.broadcast %cst_10 : f32 to vector<16x1xf32>
    %19 = arith.addf %16, %18 : vector<16x1xf32>
    %20 = math.rsqrt %19 : vector<16x1xf32>
    %21 = arith.mulf %17, %20 : vector<16x1xf32>
    %c0_11 = arith.constant 0 : index
    %c0_12 = arith.constant 0 : index
    %22 = vector.load %arg4[%c0_11, %c0_12] : memref<16x1xf32, #tpu.memory_space<vmem>>, vector<16x1xf32>
    %23 = arith.mulf %7, %21 : vector<16x1xf32>
    %24 = arith.subf %22, %23 : vector<16x1xf32>
    %25 = vector.broadcast %21 : vector<16x1xf32> to vector<16x512xf32>
    %26 = arith.mulf %3, %25 : vector<16x512xf32>
    %27 = vector.broadcast %24 : vector<16x1xf32> to vector<16x512xf32>
    %28 = arith.addf %26, %27 : vector<16x512xf32>
    %cst_13 = arith.constant 0.000000e+00 : f32
    %29 = vector.broadcast %cst_13 : f32 to vector<16x512xf32>
    %30 = arith.cmpf ogt, %28, %29 : vector<16x512xf32>
    %cst_14 = arith.constant 2.000000e-01 : f32
    %31 = vector.broadcast %cst_14 : f32 to vector<16x512xf32>
    %32 = arith.mulf %31, %28 : vector<16x512xf32>
    %33 = arith.select %30, %28, %32 : vector<16x512xi1>, vector<16x512xf32>
    %34 = arith.truncf %33 : vector<16x512xf32> to vector<16x512xbf16>
    %c0_15 = arith.constant 0 : index
    %c0_16 = arith.constant 0 : index
    %35 = vector.load %arg5[%c0_15, %c0_16] : memref<16x512xbf16, #tpu.memory_space<vmem>>, vector<16x512xbf16>
    tpu.vector_store %arg5[%c0_15, %c0_16], %34 {strides = array<i32>} : memref<16x512xbf16, #tpu.memory_space<vmem>>, vector<16x512xbf16>,
    return
  }
  func.func @transform_0(%arg0: i32) -> (i32, i32) {
    %c0_i32 = arith.constant 0 : i32
    %c0_i32_0 = arith.constant 0 : i32
    return %arg0, %c0_i32 : i32, i32
  }
  func.func @transform_1(%arg0: i32) -> (i32, i32) {
    %c0_i32 = arith.constant 0 : i32
    %c0_i32_0 = arith.constant 0 : i32
    %c0_i32_1 = arith.constant 0 : i32
    return %c0_i32, %c0_i32_0 : i32, i32
  }
  func.func @transform_2(%arg0: i32) -> (i32, i32) {
    %c0_i32 = arith.constant 0 : i32
    %c0_i32_0 = arith.constant 0 : i32
    return %arg0, %c0_i32 : i32, i32
  }
  func.func @transform_3(%arg0: i32) -> (i32, i32) {
    %c0_i32 = arith.constant 0 : i32
    %c0_i32_0 = arith.constant 0 : i32
    return %arg0, %c0_i32 : i32, i32
  }
  func.func @transform_4(%arg0: i32) -> (i32, i32) {
    %c0_i32 = arith.constant 0 : i32
    %c0_i32_0 = arith.constant 0 : i32
    return %arg0, %c0_i32 : i32, i32
  }
}

module attributes {stable_mosaic.version = 11 : i64} {
  func.func @_conv_bn_leaky_kernel(%arg0: i32, %arg1: memref<32x512xf32, #tpu.memory_space<vmem>>, %arg2: memref<512x128xbf16, #tpu.memory_space<vmem>>, %arg3: memref<32x1xf32, #tpu.memory_space<vmem>>, %arg4: memref<32x1xf32, #tpu.memory_space<vmem>>, %arg5: memref<32x128xbf16, #tpu.memory_space<vmem>>) attributes {dimension_semantics = [#tpu.dimension_semantics<parallel>], iteration_bounds = array<i64: 2>, scalar_prefetch = 0 : i64, scratch_operands = 0 : i64, tpu.core_type = #tpu.core_type<tc>, window_params = [{transform_indices = @transform_0, window_bounds = array<i64: 32, 512>}, {pipeline_mode = #tpu.pipeline_mode<synchronous>, transform_indices = @transform_1, window_bounds = array<i64: 512, 128>}, {transform_indices = @transform_2, window_bounds = array<i64: 32, 1>}, {transform_indices = @transform_3, window_bounds = array<i64: 32, 1>}, {transform_indices = @transform_4, window_bounds = array<i64: 32, 128>}]} {
    %c0 = arith.constant 0 : index
    %c0_0 = arith.constant 0 : index
    %0 = vector.load %arg1[%c0, %c0_0] : memref<32x512xf32, #tpu.memory_space<vmem>>, vector<32x512xf32>
    %1 = arith.truncf %0 : vector<32x512xf32> to vector<32x512xbf16>
    %c0_1 = arith.constant 0 : index
    %c0_2 = arith.constant 0 : index
    %2 = vector.load %arg2[%c0_1, %c0_2] : memref<512x128xbf16, #tpu.memory_space<vmem>>, vector<512x128xbf16>
    %cst = arith.constant dense<0.000000e+00> : vector<32x128xf32>
    %3 = tpu.matmul %1, %2, %cst {dimension_numbers = #tpu.dot_dimension_numbers<[1], [0], [0], [1], [0, 0, 1, 1], [], []>} : vector<32x512xbf16>, vector<512x128xbf16>, vector<32x128xf32> -> vector<32x128xf32>
    %cst_3 = arith.constant dense<0.000000e+00> : vector<32xf32>
    %4 = vector.multi_reduction <add>, %3, %cst_3 [1] : vector<32x128xf32> to vector<32xf32>
    %5 = vector.shape_cast %4 : vector<32xf32> to vector<32x1xf32>
    %cst_4 = arith.constant 7.812500e-03 : f32
    %6 = vector.broadcast %cst_4 : f32 to vector<32x1xf32>
    %7 = arith.mulf %5, %6 : vector<32x1xf32>
    %8 = arith.mulf %3, %3 : vector<32x128xf32>
    %cst_5 = arith.constant dense<0.000000e+00> : vector<32xf32>
    %9 = vector.multi_reduction <add>, %8, %cst_5 [1] : vector<32x128xf32> to vector<32xf32>
    %10 = vector.shape_cast %9 : vector<32xf32> to vector<32x1xf32>
    %cst_6 = arith.constant 7.812500e-03 : f32
    %11 = vector.broadcast %cst_6 : f32 to vector<32x1xf32>
    %12 = arith.mulf %10, %11 : vector<32x1xf32>
    %13 = arith.mulf %7, %7 : vector<32x1xf32>
    %14 = arith.subf %12, %13 : vector<32x1xf32>
    %cst_7 = arith.constant 0.000000e+00 : f32
    %15 = vector.broadcast %cst_7 : f32 to vector<32x1xf32>
    %16 = arith.maximumf %14, %15 : vector<32x1xf32>
    %c0_8 = arith.constant 0 : index
    %c0_9 = arith.constant 0 : index
    %17 = vector.load %arg3[%c0_8, %c0_9] : memref<32x1xf32, #tpu.memory_space<vmem>>, vector<32x1xf32>
    %cst_10 = arith.constant 9.99999974E-6 : f32
    %18 = vector.broadcast %cst_10 : f32 to vector<32x1xf32>
    %19 = arith.addf %16, %18 : vector<32x1xf32>
    %20 = math.rsqrt %19 : vector<32x1xf32>
    %21 = arith.mulf %17, %20 : vector<32x1xf32>
    %c0_11 = arith.constant 0 : index
    %c0_12 = arith.constant 0 : index
    %22 = vector.load %arg4[%c0_11, %c0_12] : memref<32x1xf32, #tpu.memory_space<vmem>>, vector<32x1xf32>
    %23 = arith.mulf %7, %21 : vector<32x1xf32>
    %24 = arith.subf %22, %23 : vector<32x1xf32>
    %25 = vector.broadcast %21 : vector<32x1xf32> to vector<32x128xf32>
    %26 = arith.mulf %3, %25 : vector<32x128xf32>
    %27 = vector.broadcast %24 : vector<32x1xf32> to vector<32x128xf32>
    %28 = arith.addf %26, %27 : vector<32x128xf32>
    %cst_13 = arith.constant 0.000000e+00 : f32
    %29 = vector.broadcast %cst_13 : f32 to vector<32x128xf32>
    %30 = arith.cmpf ogt, %28, %29 : vector<32x128xf32>
    %cst_14 = arith.constant 2.000000e-01 : f32
    %31 = vector.broadcast %cst_14 : f32 to vector<32x128xf32>
    %32 = arith.mulf %31, %28 : vector<32x128xf32>
    %33 = arith.select %30, %28, %32 : vector<32x128xi1>, vector<32x128xf32>
    %34 = arith.truncf %33 : vector<32x128xf32> to vector<32x128xbf16>
    %c0_15 = arith.constant 0 : index
    %c0_16 = arith.constant 0 : index
    %35 = vector.load %arg5[%c0_15, %c0_16] : memref<32x128xbf16, #tpu.memory_space<vmem>>, vector<32x128xbf16>
    tpu.vector_store %arg5[%c0_15, %c0_16], %34 {strides = array<i32>} : memref<32x128xbf16, #tpu.memory_space<vmem>>, vector<32x128xbf16>,
    return
  }
  func.func @transform_0(%arg0: i32) -> (i32, i32) {
    %c0_i32 = arith.constant 0 : i32
    %c0_i32_0 = arith.constant 0 : i32
    return %arg0, %c0_i32 : i32, i32
  }
  func.func @transform_1(%arg0: i32) -> (i32, i32) {
    %c0_i32 = arith.constant 0 : i32
    %c0_i32_0 = arith.constant 0 : i32
    %c0_i32_1 = arith.constant 0 : i32
    return %c0_i32, %c0_i32_0 : i32, i32
  }
  func.func @transform_2(%arg0: i32) -> (i32, i32) {
    %c0_i32 = arith.constant 0 : i32
    %c0_i32_0 = arith.constant 0 : i32
    return %arg0, %c0_i32 : i32, i32
  }
  func.func @transform_3(%arg0: i32) -> (i32, i32) {
    %c0_i32 = arith.constant 0 : i32
    %c0_i32_0 = arith.constant 0 : i32
    return %arg0, %c0_i32 : i32, i32
  }
  func.func @transform_4(%arg0: i32) -> (i32, i32) {
    %c0_i32 = arith.constant 0 : i32
    %c0_i32_0 = arith.constant 0 : i32
    return %arg0, %c0_i32 : i32, i32
  }
}

module attributes {stable_mosaic.version = 11 : i64} {
  func.func @_conv_bn_leaky_kernel(%arg0: i32, %arg1: memref<16x1024xf32, #tpu.memory_space<vmem>>, %arg2: memref<1024x32xbf16, #tpu.memory_space<vmem>>, %arg3: memref<16x1xf32, #tpu.memory_space<vmem>>, %arg4: memref<16x1xf32, #tpu.memory_space<vmem>>, %arg5: memref<16x32xbf16, #tpu.memory_space<vmem>>) attributes {dimension_semantics = [#tpu.dimension_semantics<parallel>], iteration_bounds = array<i64: 2>, scalar_prefetch = 0 : i64, scratch_operands = 0 : i64, tpu.core_type = #tpu.core_type<tc>, window_params = [{transform_indices = @transform_0, window_bounds = array<i64: 16, 1024>}, {pipeline_mode = #tpu.pipeline_mode<synchronous>, transform_indices = @transform_1, window_bounds = array<i64: 1024, 32>}, {transform_indices = @transform_2, window_bounds = array<i64: 16, 1>}, {transform_indices = @transform_3, window_bounds = array<i64: 16, 1>}, {transform_indices = @transform_4, window_bounds = array<i64: 16, 32>}]} {
    %c0 = arith.constant 0 : index
    %c0_0 = arith.constant 0 : index
    %0 = vector.load %arg1[%c0, %c0_0] : memref<16x1024xf32, #tpu.memory_space<vmem>>, vector<16x1024xf32>
    %1 = arith.truncf %0 : vector<16x1024xf32> to vector<16x1024xbf16>
    %c0_1 = arith.constant 0 : index
    %c0_2 = arith.constant 0 : index
    %2 = vector.load %arg2[%c0_1, %c0_2] : memref<1024x32xbf16, #tpu.memory_space<vmem>>, vector<1024x32xbf16>
    %cst = arith.constant dense<0.000000e+00> : vector<16x32xf32>
    %3 = tpu.matmul %1, %2, %cst {dimension_numbers = #tpu.dot_dimension_numbers<[1], [0], [0], [1], [0, 0, 1, 1], [], []>} : vector<16x1024xbf16>, vector<1024x32xbf16>, vector<16x32xf32> -> vector<16x32xf32>
    %cst_3 = arith.constant dense<0.000000e+00> : vector<16xf32>
    %4 = vector.multi_reduction <add>, %3, %cst_3 [1] : vector<16x32xf32> to vector<16xf32>
    %5 = vector.shape_cast %4 : vector<16xf32> to vector<16x1xf32>
    %cst_4 = arith.constant 3.125000e-02 : f32
    %6 = vector.broadcast %cst_4 : f32 to vector<16x1xf32>
    %7 = arith.mulf %5, %6 : vector<16x1xf32>
    %8 = arith.mulf %3, %3 : vector<16x32xf32>
    %cst_5 = arith.constant dense<0.000000e+00> : vector<16xf32>
    %9 = vector.multi_reduction <add>, %8, %cst_5 [1] : vector<16x32xf32> to vector<16xf32>
    %10 = vector.shape_cast %9 : vector<16xf32> to vector<16x1xf32>
    %cst_6 = arith.constant 3.125000e-02 : f32
    %11 = vector.broadcast %cst_6 : f32 to vector<16x1xf32>
    %12 = arith.mulf %10, %11 : vector<16x1xf32>
    %13 = arith.mulf %7, %7 : vector<16x1xf32>
    %14 = arith.subf %12, %13 : vector<16x1xf32>
    %cst_7 = arith.constant 0.000000e+00 : f32
    %15 = vector.broadcast %cst_7 : f32 to vector<16x1xf32>
    %16 = arith.maximumf %14, %15 : vector<16x1xf32>
    %c0_8 = arith.constant 0 : index
    %c0_9 = arith.constant 0 : index
    %17 = vector.load %arg3[%c0_8, %c0_9] : memref<16x1xf32, #tpu.memory_space<vmem>>, vector<16x1xf32>
    %cst_10 = arith.constant 9.99999974E-6 : f32
    %18 = vector.broadcast %cst_10 : f32 to vector<16x1xf32>
    %19 = arith.addf %16, %18 : vector<16x1xf32>
    %20 = math.rsqrt %19 : vector<16x1xf32>
    %21 = arith.mulf %17, %20 : vector<16x1xf32>
    %c0_11 = arith.constant 0 : index
    %c0_12 = arith.constant 0 : index
    %22 = vector.load %arg4[%c0_11, %c0_12] : memref<16x1xf32, #tpu.memory_space<vmem>>, vector<16x1xf32>
    %23 = arith.mulf %7, %21 : vector<16x1xf32>
    %24 = arith.subf %22, %23 : vector<16x1xf32>
    %25 = vector.broadcast %21 : vector<16x1xf32> to vector<16x32xf32>
    %26 = arith.mulf %3, %25 : vector<16x32xf32>
    %27 = vector.broadcast %24 : vector<16x1xf32> to vector<16x32xf32>
    %28 = arith.addf %26, %27 : vector<16x32xf32>
    %cst_13 = arith.constant 0.000000e+00 : f32
    %29 = vector.broadcast %cst_13 : f32 to vector<16x32xf32>
    %30 = arith.cmpf ogt, %28, %29 : vector<16x32xf32>
    %cst_14 = arith.constant 2.000000e-01 : f32
    %31 = vector.broadcast %cst_14 : f32 to vector<16x32xf32>
    %32 = arith.mulf %31, %28 : vector<16x32xf32>
    %33 = arith.select %30, %28, %32 : vector<16x32xi1>, vector<16x32xf32>
    %34 = arith.truncf %33 : vector<16x32xf32> to vector<16x32xbf16>
    %c0_15 = arith.constant 0 : index
    %c0_16 = arith.constant 0 : index
    %35 = vector.load %arg5[%c0_15, %c0_16] : memref<16x32xbf16, #tpu.memory_space<vmem>>, vector<16x32xbf16>
    tpu.vector_store %arg5[%c0_15, %c0_16], %34 {strides = array<i32>} : memref<16x32xbf16, #tpu.memory_space<vmem>>, vector<16x32xbf16>,
    return
  }
  func.func @transform_0(%arg0: i32) -> (i32, i32) {
    %c0_i32 = arith.constant 0 : i32
    %c0_i32_0 = arith.constant 0 : i32
    return %arg0, %c0_i32 : i32, i32
  }
  func.func @transform_1(%arg0: i32) -> (i32, i32) {
    %c0_i32 = arith.constant 0 : i32
    %c0_i32_0 = arith.constant 0 : i32
    %c0_i32_1 = arith.constant 0 : i32
    return %c0_i32, %c0_i32_0 : i32, i32
  }
  func.func @transform_2(%arg0: i32) -> (i32, i32) {
    %c0_i32 = arith.constant 0 : i32
    %c0_i32_0 = arith.constant 0 : i32
    return %arg0, %c0_i32 : i32, i32
  }
  func.func @transform_3(%arg0: i32) -> (i32, i32) {
    %c0_i32 = arith.constant 0 : i32
    %c0_i32_0 = arith.constant 0 : i32
    return %arg0, %c0_i32 : i32, i32
  }
  func.func @transform_4(%arg0: i32) -> (i32, i32) {
    %c0_i32 = arith.constant 0 : i32
    %c0_i32_0 = arith.constant 0 : i32
    return %arg0, %c0_i32 : i32, i32
  }
}

module attributes {stable_mosaic.version = 11 : i64} {
  func.func @_conv_act_kernel(%arg0: i32, %arg1: memref<1x512xf32, #tpu.memory_space<vmem>>, %arg2: memref<512x2xbf16, #tpu.memory_space<vmem>>, %arg3: memref<1x2xf32, #tpu.memory_space<vmem>>) attributes {dimension_semantics = [#tpu.dimension_semantics<parallel>], iteration_bounds = array<i64: 1>, scalar_prefetch = 0 : i64, scratch_operands = 0 : i64, tpu.core_type = #tpu.core_type<tc>, window_params = [{pipeline_mode = #tpu.pipeline_mode<synchronous>, transform_indices = @transform_0, window_bounds = array<i64: 1, 512>}, {transform_indices = @transform_1, window_bounds = array<i64: 512, 2>}, {transform_indices = @transform_2, window_bounds = array<i64: 1, 2>}]} {
    %c0 = arith.constant 0 : index
    %c0_0 = arith.constant 0 : index
    %0 = vector.load %arg1[%c0, %c0_0] : memref<1x512xf32, #tpu.memory_space<vmem>>, vector<1x512xf32>
    %1 = arith.truncf %0 : vector<1x512xf32> to vector<1x512xbf16>
    %c0_1 = arith.constant 0 : index
    %c0_2 = arith.constant 0 : index
    %2 = vector.load %arg2[%c0_1, %c0_2] : memref<512x2xbf16, #tpu.memory_space<vmem>>, vector<512x2xbf16>
    %cst = arith.constant dense<0.000000e+00> : vector<1x2xf32>
    %3 = tpu.matmul %1, %2, %cst {dimension_numbers = #tpu.dot_dimension_numbers<[1], [0], [0], [1], [0, 0, 1, 1], [], []>} : vector<1x512xbf16>, vector<512x2xbf16>, vector<1x2xf32> -> vector<1x2xf32>
    %4 = arith.negf %3 : vector<1x2xf32>
    %5 = math.exp %4 : vector<1x2xf32>
    %cst_3 = arith.constant 1.000000e+00 : f32
    %6 = vector.broadcast %cst_3 : f32 to vector<1x2xf32>
    %7 = arith.addf %6, %5 : vector<1x2xf32>
    %8 = arith.divf %6, %7 : vector<1x2xf32>
    %c0_4 = arith.constant 0 : index
    %c0_5 = arith.constant 0 : index
    %9 = vector.load %arg3[%c0_4, %c0_5] : memref<1x2xf32, #tpu.memory_space<vmem>>, vector<1x2xf32>
    tpu.vector_store %arg3[%c0_4, %c0_5], %8 {strides = array<i32>} : memref<1x2xf32, #tpu.memory_space<vmem>>, vector<1x2xf32>,
    return
  }
  func.func @transform_0(%arg0: i32) -> (i32, i32) {
    %c0_i32 = arith.constant 0 : i32
    %c0_i32_0 = arith.constant 0 : i32
    %c0_i32_1 = arith.constant 0 : i32
    return %c0_i32, %c0_i32_0 : i32, i32
  }
  func.func @transform_1(%arg0: i32) -> (i32, i32) {
    %c0_i32 = arith.constant 0 : i32
    %c0_i32_0 = arith.constant 0 : i32
    return %c0_i32, %arg0 : i32, i32
  }
  func.func @transform_2(%arg0: i32) -> (i32, i32) {
    %c0_i32 = arith.constant 0 : i32
    %c0_i32_0 = arith.constant 0 : i32
    return %c0_i32, %arg0 : i32, i32
  }
}

</mosaic_0001>

<llo_original>
// kernel: discriminator128_forward.6
$region0: #{discriminator128_forward.6}
  #allocation0 [shape = 'u32[]', space=smem, size = 0x4, offset = 0x4, fixed_abs, tag = 'smem constant byte address 0x4 - core index']
  #allocation1 [shape = 'u32[144,128]{1,0:T(1,128)}', space=vmem, size = 0x12000, scoped, tag = 'internal scratch']
  %s0 = inlined_call_operand.vmem [shape: f32[8,48], index: 0, kind: input, shape index: {}]
  %s1 = inlined_call_operand.vmem [shape: bf16[48,8192], index: 1, kind: input, shape index: {}]
  %s2 = inlined_call_operand.vmem [shape: bf16[8,8192], index: 2, kind: output, shape index: {}]
  %s3 = sld [smem:[#allocation0]]
  $region64: #{discriminator128_forward.6} parent=0
    _
  %s5 = ssub.s32 1, %s3
  %s6 = scalar_select 0, %s5, %s3
  $region1: #{discriminator128_forward.6} parent=0
    #allocation2 [shape = 'u8[786432]{0}', space=vmem, size = 0xc0000, scoped, tag = 'input window, operand 1']
    loop: start=0, step=1, limit=4
    $region2: #{discriminator128_forward.6} parent=1 // loop_pre_header
      _
    $region3: #{discriminator128_forward.6} parent=1 // loop_header
      %s8 = sphi 0, %s12
      %p9 = scmp.ge.s32.totalorder %s8, 4
      %s16 = sphi 0, %s16
      %s18 = sphi 0, %s16
      %s19 = sphi 0, %s18
      %s33 = sphi 0, %s19
      %s39 = sphi 0, %s41
      %s42 = sphi 0, %s39
      %s43 = sphi 0, %s42
      %s59 = sphi 0, %s43
      %s65 = sphi 0, %s67
      %s68 = sphi 0, %s65
      %s69 = sphi 0, %s68
      %s85 = sphi 0, %s69
    $region4: #{discriminator128_forward.6} parent=1 // loop_header_branch
      %11 = sbr.rel (%p9) target = $region8
    $region5: #{discriminator128_forward.6} parent=1 // loop_body
      %s13 = ssub.s32 %s8, 1
      %s14 = ssub.s32 %s8, 2
      %s15 = sadd.s32 %s8, 1
      %s17 = sadd.s32 %s16, 1
      %p20 = scmp.eq.s32.totalorder %s8, 1
      %p21 = scmp.ne.s32.totalorder %s16, %s18
      %p22 = scmp.eq.s32.totalorder %s8, 0
      %p23 = por %p21, %p22
      %p24 = scmp.ne.s32.totalorder %s16, %s18
      %p25 = scmp.eq.s32.totalorder %s13, 1
      %p26 = por %p24, %p25
      %p27 = scmp.ne.s32.totalorder %s18, %s19
      %p28 = scmp.eq.s32.totalorder %s13, 0
      %p29 = por %p27, %p28
      %p30 = scmp.ne.s32.totalorder %s18, %s19
      %p31 = scmp.eq.s32.totalorder %s14, 1
      %p32 = por %p30, %p31
      %p34 = scmp.ne.s32.totalorder %s19, %s33
      %p35 = scmp.eq.s32.totalorder %s14, 0
      %p36 = por %p34, %p35
      %s37 = ssub.s32 %s8, %s15
      %p38 = scmp.eq.s32.totalorder %s37, 0
      %s40 = sadd.s32 %s39, 1
      %s41 = scalar_select %p38, %s39, %s40
      %p44 = pneg %p38
      %p45 = scmp.eq.s32.totalorder %s8, 1
      %p46 = por %p44, %p45
      %p47 = scmp.ne.s32.totalorder %s39, %s42
      %p48 = scmp.eq.s32.totalorder %s8, 0
      %p49 = por %p47, %p48
      %p50 = scmp.ne.s32.totalorder %s39, %s42
      %p51 = scmp.eq.s32.totalorder %s13, 1
      %p52 = por %p50, %p51
      %p53 = scmp.ne.s32.totalorder %s42, %s43
      %p54 = scmp.eq.s32.totalorder %s13, 0
      %p55 = por %p53, %p54
      %p56 = scmp.ne.s32.totalorder %s42, %s43
      %p57 = scmp.eq.s32.totalorder %s14, 1
      %p58 = por %p56, %p57
      %p60 = scmp.ne.s32.totalorder %s43, %s59
      %p61 = scmp.eq.s32.totalorder %s14, 0
      %p62 = por %p60, %p61
      %s63 = ssub.s32 %s8, %s15
      %p64 = scmp.eq.s32.totalorder %s63, 0
      %s66 = sadd.s32 %s65, 1
      %s67 = scalar_select %p64, %s65, %s66
      %p70 = pneg %p64
      %p71 = scmp.eq.s32.totalorder %s8, 1
      %p72 = por %p70, %p71
      %p73 = scmp.ne.s32.totalorder %s65, %s68
      %p74 = scmp.eq.s32.totalorder %s8, 0
      %p75 = por %p73, %p74
      %p76 = scmp.ne.s32.totalorder %s65, %s68
      %p77 = scmp.eq.s32.totalorder %s13, 1
      %p78 = por %p76, %p77
      %p79 = scmp.ne.s32.totalorder %s68, %s69
      %p80 = scmp.eq.s32.totalorder %s13, 0
      %p81 = por %p79, %p80
      %p82 = scmp.ne.s32.totalorder %s68, %s69
      %p83 = scmp.eq.s32.totalorder %s14, 1
      %p84 = por %p82, %p83
      %p86 = scmp.ne.s32.totalorder %s69, %s85
      %p87 = scmp.eq.s32.totalorder %s14, 0
      %p88 = por %p86, %p87
      %p89 = scmp.le.s32.totalorder 1, %s8
      %p90 = scmp.lt.s32.totalorder %s8, 3
      %p91 = pnand %p89, %p90
      %p92 = pneg %p91
      // Predicated region
      $region9: #{discriminator128_forward.6} parent=5 // pred_check
        _
      $region10: #{discriminator128_forward.6} parent=5 // pred_check_branch
        %94 = sbr.rel (%p91) target = $region12
      $region11: #{discriminator128_forward.6} parent=5 // pred_region
        %s95 = ssub.s32 %s8, 1
        // Predicated region
        $region13: #{discriminator128_forward.6} parent=11 // pred_check
          %p96 = pneg %p29
        $region14: #{discriminator128_forward.6} parent=11 // pred_check_branch
          %98 = sbr.rel (%p96) target = $region16
        $region15: #{discriminator128_forward.6} parent=11 // pred_region
          _
        $region16: #{discriminator128_forward.6} parent=11 // pred_fallthru
          _
      $region12: #{discriminator128_forward.6} parent=5 // pred_fallthru
        _
      %p99 = scmp.lt.s32.totalorder %s8, 2
      // Predicated region
      $region17: #{discriminator128_forward.6} parent=5 // pred_check
        %p100 = pneg %p99
      $region18: #{discriminator128_forward.6} parent=5 // pred_check_branch
        %102 = sbr.rel (%p100) target = $region20
      $region19: #{discriminator128_forward.6} parent=5 // pred_region
        // Predicated region
        $region21: #{discriminator128_forward.6} parent=19 // pred_check
          %p103 = pneg %p49
        $region22: #{discriminator128_forward.6} parent=19 // pred_check_branch
          %105 = sbr.rel (%p103) target = $region24
        $region23: #{discriminator128_forward.6} parent=19 // pred_region
          %s106 = sand.u32 %s39, 1
          %s107 = sand.u32 %s39, 1
          %s108 = smul.addr %s107, 768
          %s109 = scalar_lea.vmem [#allocation2], %s108
          %s110 = smul.u32 32, %s8
          %s111 = smul.addr %s110, 4
          %s112 = scalar_lea.vmem %s1, %s111
          // Predicated region
          $region25: #{discriminator128_forward.6} parent=23 // pred_check
            _
          $region26: #{discriminator128_forward.6} parent=23 // pred_check_branch
            %114 = sbr.rel (0) target = $region28
          $region27: #{discriminator128_forward.6} parent=23 // pred_region
            // Predicated region
            $region29: #{discriminator128_forward.6} parent=27 // pred_check
              _
            $region30: #{discriminator128_forward.6} parent=27 // pred_check_branch
              %116 = sbr.rel (0) target = $region32
            $region31: #{discriminator128_forward.6} parent=27 // pred_region
              loop: start=0, step=1, limit=1
              $region33: #{discriminator128_forward.6} parent=31 // loop_pre_header
                _
              $region34: #{discriminator128_forward.6} parent=31 // loop_header
                %s118 = sphi 0, %s122
                %p119 = scmp.ge.s32.totalorder %s118, 1
                %s123 = sphi %s112, %s112
                %s124 = sphi %s109, %s109
              $region35: #{discriminator128_forward.6} parent=31 // loop_header_branch
                %121 = sbr.rel (%p119) target = $region39
              $region36: #{discriminator128_forward.6} parent=31 // loop_body
                %v125 = vld [vmem:[%s123] sm:$0xff]
                %126 = vst [vmem:[%s124] sm:$0xff] %v125
                %v127 = vld [vmem:[%s123 + $0x8] sm:$0xff]
                %128 = vst [vmem:[%s124 + $0x8] sm:$0xff] %v127
                %v129 = vld [vmem:[%s123 + $0x10] sm:$0xff]
                %130 = vst [vmem:[%s124 + $0x10] sm:$0xff] %v129
                %v131 = vld [vmem:[%s123 + $0x18] sm:$0xff]
                %132 = vst [vmem:[%s124 + $0x18] sm:$0xff] %v131
                %v133 = vld [vmem:[%s123 + $0x20] sm:$0xff]
                %134 = vst [vmem:[%s124 + $0x20] sm:$0xff] %v133
                %v135 = vld [vmem:[%s123 + $0x28] sm:$0xff]
                %136 = vst [vmem:[%s124 + $0x28] sm:$0xff] %v135
                %v137 = vld [vmem:[%s123 + $0x30] sm:$0xff]
                %138 = vst [vmem:[%s124 + $0x30] sm:$0xff] %v137
                %v139 = vld [vmem:[%s123 + $0x38] sm:$0xff]
                %140 = vst [vmem:[%s124 + $0x38] sm:$0xff] %v139
                %v141 = vld [vmem:[%s123 + $0x40] sm:$0xff]
                %142 = vst [vmem:[%s124 + $0x40] sm:$0xff] %v141
                %v143 = vld [vmem:[%s123 + $0x48] sm:$0xff]
                %144 = vst [vmem:[%s124 + $0x48] sm:$0xff] %v143
                %v145 = vld [vmem:[%s123 + $0x50] sm:$0xff]
                %146 = vst [vmem:[%s124 + $0x50] sm:$0xff] %v145
                %v147 = vld [vmem:[%s123 + $0x58] sm:$0xff]
                %148 = vst [vmem:[%s124 + $0x58] sm:$0xff] %v147
                %v149 = vld [vmem:[%s123 + $0x60] sm:$0xff]
                %150 = vst [vmem:[%s124 + $0x60] sm:$0xff] %v149
                %v151 = vld [vmem:[%s123 + $0x68] sm:$0xff]
                %152 = vst [vmem:[%s124 + $0x68] sm:$0xff] %v151
                %v153 = vld [vmem:[%s123 + $0x70] sm:$0xff]
                %154 = vst [vmem:[%s124 + $0x70] sm:$0xff] %v153
                %v155 = vld [vmem:[%s123 + $0x78] sm:$0xff]
                %156 = vst [vmem:[%s124 + $0x78] sm:$0xff] %v155
                %v157 = vld [vmem:[%s123 + $0x100] sm:$0xff]
                %158 = vst [vmem:[%s124 + $0x80] sm:$0xff] %v157
                %v159 = vld [vmem:[%s123 + $0x108] sm:$0xff]
                %160 = vst [vmem:[%s124 + $0x88] sm:$0xff] %v159
                %v161 = vld [vmem:[%s123 + $0x110] sm:$0xff]
                %162 = vst [vmem:[%s124 + $0x90] sm:$0xff] %v161
                %v163 = vld [vmem:[%s123 + $0x118] sm:$0xff]
                %164 = vst [vmem:[%s124 + $0x98] sm:$0xff] %v163
                %v165 = vld [vmem:[%s123 + $0x120] sm:$0xff]
                %166 = vst [vmem:[%s124 + $0xa0] sm:$0xff] %v165
                %v167 = vld [vmem:[%s123 + $0x128] sm:$0xff]
                %168 = vst [vmem:[%s124 + $0xa8] sm:$0xff] %v167
                %v169 = vld [vmem:[%s123 + $0x130] sm:$0xff]
                %170 = vst [vmem:[%s124 + $0xb0] sm:$0xff] %v169
                %v171 = vld [vmem:[%s123 + $0x138] sm:$0xff]
                %172 = vst [vmem:[%s124 + $0xb8] sm:$0xff] %v171
                %v173 = vld [vmem:[%s123 + $0x140] sm:$0xff]
                %174 = vst [vmem:[%s124 + $0xc0] sm:$0xff] %v173
                %v175 = vld [vmem:[%s123 + $0x148] sm:$0xff]
                %176 = vst [vmem:[%s124 + $0xc8] sm:$0xff] %v175
                %v177 = vld [vmem:[%s123 + $0x150] sm:$0xff]
                %178 = vst [vmem:[%s124 + $0xd0] sm:$0xff] %v177
                %v179 = vld [vmem:[%s123 + $0x158] sm:$0xff]
                %180 = vst [vmem:[%s124 + $0xd8] sm:$0xff] %v179
                %v181 = vld [vmem:[%s123 + $0x160] sm:$0xff]
                %182 = vst [vmem:[%s124 + $0xe0] sm:$0xff] %v181
                %v183 = vld [vmem:[%s123 + $0x168] sm:$0xff]
                %184 = vst [vmem:[%s124 + $0xe8] sm:$0xff] %v183
                %v185 = vld [vmem:[%s123 + $0x170] sm:$0xff]
                %186 = vst [vmem:[%s124 + $0xf0] sm:$0xff] %v185
                %v187 = vld [vmem:[%s123 + $0x178] sm:$0xff]
                %188 = vst [vmem:[%s124 + $0xf8] sm:$0xff] %v187
                %v189 = vld [vmem:[%s123 + $0x200] sm:$0xff]
                %190 = vst [vmem:[%s124 + $0x100] sm:$0xff] %v189
                %v191 = vld [vmem:[%s123 + $0x208] sm:$0xff]
                %192 = vst [vmem:[%s124 + $0x108] sm:$0xff] %v191
                %v193 = vld [vmem:[%s123 + $0x210] sm:$0xff]
                %194 = vst [vmem:[%s124 + $0x110] sm:$0xff] %v193
                %v195 = vld [vmem:[%s123 + $0x218] sm:$0xff]
                %196 = vst [vmem:[%s124 + $0x118] sm:$0xff] %v195
                %v197 = vld [vmem:[%s123 + $0x220] sm:$0xff]
                %198 = vst [vmem:[%s124 + $0x120] sm:$0xff] %v197
                %v199 = vld [vmem:[%s123 + $0x228] sm:$0xff]
                %200 = vst [vmem:[%s124 + $0x128] sm:$0xff] %v199
                %v201 = vld [vmem:[%s123 + $0x230] sm:$0xff]
                %202 = vst [vmem:[%s124 + $0x130] sm:$0xff] %v201
                %v203 = vld [vmem:[%s123 + $0x238] sm:$0xff]
                %204 = vst [vmem:[%s124 + $0x138] sm:$0xff] %v203
                %v205 = vld [vmem:[%s123 + $0x240] sm:$0xff]
                %206 = vst [vmem:[%s124 + $0x140] sm:$0xff] %v205
                %v207 = vld [vmem:[%s123 + $0x248] sm:$0xff]
                %208 = vst [vmem:[%s124 + $0x148] sm:$0xff] %v207
                %v209 = vld [vmem:[%s123 + $0x250] sm:$0xff]
                %210 = vst [vmem:[%s124 + $0x150] sm:$0xff] %v209
                %v211 = vld [vmem:[%s123 + $0x258] sm:$0xff]
                %212 = vst [vmem:[%s124 + $0x158] sm:$0xff] %v211
                %v213 = vld [vmem:[%s123 + $0x260] sm:$0xff]
                %214 = vst [vmem:[%s124 + $0x160] sm:$0xff] %v213
                %v215 = vld [vmem:[%s123 + $0x268] sm:$0xff]
                %216 = vst [vmem:[%s124 + $0x168] sm:$0xff] %v215
                %v217 = vld [vmem:[%s123 + $0x270] sm:$0xff]
                %218 = vst [vmem:[%s124 + $0x170] sm:$0xff] %v217
                %v219 = vld [vmem:[%s123 + $0x278] sm:$0xff]
                %220 = vst [vmem:[%s124 + $0x178] sm:$0xff] %v219
                %v221 = vld [vmem:[%s123 + $0x300] sm:$0xff]
                %222 = vst [vmem:[%s124 + $0x180] sm:$0xff] %v221
                %v223 = vld [vmem:[%s123 + $0x308] sm:$0xff]
                %224 = vst [vmem:[%s124 + $0x188] sm:$0xff] %v223
                %v225 = vld [vmem:[%s123 + $0x310] sm:$0xff]
                %226 = vst [vmem:[%s124 + $0x190] sm:$0xff] %v225
                %v227 = vld [vmem:[%s123 + $0x318] sm:$0xff]
                %228 = vst [vmem:[%s124 + $0x198] sm:$0xff] %v227
                %v229 = vld [vmem:[%s123 + $0x320] sm:$0xff]
                %230 = vst [vmem:[%s124 + $0x1a0] sm:$0xff] %v229
                %v231 = vld [vmem:[%s123 + $0x328] sm:$0xff]
                %232 = vst [vmem:[%s124 + $0x1a8] sm:$0xff] %v231
                %v233 = vld [vmem:[%s123 + $0x330] sm:$0xff]
                %234 = vst [vmem:[%s124 + $0x1b0] sm:$0xff] %v233
                %v235 = vld [vmem:[%s123 + $0x338] sm:$0xff]
                %236 = vst [vmem:[%s124 + $0x1b8] sm:$0xff] %v235
                %v237 = vld [vmem:[%s123 + $0x340] sm:$0xff]
                %238 = vst [vmem:[%s124 + $0x1c0] sm:$0xff] %v237
                %v239 = vld [vmem:[%s123 + $0x348] sm:$0xff]
                %240 = vst [vmem:[%s124 + $0x1c8] sm:$0xff] %v239
                %v241 = vld [vmem:[%s123 + $0x350] sm:$0xff]
                %242 = vst [vmem:[%s124 + $0x1d0] sm:$0xff] %v241
                %v243 = vld [vmem:[%s123 + $0x358] sm:$0xff]
                %244 = vst [vmem:[%s124 + $0x1d8] sm:$0xff] %v243
                %v245 = vld [vmem:[%s123 + $0x360] sm:$0xff]
                %246 = vst [vmem:[%s124 + $0x1e0] sm:$0xff] %v245
                %v247 = vld [vmem:[%s123 + $0x368] sm:$0xff]
                %248 = vst [vmem:[%s124 + $0x1e8] sm:$0xff] %v247
                %v249 = vld [vmem:[%s123 + $0x370] sm:$0xff]
                %250 = vst [vmem:[%s124 + $0x1f0] sm:$0xff] %v249
                %v251 = vld [vmem:[%s123 + $0x378] sm:$0xff]
                %252 = vst [vmem:[%s124 + $0x1f8] sm:$0xff] %v251
                %v253 = vld [vmem:[%s123 + $0x400] sm:$0xff]
                %254 = vst [vmem:[%s124 + $0x200] sm:$0xff] %v253
                %v255 = vld [vmem:[%s123 + $0x408] sm:$0xff]
                %256 = vst [vmem:[%s124 + $0x208] sm:$0xff] %v255
                %v257 = vld [vmem:[%s123 + $0x410] sm:$0xff]
                %258 = vst [vmem:[%s124 + $0x210] sm:$0xff] %v257
                %v259 = vld [vmem:[%s123 + $0x418] sm:$0xff]
                %260 = vst [vmem:[%s124 + $0x218] sm:$0xff] %v259
                %v261 = vld [vmem:[%s123 + $0x420] sm:$0xff]
                %262 = vst [vmem:[%s124 + $0x220] sm:$0xff] %v261
                %v263 = vld [vmem:[%s123 + $0x428] sm:$0xff]
                %264 = vst [vmem:[%s124 + $0x228] sm:$0xff] %v263
                %v265 = vld [vmem:[%s123 + $0x430] sm:$0xff]
                %266 = vst [vmem:[%s124 + $0x230] sm:$0xff] %v265
                %v267 = vld [vmem:[%s123 + $0x438] sm:$0xff]
                %268 = vst [vmem:[%s124 + $0x238] sm:$0xff] %v267
                %v269 = vld [vmem:[%s123 + $0x440] sm:$0xff]
                %270 = vst [vmem:[%s124 + $0x240] sm:$0xff] %v269
                %v271 = vld [vmem:[%s123 + $0x448] sm:$0xff]
                %272 = vst [vmem:[%s124 + $0x248] sm:$0xff] %v271
                %v273 = vld [vmem:[%s123 + $0x450] sm:$0xff]
                %274 = vst [vmem:[%s124 + $0x250] sm:$0xff] %v273
                %v275 = vld [vmem:[%s123 + $0x458] sm:$0xff]
                %276 = vst [vmem:[%s124 + $0x258] sm:$0xff] %v275
                %v277 = vld [vmem:[%s123 + $0x460] sm:$0xff]
                %278 = vst [vmem:[%s124 + $0x260] sm:$0xff] %v277
                %v279 = vld [vmem:[%s123 + $0x468] sm:$0xff]
                %280 = vst [vmem:[%s124 + $0x268] sm:$0xff] %v279
                %v281 = vld [vmem:[%s123 + $0x470] sm:$0xff]
                %282 = vst [vmem:[%s124 + $0x270] sm:$0xff] %v281
                %v283 = vld [vmem:[%s123 + $0x478] sm:$0xff]
                %284 = vst [vmem:[%s124 + $0x278] sm:$0xff] %v283
                %v285 = vld [vmem:[%s123 + $0x500] sm:$0xff]
                %286 = vst [vmem:[%s124 + $0x280] sm:$0xff] %v285
                %v287 = vld [vmem:[%s123 + $0x508] sm:$0xff]
                %288 = vst [vmem:[%s124 + $0x288] sm:$0xff] %v287
                %v289 = vld [vmem:[%s123 + $0x510] sm:$0xff]
                %290 = vst [vmem:[%s124 + $0x290] sm:$0xff] %v289
                %v291 = vld [vmem:[%s123 + $0x518] sm:$0xff]
                %292 = vst [vmem:[%s124 + $0x298] sm:$0xff] %v291
                %v293 = vld [vmem:[%s123 + $0x520] sm:$0xff]
                %294 = vst [vmem:[%s124 + $0x2a0] sm:$0xff] %v293
                %v295 = vld [vmem:[%s123 + $0x528] sm:$0xff]
                %296 = vst [vmem:[%s124 + $0x2a8] sm:$0xff] %v295
                %v297 = vld [vmem:[%s123 + $0x530] sm:$0xff]
                %298 = vst [vmem:[%s124 + $0x2b0] sm:$0xff] %v297
                %v299 = vld [vmem:[%s123 + $0x538] sm:$0xff]
                %300 = vst [vmem:[%s124 + $0x2b8] sm:$0xff] %v299
                %v301 = vld [vmem:[%s123 + $0x540] sm:$0xff]
                %302 = vst [vmem:[%s124 + $0x2c0] sm:$0xff] %v301
                %v303 = vld [vmem:[%s123 + $0x548] sm:$0xff]
                %304 = vst [vmem:[%s124 + $0x2c8] sm:$0xff] %v303
                %v305 = vld [vmem:[%s123 + $0x550] sm:$0xff]
                %306 = vst [vmem:[%s124 + $0x2d0] sm:$0xff] %v305
                %v307 = vld [vmem:[%s123 + $0x558] sm:$0xff]
                %308 = vst [vmem:[%s124 + $0x2d8] sm:$0xff] %v307
                %v309 = vld [vmem:[%s123 + $0x560] sm:$0xff]
                %310 = vst [vmem:[%s124 + $0x2e0] sm:$0xff] %v309
                %v311 = vld [vmem:[%s123 + $0x568] sm:$0xff]
                %312 = vst [vmem:[%s124 + $0x2e8] sm:$0xff] %v311
                %v313 = vld [vmem:[%s123 + $0x570] sm:$0xff]
                %314 = vst [vmem:[%s124 + $0x2f0] sm:$0xff] %v313
                %v315 = vld [vmem:[%s123 + $0x578] sm:$0xff]
                %316 = vst [vmem:[%s124 + $0x2f8] sm:$0xff] %v315
              $region37: #{discriminator128_forward.6} parent=31 // loop_footer
                %s122 = sadd.s32 1, %s118
              $region38: #{discriminator128_forward.6} parent=31 // loop_footer_branch
                %117 = sbr.rel target = $region34
              $region39: #{discriminator128_forward.6} parent=31 // loop_exit
                _
            $region32: #{discriminator128_forward.6} parent=27 // pred_fallthru
              _
            // Predicated region
            $region40: #{discriminator128_forward.6} parent=27 // pred_check
              _
            $region41: #{discriminator128_forward.6} parent=27 // pred_check_branch
              %318 = sbr.rel target = $region43
            $region42: #{discriminator128_forward.6} parent=27 // pred_region
              _
            $region43: #{discriminator128_forward.6} parent=27 // pred_fallthru
              _
          $region28: #{discriminator128_forward.6} parent=23 // pred_fallthru
            _
          %319 = vnop
        $region24: #{discriminator128_forward.6} parent=19 // pred_fallthru
          _
      $region20: #{discriminator128_forward.6} parent=5 // pred_fallthru
        _
      %p320 = scmp.le.s32.totalorder 1, %s8
      %p321 = scmp.lt.s32.totalorder %s8, 3
      %p322 = pnand %p320, %p321
      %p323 = pneg %p322
      // Predicated region
      $region44: #{discriminator128_forward.6} parent=5 // pred_check
        _
      $region45: #{discriminator128_forward.6} parent=5 // pred_check_branch
        %325 = sbr.rel (%p322) target = $region47
      $region46: #{discriminator128_forward.6} parent=5 // pred_region
        %s326 = ssub.s32 %s8, 1
        %s327 = sand.u32 %s42, 1
        %s328 = sand.u32 %s42, 1
        %s329 = smul.addr %s328, 768
        %s330 = scalar_lea.vmem [#allocation2], %s329
        // Predicated region
        $region48: #{discriminator128_forward.6} parent=46 // pred_check
          %p331 = pneg %p55
        $region49: #{discriminator128_forward.6} parent=46 // pred_check_branch
          %333 = sbr.rel (%p331) target = $region51
        $region50: #{discriminator128_forward.6} parent=46 // pred_region
          _
        $region51: #{discriminator128_forward.6} parent=46 // pred_fallthru
          _
        %p334 = pneg %p29
        %p335 = pneg %p26
        %s336 = sand.u32 %s42, 1
        %s337 = sand.u32 %s42, 1
        %s338 = smul.addr %s337, 768
        %s339 = scalar_lea.vmem [#allocation2], %s338
        %p340 = pneg %p55
        %p341 = pneg %p52
        %p342 = pneg %p81
        %p343 = pneg %p78
        %s344 = smul.u32 32, %s13
        %p345 = scmp.lt.s32.totalorder %s344, 63
        %s346 = scalar_select %p345, %s344, 63
        %s347 = smul.addr %s346, 4
        %s348 = scalar_lea.vmem %s2, %s347
        %s349 = smul.u32 32, %s13
        %s350 = smul.u32 32, %s13
        %p351 = scmp.lt.s32.totalorder %s350, 63
        %s352 = scalar_select %p351, %s350, 63
        %s353 = smul.addr %s352, 4
        %s354 = scalar_lea.vmem %s2, %s353
        %s355 = smul.u32 32, %s13
        %v357 = vld [vmem:[%s0] sm:$0xff]
        %v358 = vpack.c.bf16 %v357, %v357
        %v359 = vld [vmem:[%s330] sm:$0xff]
        %v360 = vld [vmem:[%s330 + $0x8] sm:$0xff]
        %v361 = vld [vmem:[%s330 + $0x10] sm:$0xff]
        %v362 = vld [vmem:[%s330 + $0x18] sm:$0xff]
        %v363 = vld [vmem:[%s330 + $0x20] sm:$0xff]
        %v364 = vld [vmem:[%s330 + $0x28] sm:$0xff]
        %v365 = vld [vmem:[%s330 + $0x30] sm:$0xff]
        %v366 = vld [vmem:[%s330 + $0x38] sm:$0xff]
        %v367 = vld [vmem:[%s330 + $0x40] sm:$0xff]
        %v368 = vld [vmem:[%s330 + $0x48] sm:$0xff]
        %v369 = vld [vmem:[%s330 + $0x50] sm:$0xff]
        %v370 = vld [vmem:[%s330 + $0x58] sm:$0xff]
        %v371 = vld [vmem:[%s330 + $0x60] sm:$0xff]
        %v372 = vld [vmem:[%s330 + $0x68] sm:$0xff]
        %v373 = vld [vmem:[%s330 + $0x70] sm:$0xff]
        %v374 = vld [vmem:[%s330 + $0x78] sm:$0xff]
        %v375 = vld [vmem:[%s330 + $0x80] sm:$0xff]
        %v376 = vld [vmem:[%s330 + $0x88] sm:$0xff]
        %v377 = vld [vmem:[%s330 + $0x90] sm:$0xff]
        %v378 = vld [vmem:[%s330 + $0x98] sm:$0xff]
        %v379 = vld [vmem:[%s330 + $0xa0] sm:$0xff]
        %v380 = vld [vmem:[%s330 + $0xa8] sm:$0xff]
        %v381 = vld [vmem:[%s330 + $0xb0] sm:$0xff]
        %v382 = vld [vmem:[%s330 + $0xb8] sm:$0xff]
        %v383 = vld [vmem:[%s330 + $0xc0] sm:$0xff]
        %v384 = vld [vmem:[%s330 + $0xc8] sm:$0xff]
        %v385 = vld [vmem:[%s330 + $0xd0] sm:$0xff]
        %v386 = vld [vmem:[%s330 + $0xd8] sm:$0xff]
        %v387 = vld [vmem:[%s330 + $0xe0] sm:$0xff]
        %v388 = vld [vmem:[%s330 + $0xe8] sm:$0xff]
        %v389 = vld [vmem:[%s330 + $0xf0] sm:$0xff]
        %v390 = vld [vmem:[%s330 + $0xf8] sm:$0xff]
        %v391 = vld [vmem:[%s330 + $0x100] sm:$0xff]
        %v392 = vld [vmem:[%s330 + $0x108] sm:$0xff]
        %v393 = vld [vmem:[%s330 + $0x110] sm:$0xff]
        %v394 = vld [vmem:[%s330 + $0x118] sm:$0xff]
        %v395 = vld [vmem:[%s330 + $0x120] sm:$0xff]
        %v396 = vld [vmem:[%s330 + $0x128] sm:$0xff]
        %v397 = vld [vmem:[%s330 + $0x130] sm:$0xff]
        %v398 = vld [vmem:[%s330 + $0x138] sm:$0xff]
        %v399 = vld [vmem:[%s330 + $0x140] sm:$0xff]
        %v400 = vld [vmem:[%s330 + $0x148] sm:$0xff]
        %v401 = vld [vmem:[%s330 + $0x150] sm:$0xff]
        %v402 = vld [vmem:[%s330 + $0x158] sm:$0xff]
        %v403 = vld [vmem:[%s330 + $0x160] sm:$0xff]
        %v404 = vld [vmem:[%s330 + $0x168] sm:$0xff]
        %v405 = vld [vmem:[%s330 + $0x170] sm:$0xff]
        %v406 = vld [vmem:[%s330 + $0x178] sm:$0xff]
        %v407 = vld [vmem:[%s330 + $0x180] sm:$0xff]
        %v408 = vld [vmem:[%s330 + $0x188] sm:$0xff]
        %v409 = vld [vmem:[%s330 + $0x190] sm:$0xff]
        %v410 = vld [vmem:[%s330 + $0x198] sm:$0xff]
        %v411 = vld [vmem:[%s330 + $0x1a0] sm:$0xff]
        %v412 = vld [vmem:[%s330 + $0x1a8] sm:$0xff]
        %v413 = vld [vmem:[%s330 + $0x1b0] sm:$0xff]
        %v414 = vld [vmem:[%s330 + $0x1b8] sm:$0xff]
        %v415 = vld [vmem:[%s330 + $0x1c0] sm:$0xff]
        %v416 = vld [vmem:[%s330 + $0x1c8] sm:$0xff]
        %v417 = vld [vmem:[%s330 + $0x1d0] sm:$0xff]
        %v418 = vld [vmem:[%s330 + $0x1d8] sm:$0xff]
        %v419 = vld [vmem:[%s330 + $0x1e0] sm:$0xff]
        %v420 = vld [vmem:[%s330 + $0x1e8] sm:$0xff]
        %v421 = vld [vmem:[%s330 + $0x1f0] sm:$0xff]
        %v422 = vld [vmem:[%s330 + $0x1f8] sm:$0xff]
        %v423 = vld [vmem:[%s330 + $0x200] sm:$0xff]
        %v424 = vld [vmem:[%s330 + $0x208] sm:$0xff]
        %v425 = vld [vmem:[%s330 + $0x210] sm:$0xff]
        %v426 = vld [vmem:[%s330 + $0x218] sm:$0xff]
        %v427 = vld [vmem:[%s330 + $0x220] sm:$0xff]
        %v428 = vld [vmem:[%s330 + $0x228] sm:$0xff]
        %v429 = vld [vmem:[%s330 + $0x230] sm:$0xff]
        %v430 = vld [vmem:[%s330 + $0x238] sm:$0xff]
        %v431 = vld [vmem:[%s330 + $0x240] sm:$0xff]
        %v432 = vld [vmem:[%s330 + $0x248] sm:$0xff]
        %v433 = vld [vmem:[%s330 + $0x250] sm:$0xff]
        %v434 = vld [vmem:[%s330 + $0x258] sm:$0xff]
        %v435 = vld [vmem:[%s330 + $0x260] sm:$0xff]
        %v436 = vld [vmem:[%s330 + $0x268] sm:$0xff]
        %v437 = vld [vmem:[%s330 + $0x270] sm:$0xff]
        %v438 = vld [vmem:[%s330 + $0x278] sm:$0xff]
        %v439 = vld [vmem:[%s330 + $0x280] sm:$0xff]
        %v440 = vld [vmem:[%s330 + $0x288] sm:$0xff]
        %v441 = vld [vmem:[%s330 + $0x290] sm:$0xff]
        %v442 = vld [vmem:[%s330 + $0x298] sm:$0xff]
        %v443 = vld [vmem:[%s330 + $0x2a0] sm:$0xff]
        %v444 = vld [vmem:[%s330 + $0x2a8] sm:$0xff]
        %v445 = vld [vmem:[%s330 + $0x2b0] sm:$0xff]
        %v446 = vld [vmem:[%s330 + $0x2b8] sm:$0xff]
        %v447 = vld [vmem:[%s330 + $0x2c0] sm:$0xff]
        %v448 = vld [vmem:[%s330 + $0x2c8] sm:$0xff]
        %v449 = vld [vmem:[%s330 + $0x2d0] sm:$0xff]
        %v450 = vld [vmem:[%s330 + $0x2d8] sm:$0xff]
        %v451 = vld [vmem:[%s330 + $0x2e0] sm:$0xff]
        %v452 = vld [vmem:[%s330 + $0x2e8] sm:$0xff]
        %v453 = vld [vmem:[%s330 + $0x2f0] sm:$0xff]
        %v454 = vld [vmem:[%s330 + $0x2f8] sm:$0xff]
        %v551 = vunpack.c.l.b16 %v359
        %v552 = vunpack.c.h.b16 %v359
        %v553 = vunpack.c.l.b16 %v360
        %v554 = vunpack.c.h.b16 %v360
        %v555 = vunpack.c.l.b16 %v361
        %v556 = vunpack.c.h.b16 %v361
        %v557 = vunpack.c.l.b16 %v362
        %v558 = vunpack.c.h.b16 %v362
        %v559 = vunpack.c.l.b16 %v363
        %v560 = vunpack.c.h.b16 %v363
        %v561 = vunpack.c.l.b16 %v364
        %v562 = vunpack.c.h.b16 %v364
        %v563 = vunpack.c.l.b16 %v365
        %v564 = vunpack.c.h.b16 %v365
        %v565 = vunpack.c.l.b16 %v366
        %v566 = vunpack.c.h.b16 %v366
        %v567 = vunpack.c.l.b16 %v367
        %v568 = vunpack.c.h.b16 %v367
        %v569 = vunpack.c.l.b16 %v368
        %v570 = vunpack.c.h.b16 %v368
        %v571 = vunpack.c.l.b16 %v369
        %v572 = vunpack.c.h.b16 %v369
        %v573 = vunpack.c.l.b16 %v370
        %v574 = vunpack.c.h.b16 %v370
        %v575 = vunpack.c.l.b16 %v371
        %v576 = vunpack.c.h.b16 %v371
        %v577 = vunpack.c.l.b16 %v372
        %v578 = vunpack.c.h.b16 %v372
        %v579 = vunpack.c.l.b16 %v373
        %v580 = vunpack.c.h.b16 %v373
        %v581 = vunpack.c.l.b16 %v374
        %v582 = vunpack.c.h.b16 %v374
        %v583 = vunpack.c.l.b16 %v375
        %v584 = vunpack.c.h.b16 %v375
        %v585 = vunpack.c.l.b16 %v376
        %v586 = vunpack.c.h.b16 %v376
        %v587 = vunpack.c.l.b16 %v377
        %v588 = vunpack.c.h.b16 %v377
        %v589 = vunpack.c.l.b16 %v378
        %v590 = vunpack.c.h.b16 %v378
        %v591 = vunpack.c.l.b16 %v379
        %v592 = vunpack.c.h.b16 %v379
        %v593 = vunpack.c.l.b16 %v380
        %v594 = vunpack.c.h.b16 %v380
        %v595 = vunpack.c.l.b16 %v381
        %v596 = vunpack.c.h.b16 %v381
        %v597 = vunpack.c.l.b16 %v382
        %v598 = vunpack.c.h.b16 %v382
        %v599 = vunpack.c.l.b16 %v383
        %v600 = vunpack.c.h.b16 %v383
        %v601 = vunpack.c.l.b16 %v384
        %v602 = vunpack.c.h.b16 %v384
        %v603 = vunpack.c.l.b16 %v385
        %v604 = vunpack.c.h.b16 %v385
        %v605 = vunpack.c.l.b16 %v386
        %v606 = vunpack.c.h.b16 %v386
        %v607 = vunpack.c.l.b16 %v387
        %v608 = vunpack.c.h.b16 %v387
        %v609 = vunpack.c.l.b16 %v388
        %v610 = vunpack.c.h.b16 %v388
        %v611 = vunpack.c.l.b16 %v389
        %v612 = vunpack.c.h.b16 %v389
        %v613 = vunpack.c.l.b16 %v390
        %v614 = vunpack.c.h.b16 %v390
        %v615 = vunpack.c.l.b16 %v391
        %v616 = vunpack.c.h.b16 %v391
        %v617 = vunpack.c.l.b16 %v392
        %v618 = vunpack.c.h.b16 %v392
        %v619 = vunpack.c.l.b16 %v393
        %v620 = vunpack.c.h.b16 %v393
        %v621 = vunpack.c.l.b16 %v394
        %v622 = vunpack.c.h.b16 %v394
        %v623 = vunpack.c.l.b16 %v395
        %v624 = vunpack.c.h.b16 %v395
        %v625 = vunpack.c.l.b16 %v396
        %v626 = vunpack.c.h.b16 %v396
        %v627 = vunpack.c.l.b16 %v397
        %v628 = vunpack.c.h.b16 %v397
        %v629 = vunpack.c.l.b16 %v398
        %v630 = vunpack.c.h.b16 %v398
        %v631 = vunpack.c.l.b16 %v399
        %v632 = vunpack.c.h.b16 %v399
        %v633 = vunpack.c.l.b16 %v400
        %v634 = vunpack.c.h.b16 %v400
        %v635 = vunpack.c.l.b16 %v401
        %v636 = vunpack.c.h.b16 %v401
        %v637 = vunpack.c.l.b16 %v402
        %v638 = vunpack.c.h.b16 %v402
        %v639 = vunpack.c.l.b16 %v403
        %v640 = vunpack.c.h.b16 %v403
        %v641 = vunpack.c.l.b16 %v404
        %v642 = vunpack.c.h.b16 %v404
        %v643 = vunpack.c.l.b16 %v405
        %v644 = vunpack.c.h.b16 %v405
        %v645 = vunpack.c.l.b16 %v406
        %v646 = vunpack.c.h.b16 %v406
        %v647 = vunpack.c.l.b16 %v407
        %v648 = vunpack.c.h.b16 %v407
        %v649 = vunpack.c.l.b16 %v408
        %v650 = vunpack.c.h.b16 %v408
        %v651 = vunpack.c.l.b16 %v409
        %v652 = vunpack.c.h.b16 %v409
        %v653 = vunpack.c.l.b16 %v410
        %v654 = vunpack.c.h.b16 %v410
        %v655 = vunpack.c.l.b16 %v411
        %v656 = vunpack.c.h.b16 %v411
        %v657 = vunpack.c.l.b16 %v412
        %v658 = vunpack.c.h.b16 %v412
        %v659 = vunpack.c.l.b16 %v413
        %v660 = vunpack.c.h.b16 %v413
        %v661 = vunpack.c.l.b16 %v414
        %v662 = vunpack.c.h.b16 %v414
        %v663 = vunpack.c.l.b16 %v415
        %v664 = vunpack.c.h.b16 %v415
        %v665 = vunpack.c.l.b16 %v416
        %v666 = vunpack.c.h.b16 %v416
        %v667 = vunpack.c.l.b16 %v417
        %v668 = vunpack.c.h.b16 %v417
        %v669 = vunpack.c.l.b16 %v418
        %v670 = vunpack.c.h.b16 %v418
        %v671 = vunpack.c.l.b16 %v419
        %v672 = vunpack.c.h.b16 %v419
        %v673 = vunpack.c.l.b16 %v420
        %v674 = vunpack.c.h.b16 %v420
        %v675 = vunpack.c.l.b16 %v421
        %v676 = vunpack.c.h.b16 %v421
        %v677 = vunpack.c.l.b16 %v422
        %v678 = vunpack.c.h.b16 %v422
        %v679 = vunpack.c.l.b16 %v423
        %v680 = vunpack.c.h.b16 %v423
        %v681 = vunpack.c.l.b16 %v424
        %v682 = vunpack.c.h.b16 %v424
        %v683 = vunpack.c.l.b16 %v425
        %v684 = vunpack.c.h.b16 %v425
        %v685 = vunpack.c.l.b16 %v426
        %v686 = vunpack.c.h.b16 %v426
        %v687 = vunpack.c.l.b16 %v427
        %v688 = vunpack.c.h.b16 %v427
        %v689 = vunpack.c.l.b16 %v428
        %v690 = vunpack.c.h.b16 %v428
        %v691 = vunpack.c.l.b16 %v429
        %v692 = vunpack.c.h.b16 %v429
        %v693 = vunpack.c.l.b16 %v430
        %v694 = vunpack.c.h.b16 %v430
        %v695 = vunpack.c.l.b16 %v431
        %v696 = vunpack.c.h.b16 %v431
        %v697 = vunpack.c.l.b16 %v432
        %v698 = vunpack.c.h.b16 %v432
        %v699 = vunpack.c.l.b16 %v433
        %v700 = vunpack.c.h.b16 %v433
        %v701 = vunpack.c.l.b16 %v434
        %v702 = vunpack.c.h.b16 %v434
        %v703 = vunpack.c.l.b16 %v435
        %v704 = vunpack.c.h.b16 %v435
        %v705 = vunpack.c.l.b16 %v436
        %v706 = vunpack.c.h.b16 %v436
        %v707 = vunpack.c.l.b16 %v437
        %v708 = vunpack.c.h.b16 %v437
        %v709 = vunpack.c.l.b16 %v438
        %v710 = vunpack.c.h.b16 %v438
        %v711 = vunpack.c.l.b16 %v439
        %v712 = vunpack.c.h.b16 %v439
        %v713 = vunpack.c.l.b16 %v440
        %v714 = vunpack.c.h.b16 %v440
        %v715 = vunpack.c.l.b16 %v441
        %v716 = vunpack.c.h.b16 %v441
        %v717 = vunpack.c.l.b16 %v442
        %v718 = vunpack.c.h.b16 %v442
        %v719 = vunpack.c.l.b16 %v443
        %v720 = vunpack.c.h.b16 %v443
        %v721 = vunpack.c.l.b16 %v444
        %v722 = vunpack.c.h.b16 %v444
        %v723 = vunpack.c.l.b16 %v445
        %v724 = vunpack.c.h.b16 %v445
        %v725 = vunpack.c.l.b16 %v446
        %v726 = vunpack.c.h.b16 %v446
        %v727 = vunpack.c.l.b16 %v447
        %v728 = vunpack.c.h.b16 %v447
        %v729 = vunpack.c.l.b16 %v448
        %v730 = vunpack.c.h.b16 %v448
        %v731 = vunpack.c.l.b16 %v449
        %v732 = vunpack.c.h.b16 %v449
        %v733 = vunpack.c.l.b16 %v450
        %v734 = vunpack.c.h.b16 %v450
        %v735 = vunpack.c.l.b16 %v451
        %v736 = vunpack.c.h.b16 %v451
        %v737 = vunpack.c.l.b16 %v452
        %v738 = vunpack.c.h.b16 %v452
        %v739 = vunpack.c.l.b16 %v453
        %v740 = vunpack.c.h.b16 %v453
        %v741 = vunpack.c.l.b16 %v454
        %v742 = vunpack.c.h.b16 %v454
        %v743 = vpack.c.b16 %v583, %v551
        %v744 = vpack.c.b16 %v584, %v552
        %v745 = vpack.c.b16 %v585, %v553
        %v746 = vpack.c.b16 %v586, %v554
        %v747 = vpack.c.b16 %v587, %v555
        %v748 = vpack.c.b16 %v588, %v556
        %v749 = vpack.c.b16 %v589, %v557
        %v750 = vpack.c.b16 %v590, %v558
        %v751 = vpack.c.b16 %v591, %v559
        %v752 = vpack.c.b16 %v592, %v560
        %v753 = vpack.c.b16 %v593, %v561
        %v754 = vpack.c.b16 %v594, %v562
        %v755 = vpack.c.b16 %v595, %v563
        %v756 = vpack.c.b16 %v596, %v564
        %v757 = vpack.c.b16 %v597, %v565
        %v758 = vpack.c.b16 %v598, %v566
        %v759 = vpack.c.b16 %v599, %v567
        %v760 = vpack.c.b16 %v600, %v568
        %v761 = vpack.c.b16 %v601, %v569
        %v762 = vpack.c.b16 %v602, %v570
        %v763 = vpack.c.b16 %v603, %v571
        %v764 = vpack.c.b16 %v604, %v572
        %v765 = vpack.c.b16 %v605, %v573
        %v766 = vpack.c.b16 %v606, %v574
        %v767 = vpack.c.b16 %v607, %v575
        %v768 = vpack.c.b16 %v608, %v576
        %v769 = vpack.c.b16 %v609, %v577
        %v770 = vpack.c.b16 %v610, %v578
        %v771 = vpack.c.b16 %v611, %v579
        %v772 = vpack.c.b16 %v612, %v580
        %v773 = vpack.c.b16 %v613, %v581
        %v774 = vpack.c.b16 %v614, %v582
        %v775 = vpack.c.b16 %v647, %v615
        %v776 = vpack.c.b16 %v648, %v616
        %v777 = vpack.c.b16 %v649, %v617
        %v778 = vpack.c.b16 %v650, %v618
        %v779 = vpack.c.b16 %v651, %v619
        %v780 = vpack.c.b16 %v652, %v620
        %v781 = vpack.c.b16 %v653, %v621
        %v782 = vpack.c.b16 %v654, %v622
        %v783 = vpack.c.b16 %v655, %v623
        %v784 = vpack.c.b16 %v656, %v624
        %v785 = vpack.c.b16 %v657, %v625
        %v786 = vpack.c.b16 %v658, %v626
        %v787 = vpack.c.b16 %v659, %v627
        %v788 = vpack.c.b16 %v660, %v628
        %v789 = vpack.c.b16 %v661, %v629
        %v790 = vpack.c.b16 %v662, %v630
        %v791 = vpack.c.b16 %v663, %v631
        %v792 = vpack.c.b16 %v664, %v632
        %v793 = vpack.c.b16 %v665, %v633
        %v794 = vpack.c.b16 %v666, %v634
        %v795 = vpack.c.b16 %v667, %v635
        %v796 = vpack.c.b16 %v668, %v636
        %v797 = vpack.c.b16 %v669, %v637
        %v798 = vpack.c.b16 %v670, %v638
        %v799 = vpack.c.b16 %v671, %v639
        %v800 = vpack.c.b16 %v672, %v640
        %v801 = vpack.c.b16 %v673, %v641
        %v802 = vpack.c.b16 %v674, %v642
        %v803 = vpack.c.b16 %v675, %v643
        %v804 = vpack.c.b16 %v676, %v644
        %v805 = vpack.c.b16 %v677, %v645
        %v806 = vpack.c.b16 %v678, %v646
        %v807 = vpack.c.b16 %v711, %v679
        %v808 = vpack.c.b16 %v712, %v680
        %v809 = vpack.c.b16 %v713, %v681
        %v810 = vpack.c.b16 %v714, %v682
        %v811 = vpack.c.b16 %v715, %v683
        %v812 = vpack.c.b16 %v716, %v684
        %v813 = vpack.c.b16 %v717, %v685
        %v814 = vpack.c.b16 %v718, %v686
        %v815 = vpack.c.b16 %v719, %v687
        %v816 = vpack.c.b16 %v720, %v688
        %v817 = vpack.c.b16 %v721, %v689
        %v818 = vpack.c.b16 %v722, %v690
        %v819 = vpack.c.b16 %v723, %v691
        %v820 = vpack.c.b16 %v724, %v692
        %v821 = vpack.c.b16 %v725, %v693
        %v822 = vpack.c.b16 %v726, %v694
        %v823 = vpack.c.b16 %v727, %v695
        %v824 = vpack.c.b16 %v728, %v696
        %v825 = vpack.c.b16 %v729, %v697
        %v826 = vpack.c.b16 %v730, %v698
        %v827 = vpack.c.b16 %v731, %v699
        %v828 = vpack.c.b16 %v732, %v700
        %v829 = vpack.c.b16 %v733, %v701
        %v830 = vpack.c.b16 %v734, %v702
        %v831 = vpack.c.b16 %v735, %v703
        %v832 = vpack.c.b16 %v736, %v704
        %v833 = vpack.c.b16 %v737, %v705
        %v834 = vpack.c.b16 %v738, %v706
        %v835 = vpack.c.b16 %v739, %v707
        %v836 = vpack.c.b16 %v740, %v708
        %v837 = vpack.c.b16 %v741, %v709
        %v838 = vpack.c.b16 %v742, %v710
        %vm935 = vcmask 392192
        %v937 = vsel %vm935, %v358, 0
        %939 = vmatprep.subr.bf16.mxu0 %v744
        %940 = vmatpush1.bf16.msra.mxu0 %v743
        %941 = vmatprep.subr.bf16.mxu0 %v776
        %942 = vmatpush1.bf16.msra.mxu0 %v775
        %943 = vmatprep.subr.bf16.mxu0 %v808
        %944 = vmatpush1.bf16.msra.mxu0 %v807
        %945 = vmatprep.subr.bf16.mxu0 0
        %946 = vmatpush1.bf16.msra.mxu0 0
        %947 = vmatprep.subr.bf16.mxu0 0
        %948 = vmatpush1.bf16.msra.mxu0 0
        %949 = vmatprep.subr.bf16.mxu0 0
        %950 = vmatpush1.bf16.msra.mxu0 0
        %951 = vmatprep.subr.bf16.mxu0 0
        %952 = vmatpush1.bf16.msra.mxu0 0
        %953 = vmatprep.subr.bf16.mxu0 0
        %954 = vmatpush1.bf16.msra.mxu0 0
        %955 = vmatprep.subr.bf16.mxu0 0
        %956 = vmatpush1.bf16.msra.mxu0 0
        %957 = vmatprep.subr.bf16.mxu0 0
        %958 = vmatpush1.bf16.msra.mxu0 0
        %959 = vmatprep.subr.bf16.mxu0 0
        %960 = vmatpush1.bf16.msra.mxu0 0
        %961 = vmatprep.subr.bf16.mxu0 0
        %962 = vmatpush1.bf16.msra.mxu0 0
        %963 = vmatprep.subr.bf16.mxu0 0
        %964 = vmatpush1.bf16.msra.mxu0 0
        %965 = vmatprep.subr.bf16.mxu0 0
        %966 = vmatpush1.bf16.msra.mxu0 0
        %967 = vmatprep.subr.bf16.mxu0 0
        %968 = vmatpush1.bf16.msra.mxu0 0
        %969 = vmatprep.subr.bf16.mxu0 0
        %970 = vmatpush1.bf16.msra.mxu0 0
        %971 = vmatprep.mubr.bf16.mxu0 0
        %972 = vmatmul.mubr.bf16.gmra.mrb[0].mxu0 %v937
        %v973 = vpop.f32.mrb[0].mxu0
        %v974 = vadd.f32 0.0, %v973
        %v975 = vpop.f32.mrb[0].mxu0
        %v976 = vadd.f32 0.0, %v975
        %v977 = vpop.f32.mrb[0].mxu0
        %v978 = vpop.f32.mrb[0].mxu0
        %979 = vdwg.mxu0
        %980 = vmatprep.subr.bf16.mxu0 %v746
        %981 = vmatpush1.bf16.msra.mxu0 %v745
        %982 = vmatprep.subr.bf16.mxu0 %v778
        %983 = vmatpush1.bf16.msra.mxu0 %v777
        %984 = vmatprep.subr.bf16.mxu0 %v810
        %985 = vmatpush1.bf16.msra.mxu0 %v809
        %986 = vmatprep.subr.bf16.mxu0 0
        %987 = vmatpush1.bf16.msra.mxu0 0
        %988 = vmatprep.subr.bf16.mxu0 0
        %989 = vmatpush1.bf16.msra.mxu0 0
        %990 = vmatprep.subr.bf16.mxu0 0
        %991 = vmatpush1.bf16.msra.mxu0 0
        %992 = vmatprep.subr.bf16.mxu0 0
        %993 = vmatpush1.bf16.msra.mxu0 0
        %994 = vmatprep.subr.bf16.mxu0 0
        %995 = vmatpush1.bf16.msra.mxu0 0
        %996 = vmatprep.subr.bf16.mxu0 0
        %997 = vmatpush1.bf16.msra.mxu0 0
        %998 = vmatprep.subr.bf16.mxu0 0
        %999 = vmatpush1.bf16.msra.mxu0 0
        %1000 = vmatprep.subr.bf16.mxu0 0
        %1001 = vmatpush1.bf16.msra.mxu0 0
        %1002 = vmatprep.subr.bf16.mxu0 0
        %1003 = vmatpush1.bf16.msra.mxu0 0
        %1004 = vmatprep.subr.bf16.mxu0 0
        %1005 = vmatpush1.bf16.msra.mxu0 0
        %1006 = vmatprep.subr.bf16.mxu0 0
        %1007 = vmatpush1.bf16.msra.mxu0 0
        %1008 = vmatprep.subr.bf16.mxu0 0
        %1009 = vmatpush1.bf16.msra.mxu0 0
        %1010 = vmatprep.subr.bf16.mxu0 0
        %1011 = vmatpush1.bf16.msra.mxu0 0
        %1012 = vmatprep.mubr.bf16.mxu0 0
        %1013 = vmatmul.mubr.bf16.gmra.mrb[0].mxu0 %v937
        %v1014 = vpop.f32.mrb[0].mxu0
        %v1015 = vadd.f32 0.0, %v1014
        %v1016 = vpop.f32.mrb[0].mxu0
        %v1017 = vadd.f32 0.0, %v1016
        %v1018 = vpop.f32.mrb[0].mxu0
        %v1019 = vpop.f32.mrb[0].mxu0
        %1020 = vdwg.mxu0
        %1021 = vmatprep.subr.bf16.mxu0 %v748
        %1022 = vmatpush1.bf16.msra.mxu0 %v747
        %1023 = vmatprep.subr.bf16.mxu0 %v780
        %1024 = vmatpush1.bf16.msra.mxu0 %v779
        %1025 = vmatprep.subr.bf16.mxu0 %v812
        %1026 = vmatpush1.bf16.msra.mxu0 %v811
        %1027 = vmatprep.subr.bf16.mxu0 0
        %1028 = vmatpush1.bf16.msra.mxu0 0
        %1029 = vmatprep.subr.bf16.mxu0 0
        %1030 = vmatpush1.bf16.msra.mxu0 0
        %1031 = vmatprep.subr.bf16.mxu0 0
        %1032 = vmatpush1.bf16.msra.mxu0 0
        %1033 = vmatprep.subr.bf16.mxu0 0
        %1034 = vmatpush1.bf16.msra.mxu0 0
        %1035 = vmatprep.subr.bf16.mxu0 0
        %1036 = vmatpush1.bf16.msra.mxu0 0
        %1037 = vmatprep.subr.bf16.mxu0 0
        %1038 = vmatpush1.bf16.msra.mxu0 0
        %1039 = vmatprep.subr.bf16.mxu0 0
        %1040 = vmatpush1.bf16.msra.mxu0 0
        %1041 = vmatprep.subr.bf16.mxu0 0
        %1042 = vmatpush1.bf16.msra.mxu0 0
        %1043 = vmatprep.subr.bf16.mxu0 0
        %1044 = vmatpush1.bf16.msra.mxu0 0
        %1045 = vmatprep.subr.bf16.mxu0 0
        %1046 = vmatpush1.bf16.msra.mxu0 0
        %1047 = vmatprep.subr.bf16.mxu0 0
        %1048 = vmatpush1.bf16.msra.mxu0 0
        %1049 = vmatprep.subr.bf16.mxu0 0
        %1050 = vmatpush1.bf16.msra.mxu0 0
        %1051 = vmatprep.subr.bf16.mxu0 0
        %1052 = vmatpush1.bf16.msra.mxu0 0
        %1053 = vmatprep.mubr.bf16.mxu0 0
        %1054 = vmatmul.mubr.bf16.gmra.mrb[0].mxu0 %v937
        %v1055 = vpop.f32.mrb[0].mxu0
        %v1056 = vadd.f32 0.0, %v1055
        %v1057 = vpop.f32.mrb[0].mxu0
        %v1058 = vadd.f32 0.0, %v1057
        %v1059 = vpop.f32.mrb[0].mxu0
        %v1060 = vpop.f32.mrb[0].mxu0
        %1061 = vdwg.mxu0
        %1062 = vmatprep.subr.bf16.mxu0 %v750
        %1063 = vmatpush1.bf16.msra.mxu0 %v749
        %1064 = vmatprep.subr.bf16.mxu0 %v782
        %1065 = vmatpush1.bf16.msra.mxu0 %v781
        %1066 = vmatprep.subr.bf16.mxu0 %v814
        %1067 = vmatpush1.bf16.msra.mxu0 %v813
        %1068 = vmatprep.subr.bf16.mxu0 0
        %1069 = vmatpush1.bf16.msra.mxu0 0
        %1070 = vmatprep.subr.bf16.mxu0 0
        %1071 = vmatpush1.bf16.msra.mxu0 0
        %1072 = vmatprep.subr.bf16.mxu0 0
        %1073 = vmatpush1.bf16.msra.mxu0 0
        %1074 = vmatprep.subr.bf16.mxu0 0
        %1075 = vmatpush1.bf16.msra.mxu0 0
        %1076 = vmatprep.subr.bf16.mxu0 0
        %1077 = vmatpush1.bf16.msra.mxu0 0
        %1078 = vmatprep.subr.bf16.mxu0 0
        %1079 = vmatpush1.bf16.msra.mxu0 0
        %1080 = vmatprep.subr.bf16.mxu0 0
        %1081 = vmatpush1.bf16.msra.mxu0 0
        %1082 = vmatprep.subr.bf16.mxu0 0
        %1083 = vmatpush1.bf16.msra.mxu0 0
        %1084 = vmatprep.subr.bf16.mxu0 0
        %1085 = vmatpush1.bf16.msra.mxu0 0
        %1086 = vmatprep.subr.bf16.mxu0 0
        %1087 = vmatpush1.bf16.msra.mxu0 0
        %1088 = vmatprep.subr.bf16.mxu0 0
        %1089 = vmatpush1.bf16.msra.mxu0 0
        %1090 = vmatprep.subr.bf16.mxu0 0
        %1091 = vmatpush1.bf16.msra.mxu0 0
        %1092 = vmatprep.subr.bf16.mxu0 0
        %1093 = vmatpush1.bf16.msra.mxu0 0
        %1094 = vmatprep.mubr.bf16.mxu0 0
        %1095 = vmatmul.mubr.bf16.gmra.mrb[0].mxu0 %v937
        %v1096 = vpop.f32.mrb[0].mxu0
        %v1097 = vadd.f32 0.0, %v1096
        %v1098 = vpop.f32.mrb[0].mxu0
        %v1099 = vadd.f32 0.0, %v1098
        %v1100 = vpop.f32.mrb[0].mxu0
        %v1101 = vpop.f32.mrb[0].mxu0
        %1102 = vdwg.mxu0
        %1103 = vmatprep.subr.bf16.mxu0 %v752
        %1104 = vmatpush1.bf16.msra.mxu0 %v751
        %1105 = vmatprep.subr.bf16.mxu0 %v784
        %1106 = vmatpush1.bf16.msra.mxu0 %v783
        %1107 = vmatprep.subr.bf16.mxu0 %v816
        %1108 = vmatpush1.bf16.msra.mxu0 %v815
        %1109 = vmatprep.subr.bf16.mxu0 0
        %1110 = vmatpush1.bf16.msra.mxu0 0
        %1111 = vmatprep.subr.bf16.mxu0 0
        %1112 = vmatpush1.bf16.msra.mxu0 0
        %1113 = vmatprep.subr.bf16.mxu0 0
        %1114 = vmatpush1.bf16.msra.mxu0 0
        %1115 = vmatprep.subr.bf16.mxu0 0
        %1116 = vmatpush1.bf16.msra.mxu0 0
        %1117 = vmatprep.subr.bf16.mxu0 0
        %1118 = vmatpush1.bf16.msra.mxu0 0
        %1119 = vmatprep.subr.bf16.mxu0 0
        %1120 = vmatpush1.bf16.msra.mxu0 0
        %1121 = vmatprep.subr.bf16.mxu0 0
        %1122 = vmatpush1.bf16.msra.mxu0 0
        %1123 = vmatprep.subr.bf16.mxu0 0
        %1124 = vmatpush1.bf16.msra.mxu0 0
        %1125 = vmatprep.subr.bf16.mxu0 0
        %1126 = vmatpush1.bf16.msra.mxu0 0
        %1127 = vmatprep.subr.bf16.mxu0 0
        %1128 = vmatpush1.bf16.msra.mxu0 0
        %1129 = vmatprep.subr.bf16.mxu0 0
        %1130 = vmatpush1.bf16.msra.mxu0 0
        %1131 = vmatprep.subr.bf16.mxu0 0
        %1132 = vmatpush1.bf16.msra.mxu0 0
        %1133 = vmatprep.subr.bf16.mxu0 0
        %1134 = vmatpush1.bf16.msra.mxu0 0
        %1135 = vmatprep.mubr.bf16.mxu0 0
        %1136 = vmatmul.mubr.bf16.gmra.mrb[0].mxu0 %v937
        %v1137 = vpop.f32.mrb[0].mxu0
        %v1138 = vadd.f32 0.0, %v1137
        %v1139 = vpop.f32.mrb[0].mxu0
        %v1140 = vadd.f32 0.0, %v1139
        %v1141 = vpop.f32.mrb[0].mxu0
        %v1142 = vpop.f32.mrb[0].mxu0
        %1143 = vdwg.mxu0
        %1144 = vmatprep.subr.bf16.mxu0 %v754
        %1145 = vmatpush1.bf16.msra.mxu0 %v753
        %1146 = vmatprep.subr.bf16.mxu0 %v786
        %1147 = vmatpush1.bf16.msra.mxu0 %v785
        %1148 = vmatprep.subr.bf16.mxu0 %v818
        %1149 = vmatpush1.bf16.msra.mxu0 %v817
        %1150 = vmatprep.subr.bf16.mxu0 0
        %1151 = vmatpush1.bf16.msra.mxu0 0
        %1152 = vmatprep.subr.bf16.mxu0 0
        %1153 = vmatpush1.bf16.msra.mxu0 0
        %1154 = vmatprep.subr.bf16.mxu0 0
        %1155 = vmatpush1.bf16.msra.mxu0 0
        %1156 = vmatprep.subr.bf16.mxu0 0
        %1157 = vmatpush1.bf16.msra.mxu0 0
        %1158 = vmatprep.subr.bf16.mxu0 0
        %1159 = vmatpush1.bf16.msra.mxu0 0
        %1160 = vmatprep.subr.bf16.mxu0 0
        %1161 = vmatpush1.bf16.msra.mxu0 0
        %1162 = vmatprep.subr.bf16.mxu0 0
        %1163 = vmatpush1.bf16.msra.mxu0 0
        %1164 = vmatprep.subr.bf16.mxu0 0
        %1165 = vmatpush1.bf16.msra.mxu0 0
        %1166 = vmatprep.subr.bf16.mxu0 0
        %1167 = vmatpush1.bf16.msra.mxu0 0
        %1168 = vmatprep.subr.bf16.mxu0 0
        %1169 = vmatpush1.bf16.msra.mxu0 0
        %1170 = vmatprep.subr.bf16.mxu0 0
        %1171 = vmatpush1.bf16.msra.mxu0 0
        %1172 = vmatprep.subr.bf16.mxu0 0
        %1173 = vmatpush1.bf16.msra.mxu0 0
        %1174 = vmatprep.subr.bf16.mxu0 0
        %1175 = vmatpush1.bf16.msra.mxu0 0
        %1176 = vmatprep.mubr.bf16.mxu0 0
        %1177 = vmatmul.mubr.bf16.gmra.mrb[0].mxu0 %v937
        %v1178 = vpop.f32.mrb[0].mxu0
        %v1179 = vadd.f32 0.0, %v1178
        %v1180 = vpop.f32.mrb[0].mxu0
        %v1181 = vadd.f32 0.0, %v1180
        %v1182 = vpop.f32.mrb[0].mxu0
        %v1183 = vpop.f32.mrb[0].mxu0
        %1184 = vdwg.mxu0
        %1185 = vmatprep.subr.bf16.mxu0 %v756
        %1186 = vmatpush1.bf16.msra.mxu0 %v755
        %1187 = vmatprep.subr.bf16.mxu0 %v788
        %1188 = vmatpush1.bf16.msra.mxu0 %v787
        %1189 = vmatprep.subr.bf16.mxu0 %v820
        %1190 = vmatpush1.bf16.msra.mxu0 %v819
        %1191 = vmatprep.subr.bf16.mxu0 0
        %1192 = vmatpush1.bf16.msra.mxu0 0
        %1193 = vmatprep.subr.bf16.mxu0 0
        %1194 = vmatpush1.bf16.msra.mxu0 0
        %1195 = vmatprep.subr.bf16.mxu0 0
        %1196 = vmatpush1.bf16.msra.mxu0 0
        %1197 = vmatprep.subr.bf16.mxu0 0
        %1198 = vmatpush1.bf16.msra.mxu0 0
        %1199 = vmatprep.subr.bf16.mxu0 0
        %1200 = vmatpush1.bf16.msra.mxu0 0
        %1201 = vmatprep.subr.bf16.mxu0 0
        %1202 = vmatpush1.bf16.msra.mxu0 0
        %1203 = vmatprep.subr.bf16.mxu0 0
        %1204 = vmatpush1.bf16.msra.mxu0 0
        %1205 = vmatprep.subr.bf16.mxu0 0
        %1206 = vmatpush1.bf16.msra.mxu0 0
        %1207 = vmatprep.subr.bf16.mxu0 0
        %1208 = vmatpush1.bf16.msra.mxu0 0
        %1209 = vmatprep.subr.bf16.mxu0 0
        %1210 = vmatpush1.bf16.msra.mxu0 0
        %1211 = vmatprep.subr.bf16.mxu0 0
        %1212 = vmatpush1.bf16.msra.mxu0 0
        %1213 = vmatprep.subr.bf16.mxu0 0
        %1214 = vmatpush1.bf16.msra.mxu0 0
        %1215 = vmatprep.subr.bf16.mxu0 0
        %1216 = vmatpush1.bf16.msra.mxu0 0
        %1217 = vmatprep.mubr.bf16.mxu0 0
        %1218 = vmatmul.mubr.bf16.gmra.mrb[0].mxu0 %v937
        %v1219 = vpop.f32.mrb[0].mxu0
        %v1220 = vadd.f32 0.0, %v1219
        %v1221 = vpop.f32.mrb[0].mxu0
        %v1222 = vadd.f32 0.0, %v1221
        %v1223 = vpop.f32.mrb[0].mxu0
        %v1224 = vpop.f32.mrb[0].mxu0
        %1225 = vdwg.mxu0
        %1226 = vmatprep.subr.bf16.mxu0 %v758
        %1227 = vmatpush1.bf16.msra.mxu0 %v757
        %1228 = vmatprep.subr.bf16.mxu0 %v790
        %1229 = vmatpush1.bf16.msra.mxu0 %v789
        %1230 = vmatprep.subr.bf16.mxu0 %v822
        %1231 = vmatpush1.bf16.msra.mxu0 %v821
        %1232 = vmatprep.subr.bf16.mxu0 0
        %1233 = vmatpush1.bf16.msra.mxu0 0
        %1234 = vmatprep.subr.bf16.mxu0 0
        %1235 = vmatpush1.bf16.msra.mxu0 0
        %1236 = vmatprep.subr.bf16.mxu0 0
        %1237 = vmatpush1.bf16.msra.mxu0 0
        %1238 = vmatprep.subr.bf16.mxu0 0
        %1239 = vmatpush1.bf16.msra.mxu0 0
        %1240 = vmatprep.subr.bf16.mxu0 0
        %1241 = vmatpush1.bf16.msra.mxu0 0
        %1242 = vmatprep.subr.bf16.mxu0 0
        %1243 = vmatpush1.bf16.msra.mxu0 0
        %1244 = vmatprep.subr.bf16.mxu0 0
        %1245 = vmatpush1.bf16.msra.mxu0 0
        %1246 = vmatprep.subr.bf16.mxu0 0
        %1247 = vmatpush1.bf16.msra.mxu0 0
        %1248 = vmatprep.subr.bf16.mxu0 0
        %1249 = vmatpush1.bf16.msra.mxu0 0
        %1250 = vmatprep.subr.bf16.mxu0 0
        %1251 = vmatpush1.bf16.msra.mxu0 0
        %1252 = vmatprep.subr.bf16.mxu0 0
        %1253 = vmatpush1.bf16.msra.mxu0 0
        %1254 = vmatprep.subr.bf16.mxu0 0
        %1255 = vmatpush1.bf16.msra.mxu0 0
        %1256 = vmatprep.subr.bf16.mxu0 0
        %1257 = vmatpush1.bf16.msra.mxu0 0
        %1258 = vmatprep.mubr.bf16.mxu0 0
        %1259 = vmatmul.mubr.bf16.gmra.mrb[0].mxu0 %v937
        %v1260 = vpop.f32.mrb[0].mxu0
        %v1261 = vadd.f32 0.0, %v1260
        %v1262 = vpop.f32.mrb[0].mxu0
        %v1263 = vadd.f32 0.0, %v1262
        %v1264 = vpop.f32.mrb[0].mxu0
        %v1265 = vpop.f32.mrb[0].mxu0
        %1266 = vdwg.mxu0
        %1267 = vmatprep.subr.bf16.mxu0 %v760
        %1268 = vmatpush1.bf16.msra.mxu0 %v759
        %1269 = vmatprep.subr.bf16.mxu0 %v792
        %1270 = vmatpush1.bf16.msra.mxu0 %v791
        %1271 = vmatprep.subr.bf16.mxu0 %v824
        %1272 = vmatpush1.bf16.msra.mxu0 %v823
        %1273 = vmatprep.subr.bf16.mxu0 0
        %1274 = vmatpush1.bf16.msra.mxu0 0
        %1275 = vmatprep.subr.bf16.mxu0 0
        %1276 = vmatpush1.bf16.msra.mxu0 0
        %1277 = vmatprep.subr.bf16.mxu0 0
        %1278 = vmatpush1.bf16.msra.mxu0 0
        %1279 = vmatprep.subr.bf16.mxu0 0
        %1280 = vmatpush1.bf16.msra.mxu0 0
        %1281 = vmatprep.subr.bf16.mxu0 0
        %1282 = vmatpush1.bf16.msra.mxu0 0
        %1283 = vmatprep.subr.bf16.mxu0 0
        %1284 = vmatpush1.bf16.msra.mxu0 0
        %1285 = vmatprep.subr.bf16.mxu0 0
        %1286 = vmatpush1.bf16.msra.mxu0 0
        %1287 = vmatprep.subr.bf16.mxu0 0
        %1288 = vmatpush1.bf16.msra.mxu0 0
        %1289 = vmatprep.subr.bf16.mxu0 0
        %1290 = vmatpush1.bf16.msra.mxu0 0
        %1291 = vmatprep.subr.bf16.mxu0 0
        %1292 = vmatpush1.bf16.msra.mxu0 0
        %1293 = vmatprep.subr.bf16.mxu0 0
        %1294 = vmatpush1.bf16.msra.mxu0 0
        %1295 = vmatprep.subr.bf16.mxu0 0
        %1296 = vmatpush1.bf16.msra.mxu0 0
        %1297 = vmatprep.subr.bf16.mxu0 0
        %1298 = vmatpush1.bf16.msra.mxu0 0
        %1299 = vmatprep.mubr.bf16.mxu0 0
        %1300 = vmatmul.mubr.bf16.gmra.mrb[0].mxu0 %v937
        %v1301 = vpop.f32.mrb[0].mxu0
        %v1302 = vadd.f32 0.0, %v1301
        %v1303 = vpop.f32.mrb[0].mxu0
        %v1304 = vadd.f32 0.0, %v1303
        %v1305 = vpop.f32.mrb[0].mxu0
        %v1306 = vpop.f32.mrb[0].mxu0
        %1307 = vdwg.mxu0
        %1308 = vmatprep.subr.bf16.mxu0 %v762
        %1309 = vmatpush1.bf16.msra.mxu0 %v761
        %1310 = vmatprep.subr.bf16.mxu0 %v794
        %1311 = vmatpush1.bf16.msra.mxu0 %v793
        %1312 = vmatprep.subr.bf16.mxu0 %v826
        %1313 = vmatpush1.bf16.msra.mxu0 %v825
        %1314 = vmatprep.subr.bf16.mxu0 0
        %1315 = vmatpush1.bf16.msra.mxu0 0
        %1316 = vmatprep.subr.bf16.mxu0 0
        %1317 = vmatpush1.bf16.msra.mxu0 0
        %1318 = vmatprep.subr.bf16.mxu0 0
        %1319 = vmatpush1.bf16.msra.mxu0 0
        %1320 = vmatprep.subr.bf16.mxu0 0
        %1321 = vmatpush1.bf16.msra.mxu0 0
        %1322 = vmatprep.subr.bf16.mxu0 0
        %1323 = vmatpush1.bf16.msra.mxu0 0
        %1324 = vmatprep.subr.bf16.mxu0 0
        %1325 = vmatpush1.bf16.msra.mxu0 0
        %1326 = vmatprep.subr.bf16.mxu0 0
        %1327 = vmatpush1.bf16.msra.mxu0 0
        %1328 = vmatprep.subr.bf16.mxu0 0
        %1329 = vmatpush1.bf16.msra.mxu0 0
        %1330 = vmatprep.subr.bf16.mxu0 0
        %1331 = vmatpush1.bf16.msra.mxu0 0
        %1332 = vmatprep.subr.bf16.mxu0 0
        %1333 = vmatpush1.bf16.msra.mxu0 0
        %1334 = vmatprep.subr.bf16.mxu0 0
        %1335 = vmatpush1.bf16.msra.mxu0 0
        %1336 = vmatprep.subr.bf16.mxu0 0
        %1337 = vmatpush1.bf16.msra.mxu0 0
        %1338 = vmatprep.subr.bf16.mxu0 0
        %1339 = vmatpush1.bf16.msra.mxu0 0
        %1340 = vmatprep.mubr.bf16.mxu0 0
        %1341 = vmatmul.mubr.bf16.gmra.mrb[0].mxu0 %v937
        %v1342 = vpop.f32.mrb[0].mxu0
        %v1343 = vadd.f32 0.0, %v1342
        %v1344 = vpop.f32.mrb[0].mxu0
        %v1345 = vadd.f32 0.0, %v1344
        %v1346 = vpop.f32.mrb[0].mxu0
        %v1347 = vpop.f32.mrb[0].mxu0
        %1348 = vdwg.mxu0
        %1349 = vmatprep.subr.bf16.mxu0 %v764
        %1350 = vmatpush1.bf16.msra.mxu0 %v763
        %1351 = vmatprep.subr.bf16.mxu0 %v796
        %1352 = vmatpush1.bf16.msra.mxu0 %v795
        %1353 = vmatprep.subr.bf16.mxu0 %v828
        %1354 = vmatpush1.bf16.msra.mxu0 %v827
        %1355 = vmatprep.subr.bf16.mxu0 0
        %1356 = vmatpush1.bf16.msra.mxu0 0
        %1357 = vmatprep.subr.bf16.mxu0 0
        %1358 = vmatpush1.bf16.msra.mxu0 0
        %1359 = vmatprep.subr.bf16.mxu0 0
        %1360 = vmatpush1.bf16.msra.mxu0 0
        %1361 = vmatprep.subr.bf16.mxu0 0
        %1362 = vmatpush1.bf16.msra.mxu0 0
        %1363 = vmatprep.subr.bf16.mxu0 0
        %1364 = vmatpush1.bf16.msra.mxu0 0
        %1365 = vmatprep.subr.bf16.mxu0 0
        %1366 = vmatpush1.bf16.msra.mxu0 0
        %1367 = vmatprep.subr.bf16.mxu0 0
        %1368 = vmatpush1.bf16.msra.mxu0 0
        %1369 = vmatprep.subr.bf16.mxu0 0
        %1370 = vmatpush1.bf16.msra.mxu0 0
        %1371 = vmatprep.subr.bf16.mxu0 0
        %1372 = vmatpush1.bf16.msra.mxu0 0
        %1373 = vmatprep.subr.bf16.mxu0 0
        %1374 = vmatpush1.bf16.msra.mxu0 0
        %1375 = vmatprep.subr.bf16.mxu0 0
        %1376 = vmatpush1.bf16.msra.mxu0 0
        %1377 = vmatprep.subr.bf16.mxu0 0
        %1378 = vmatpush1.bf16.msra.mxu0 0
        %1379 = vmatprep.subr.bf16.mxu0 0
        %1380 = vmatpush1.bf16.msra.mxu0 0
        %1381 = vmatprep.mubr.bf16.mxu0 0
        %1382 = vmatmul.mubr.bf16.gmra.mrb[0].mxu0 %v937
        %v1383 = vpop.f32.mrb[0].mxu0
        %v1384 = vadd.f32 0.0, %v1383
        %v1385 = vpop.f32.mrb[0].mxu0
        %v1386 = vadd.f32 0.0, %v1385
        %v1387 = vpop.f32.mrb[0].mxu0
        %v1388 = vpop.f32.mrb[0].mxu0
        %1389 = vdwg.mxu0
        %1390 = vmatprep.subr.bf16.mxu0 %v766
        %1391 = vmatpush1.bf16.msra.mxu0 %v765
        %1392 = vmatprep.subr.bf16.mxu0 %v798
        %1393 = vmatpush1.bf16.msra.mxu0 %v797
        %1394 = vmatprep.subr.bf16.mxu0 %v830
        %1395 = vmatpush1.bf16.msra.mxu0 %v829
        %1396 = vmatprep.subr.bf16.mxu0 0
        %1397 = vmatpush1.bf16.msra.mxu0 0
        %1398 = vmatprep.subr.bf16.mxu0 0
        %1399 = vmatpush1.bf16.msra.mxu0 0
        %1400 = vmatprep.subr.bf16.mxu0 0
        %1401 = vmatpush1.bf16.msra.mxu0 0
        %1402 = vmatprep.subr.bf16.mxu0 0
        %1403 = vmatpush1.bf16.msra.mxu0 0
        %1404 = vmatprep.subr.bf16.mxu0 0
        %1405 = vmatpush1.bf16.msra.mxu0 0
        %1406 = vmatprep.subr.bf16.mxu0 0
        %1407 = vmatpush1.bf16.msra.mxu0 0
        %1408 = vmatprep.subr.bf16.mxu0 0
        %1409 = vmatpush1.bf16.msra.mxu0 0
        %1410 = vmatprep.subr.bf16.mxu0 0
        %1411 = vmatpush1.bf16.msra.mxu0 0
        %1412 = vmatprep.subr.bf16.mxu0 0
        %1413 = vmatpush1.bf16.msra.mxu0 0
        %1414 = vmatprep.subr.bf16.mxu0 0
        %1415 = vmatpush1.bf16.msra.mxu0 0
        %1416 = vmatprep.subr.bf16.mxu0 0
        %1417 = vmatpush1.bf16.msra.mxu0 0
        %1418 = vmatprep.subr.bf16.mxu0 0
        %1419 = vmatpush1.bf16.msra.mxu0 0
        %1420 = vmatprep.subr.bf16.mxu0 0
        %1421 = vmatpush1.bf16.msra.mxu0 0
        %1422 = vmatprep.mubr.bf16.mxu0 0
        %1423 = vmatmul.mubr.bf16.gmra.mrb[0].mxu0 %v937
        %v1424 = vpop.f32.mrb[0].mxu0
        %v1425 = vadd.f32 0.0, %v1424
        %v1426 = vpop.f32.mrb[0].mxu0
        %v1427 = vadd.f32 0.0, %v1426
        %v1428 = vpop.f32.mrb[0].mxu0
        %v1429 = vpop.f32.mrb[0].mxu0
        %1430 = vdwg.mxu0
        %1431 = vmatprep.subr.bf16.mxu0 %v768
        %1432 = vmatpush1.bf16.msra.mxu0 %v767
        %1433 = vmatprep.subr.bf16.mxu0 %v800
        %1434 = vmatpush1.bf16.msra.mxu0 %v799
        %1435 = vmatprep.subr.bf16.mxu0 %v832
        %1436 = vmatpush1.bf16.msra.mxu0 %v831
        %1437 = vmatprep.subr.bf16.mxu0 0
        %1438 = vmatpush1.bf16.msra.mxu0 0
        %1439 = vmatprep.subr.bf16.mxu0 0
        %1440 = vmatpush1.bf16.msra.mxu0 0
        %1441 = vmatprep.subr.bf16.mxu0 0
        %1442 = vmatpush1.bf16.msra.mxu0 0
        %1443 = vmatprep.subr.bf16.mxu0 0
        %1444 = vmatpush1.bf16.msra.mxu0 0
        %1445 = vmatprep.subr.bf16.mxu0 0
        %1446 = vmatpush1.bf16.msra.mxu0 0
        %1447 = vmatprep.subr.bf16.mxu0 0
        %1448 = vmatpush1.bf16.msra.mxu0 0
        %1449 = vmatprep.subr.bf16.mxu0 0
        %1450 = vmatpush1.bf16.msra.mxu0 0
        %1451 = vmatprep.subr.bf16.mxu0 0
        %1452 = vmatpush1.bf16.msra.mxu0 0
        %1453 = vmatprep.subr.bf16.mxu0 0
        %1454 = vmatpush1.bf16.msra.mxu0 0
        %1455 = vmatprep.subr.bf16.mxu0 0
        %1456 = vmatpush1.bf16.msra.mxu0 0
        %1457 = vmatprep.subr.bf16.mxu0 0
        %1458 = vmatpush1.bf16.msra.mxu0 0
        %1459 = vmatprep.subr.bf16.mxu0 0
        %1460 = vmatpush1.bf16.msra.mxu0 0
        %1461 = vmatprep.subr.bf16.mxu0 0
        %1462 = vmatpush1.bf16.msra.mxu0 0
        %1463 = vmatprep.mubr.bf16.mxu0 0
        %1464 = vmatmul.mubr.bf16.gmra.mrb[0].mxu0 %v937
        %v1465 = vpop.f32.mrb[0].mxu0
        %v1466 = vadd.f32 0.0, %v1465
        %v1467 = vpop.f32.mrb[0].mxu0
        %v1468 = vadd.f32 0.0, %v1467
        %v1469 = vpop.f32.mrb[0].mxu0
        %v1470 = vpop.f32.mrb[0].mxu0
        %1471 = vdwg.mxu0
        %1472 = vmatprep.subr.bf16.mxu0 %v770
        %1473 = vmatpush1.bf16.msra.mxu0 %v769
        %1474 = vmatprep.subr.bf16.mxu0 %v802
        %1475 = vmatpush1.bf16.msra.mxu0 %v801
        %1476 = vmatprep.subr.bf16.mxu0 %v834
        %1477 = vmatpush1.bf16.msra.mxu0 %v833
        %1478 = vmatprep.subr.bf16.mxu0 0
        %1479 = vmatpush1.bf16.msra.mxu0 0
        %1480 = vmatprep.subr.bf16.mxu0 0
        %1481 = vmatpush1.bf16.msra.mxu0 0
        %1482 = vmatprep.subr.bf16.mxu0 0
        %1483 = vmatpush1.bf16.msra.mxu0 0
        %1484 = vmatprep.subr.bf16.mxu0 0
        %1485 = vmatpush1.bf16.msra.mxu0 0
        %1486 = vmatprep.subr.bf16.mxu0 0
        %1487 = vmatpush1.bf16.msra.mxu0 0
        %1488 = vmatprep.subr.bf16.mxu0 0
        %1489 = vmatpush1.bf16.msra.mxu0 0
        %1490 = vmatprep.subr.bf16.mxu0 0
        %1491 = vmatpush1.bf16.msra.mxu0 0
        %1492 = vmatprep.subr.bf16.mxu0 0
        %1493 = vmatpush1.bf16.msra.mxu0 0
        %1494 = vmatprep.subr.bf16.mxu0 0
        %1495 = vmatpush1.bf16.msra.mxu0 0
        %1496 = vmatprep.subr.bf16.mxu0 0
        %1497 = vmatpush1.bf16.msra.mxu0 0
        %1498 = vmatprep.subr.bf16.mxu0 0
        %1499 = vmatpush1.bf16.msra.mxu0 0
        %1500 = vmatprep.subr.bf16.mxu0 0
        %1501 = vmatpush1.bf16.msra.mxu0 0
        %1502 = vmatprep.subr.bf16.mxu0 0
        %1503 = vmatpush1.bf16.msra.mxu0 0
        %1504 = vmatprep.mubr.bf16.mxu0 0
        %1505 = vmatmul.mubr.bf16.gmra.mrb[0].mxu0 %v937
        %v1506 = vpop.f32.mrb[0].mxu0
        %v1507 = vadd.f32 0.0, %v1506
        %v1508 = vpop.f32.mrb[0].mxu0
        %v1509 = vadd.f32 0.0, %v1508
        %v1510 = vpop.f32.mrb[0].mxu0
        %v1511 = vpop.f32.mrb[0].mxu0
        %1512 = vdwg.mxu0
        %1513 = vmatprep.subr.bf16.mxu0 %v772
        %1514 = vmatpush1.bf16.msra.mxu0 %v771
        %1515 = vmatprep.subr.bf16.mxu0 %v804
        %1516 = vmatpush1.bf16.msra.mxu0 %v803
        %1517 = vmatprep.subr.bf16.mxu0 %v836
        %1518 = vmatpush1.bf16.msra.mxu0 %v835
        %1519 = vmatprep.subr.bf16.mxu0 0
        %1520 = vmatpush1.bf16.msra.mxu0 0
        %1521 = vmatprep.subr.bf16.mxu0 0
        %1522 = vmatpush1.bf16.msra.mxu0 0
        %1523 = vmatprep.subr.bf16.mxu0 0
        %1524 = vmatpush1.bf16.msra.mxu0 0
        %1525 = vmatprep.subr.bf16.mxu0 0
        %1526 = vmatpush1.bf16.msra.mxu0 0
        %1527 = vmatprep.subr.bf16.mxu0 0
        %1528 = vmatpush1.bf16.msra.mxu0 0
        %1529 = vmatprep.subr.bf16.mxu0 0
        %1530 = vmatpush1.bf16.msra.mxu0 0
        %1531 = vmatprep.subr.bf16.mxu0 0
        %1532 = vmatpush1.bf16.msra.mxu0 0
        %1533 = vmatprep.subr.bf16.mxu0 0
        %1534 = vmatpush1.bf16.msra.mxu0 0
        %1535 = vmatprep.subr.bf16.mxu0 0
        %1536 = vmatpush1.bf16.msra.mxu0 0
        %1537 = vmatprep.subr.bf16.mxu0 0
        %1538 = vmatpush1.bf16.msra.mxu0 0
        %1539 = vmatprep.subr.bf16.mxu0 0
        %1540 = vmatpush1.bf16.msra.mxu0 0
        %1541 = vmatprep.subr.bf16.mxu0 0
        %1542 = vmatpush1.bf16.msra.mxu0 0
        %1543 = vmatprep.subr.bf16.mxu0 0
        %1544 = vmatpush1.bf16.msra.mxu0 0
        %1545 = vmatprep.mubr.bf16.mxu0 0
        %1546 = vmatmul.mubr.bf16.gmra.mrb[0].mxu0 %v937
        %v1547 = vpop.f32.mrb[0].mxu0
        %v1548 = vadd.f32 0.0, %v1547
        %v1549 = vpop.f32.mrb[0].mxu0
        %v1550 = vadd.f32 0.0, %v1549
        %v1551 = vpop.f32.mrb[0].mxu0
        %v1552 = vpop.f32.mrb[0].mxu0
        %1553 = vdwg.mxu0
        %1554 = vmatprep.subr.bf16.mxu0 %v774
        %1555 = vmatpush1.bf16.msra.mxu0 %v773
        %1556 = vmatprep.subr.bf16.mxu0 %v806
        %1557 = vmatpush1.bf16.msra.mxu0 %v805
        %1558 = vmatprep.subr.bf16.mxu0 %v838
        %1559 = vmatpush1.bf16.msra.mxu0 %v837
        %1560 = vmatprep.subr.bf16.mxu0 0
        %1561 = vmatpush1.bf16.msra.mxu0 0
        %1562 = vmatprep.subr.bf16.mxu0 0
        %1563 = vmatpush1.bf16.msra.mxu0 0
        %1564 = vmatprep.subr.bf16.mxu0 0
        %1565 = vmatpush1.bf16.msra.mxu0 0
        %1566 = vmatprep.subr.bf16.mxu0 0
        %1567 = vmatpush1.bf16.msra.mxu0 0
        %1568 = vmatprep.subr.bf16.mxu0 0
        %1569 = vmatpush1.bf16.msra.mxu0 0
        %1570 = vmatprep.subr.bf16.mxu0 0
        %1571 = vmatpush1.bf16.msra.mxu0 0
        %1572 = vmatprep.subr.bf16.mxu0 0
        %1573 = vmatpush1.bf16.msra.mxu0 0
        %1574 = vmatprep.subr.bf16.mxu0 0
        %1575 = vmatpush1.bf16.msra.mxu0 0
        %1576 = vmatprep.subr.bf16.mxu0 0
        %1577 = vmatpush1.bf16.msra.mxu0 0
        %1578 = vmatprep.subr.bf16.mxu0 0
        %1579 = vmatpush1.bf16.msra.mxu0 0
        %1580 = vmatprep.subr.bf16.mxu0 0
        %1581 = vmatpush1.bf16.msra.mxu0 0
        %1582 = vmatprep.subr.bf16.mxu0 0
        %1583 = vmatpush1.bf16.msra.mxu0 0
        %1584 = vmatprep.subr.bf16.mxu0 0
        %1585 = vmatpush1.bf16.msra.mxu0 0
        %1586 = vmatprep.mubr.bf16.mxu0 0
        %1587 = vmatmul.mubr.bf16.gmra.mrb[0].mxu0 %v937
        %v1588 = vpop.f32.mrb[0].mxu0
        %v1589 = vadd.f32 0.0, %v1588
        %v1590 = vpop.f32.mrb[0].mxu0
        %v1591 = vadd.f32 0.0, %v1590
        %v1592 = vpop.f32.mrb[0].mxu0
        %v1593 = vpop.f32.mrb[0].mxu0
        %1594 = vdwg.mxu0
        %vm1595 = vcmp.gt.f32.partialorder %v974, 0.0
        %vm1596 = vcmp.gt.f32.partialorder %v976, 0.0
        %vm1597 = vcmp.gt.f32.partialorder %v1015, 0.0
        %vm1598 = vcmp.gt.f32.partialorder %v1017, 0.0
        %vm1599 = vcmp.gt.f32.partialorder %v1056, 0.0
        %vm1600 = vcmp.gt.f32.partialorder %v1058, 0.0
        %vm1601 = vcmp.gt.f32.partialorder %v1097, 0.0
        %vm1602 = vcmp.gt.f32.partialorder %v1099, 0.0
        %vm1603 = vcmp.gt.f32.partialorder %v1138, 0.0
        %vm1604 = vcmp.gt.f32.partialorder %v1140, 0.0
        %vm1605 = vcmp.gt.f32.partialorder %v1179, 0.0
        %vm1606 = vcmp.gt.f32.partialorder %v1181, 0.0
        %vm1607 = vcmp.gt.f32.partialorder %v1220, 0.0
        %vm1608 = vcmp.gt.f32.partialorder %v1222, 0.0
        %vm1609 = vcmp.gt.f32.partialorder %v1261, 0.0
        %vm1610 = vcmp.gt.f32.partialorder %v1263, 0.0
        %vm1611 = vcmp.gt.f32.partialorder %v1302, 0.0
        %vm1612 = vcmp.gt.f32.partialorder %v1304, 0.0
        %vm1613 = vcmp.gt.f32.partialorder %v1343, 0.0
        %vm1614 = vcmp.gt.f32.partialorder %v1345, 0.0
        %vm1615 = vcmp.gt.f32.partialorder %v1384, 0.0
        %vm1616 = vcmp.gt.f32.partialorder %v1386, 0.0
        %vm1617 = vcmp.gt.f32.partialorder %v1425, 0.0
        %vm1618 = vcmp.gt.f32.partialorder %v1427, 0.0
        %vm1619 = vcmp.gt.f32.partialorder %v1466, 0.0
        %vm1620 = vcmp.gt.f32.partialorder %v1468, 0.0
        %vm1621 = vcmp.gt.f32.partialorder %v1507, 0.0
        %vm1622 = vcmp.gt.f32.partialorder %v1509, 0.0
        %vm1623 = vcmp.gt.f32.partialorder %v1548, 0.0
        %vm1624 = vcmp.gt.f32.partialorder %v1550, 0.0
        %vm1625 = vcmp.gt.f32.partialorder %v1589, 0.0
        %vm1626 = vcmp.gt.f32.partialorder %v1591, 0.0
        %v1627 = vmul.f32 %v974, 0.2
        %v1628 = vmul.f32 %v976, 0.2
        %v1629 = vmul.f32 %v1015, 0.2
        %v1630 = vmul.f32 %v1017, 0.2
        %v1631 = vmul.f32 %v1056, 0.2
        %v1632 = vmul.f32 %v1058, 0.2
        %v1633 = vmul.f32 %v1097, 0.2
        %v1634 = vmul.f32 %v1099, 0.2
        %v1635 = vmul.f32 %v1138, 0.2
        %v1636 = vmul.f32 %v1140, 0.2
        %v1637 = vmul.f32 %v1179, 0.2
        %v1638 = vmul.f32 %v1181, 0.2
        %v1639 = vmul.f32 %v1220, 0.2
        %v1640 = vmul.f32 %v1222, 0.2
        %v1641 = vmul.f32 %v1261, 0.2
        %v1642 = vmul.f32 %v1263, 0.2
        %v1643 = vmul.f32 %v1302, 0.2
        %v1644 = vmul.f32 %v1304, 0.2
        %v1645 = vmul.f32 %v1343, 0.2
        %v1646 = vmul.f32 %v1345, 0.2
        %v1647 = vmul.f32 %v1384, 0.2
        %v1648 = vmul.f32 %v1386, 0.2
        %v1649 = vmul.f32 %v1425, 0.2
        %v1650 = vmul.f32 %v1427, 0.2
        %v1651 = vmul.f32 %v1466, 0.2
        %v1652 = vmul.f32 %v1468, 0.2
        %v1653 = vmul.f32 %v1507, 0.2
        %v1654 = vmul.f32 %v1509, 0.2
        %v1655 = vmul.f32 %v1548, 0.2
        %v1656 = vmul.f32 %v1550, 0.2
        %v1657 = vmul.f32 %v1589, 0.2
        %v1658 = vmul.f32 %v1591, 0.2
        %v1659 = vsel %vm1595, %v974, %v1627
        %v1660 = vsel %vm1596, %v976, %v1628
        %v1661 = vsel %vm1597, %v1015, %v1629
        %v1662 = vsel %vm1598, %v1017, %v1630
        %v1663 = vsel %vm1599, %v1056, %v1631
        %v1664 = vsel %vm1600, %v1058, %v1632
        %v1665 = vsel %vm1601, %v1097, %v1633
        %v1666 = vsel %vm1602, %v1099, %v1634
        %v1667 = vsel %vm1603, %v1138, %v1635
        %v1668 = vsel %vm1604, %v1140, %v1636
        %v1669 = vsel %vm1605, %v1179, %v1637
        %v1670 = vsel %vm1606, %v1181, %v1638
        %v1671 = vsel %vm1607, %v1220, %v1639
        %v1672 = vsel %vm1608, %v1222, %v1640
        %v1673 = vsel %vm1609, %v1261, %v1641
        %v1674 = vsel %vm1610, %v1263, %v1642
        %v1675 = vsel %vm1611, %v1302, %v1643
        %v1676 = vsel %vm1612, %v1304, %v1644
        %v1677 = vsel %vm1613, %v1343, %v1645
        %v1678 = vsel %vm1614, %v1345, %v1646
        %v1679 = vsel %vm1615, %v1384, %v1647
        %v1680 = vsel %vm1616, %v1386, %v1648
        %v1681 = vsel %vm1617, %v1425, %v1649
        %v1682 = vsel %vm1618, %v1427, %v1650
        %v1683 = vsel %vm1619, %v1466, %v1651
        %v1684 = vsel %vm1620, %v1468, %v1652
        %v1685 = vsel %vm1621, %v1507, %v1653
        %v1686 = vsel %vm1622, %v1509, %v1654
        %v1687 = vsel %vm1623, %v1548, %v1655
        %v1688 = vsel %vm1624, %v1550, %v1656
        %v1689 = vsel %vm1625, %v1589, %v1657
        %v1690 = vsel %vm1626, %v1591, %v1658
        %v1691 = vpack.c.bf16 %v1659, %v1659
        %v1692 = vpack.c.bf16 %v1660, %v1660
        %v1693 = vpack.c.bf16 %v1661, %v1661
        %v1694 = vpack.c.bf16 %v1662, %v1662
        %v1695 = vpack.c.bf16 %v1663, %v1663
        %v1696 = vpack.c.bf16 %v1664, %v1664
        %v1697 = vpack.c.bf16 %v1665, %v1665
        %v1698 = vpack.c.bf16 %v1666, %v1666
        %v1699 = vpack.c.bf16 %v1667, %v1667
        %v1700 = vpack.c.bf16 %v1668, %v1668
        %v1701 = vpack.c.bf16 %v1669, %v1669
        %v1702 = vpack.c.bf16 %v1670, %v1670
        %v1703 = vpack.c.bf16 %v1671, %v1671
        %v1704 = vpack.c.bf16 %v1672, %v1672
        %v1705 = vpack.c.bf16 %v1673, %v1673
        %v1706 = vpack.c.bf16 %v1674, %v1674
        %v1707 = vpack.c.bf16 %v1675, %v1675
        %v1708 = vpack.c.bf16 %v1676, %v1676
        %v1709 = vpack.c.bf16 %v1677, %v1677
        %v1710 = vpack.c.bf16 %v1678, %v1678
        %v1711 = vpack.c.bf16 %v1679, %v1679
        %v1712 = vpack.c.bf16 %v1680, %v1680
        %v1713 = vpack.c.bf16 %v1681, %v1681
        %v1714 = vpack.c.bf16 %v1682, %v1682
        %v1715 = vpack.c.bf16 %v1683, %v1683
        %v1716 = vpack.c.bf16 %v1684, %v1684
        %v1717 = vpack.c.bf16 %v1685, %v1685
        %v1718 = vpack.c.bf16 %v1686, %v1686
        %v1719 = vpack.c.bf16 %v1687, %v1687
        %v1720 = vpack.c.bf16 %v1688, %v1688
        %v1721 = vpack.c.bf16 %v1689, %v1689
        %v1722 = vpack.c.bf16 %v1690, %v1690
        %v1755 = vunpack.c.l.b16 %v1691
        %v1756 = vunpack.c.l.b16 %v1692
        %v1757 = vunpack.c.l.b16 %v1693
        %v1758 = vunpack.c.l.b16 %v1694
        %v1759 = vunpack.c.l.b16 %v1695
        %v1760 = vunpack.c.l.b16 %v1696
        %v1761 = vunpack.c.l.b16 %v1697
        %v1762 = vunpack.c.l.b16 %v1698
        %v1763 = vunpack.c.l.b16 %v1699
        %v1764 = vunpack.c.l.b16 %v1700
        %v1765 = vunpack.c.l.b16 %v1701
        %v1766 = vunpack.c.l.b16 %v1702
        %v1767 = vunpack.c.l.b16 %v1703
        %v1768 = vunpack.c.l.b16 %v1704
        %v1769 = vunpack.c.l.b16 %v1705
        %v1770 = vunpack.c.l.b16 %v1706
        %v1771 = vunpack.c.l.b16 %v1707
        %v1772 = vunpack.c.l.b16 %v1708
        %v1773 = vunpack.c.l.b16 %v1709
        %v1774 = vunpack.c.l.b16 %v1710
        %v1775 = vunpack.c.l.b16 %v1711
        %v1776 = vunpack.c.l.b16 %v1712
        %v1777 = vunpack.c.l.b16 %v1713
        %v1778 = vunpack.c.l.b16 %v1714
        %v1779 = vunpack.c.l.b16 %v1715
        %v1780 = vunpack.c.l.b16 %v1716
        %v1781 = vunpack.c.l.b16 %v1717
        %v1782 = vunpack.c.l.b16 %v1718
        %v1783 = vunpack.c.l.b16 %v1719
        %v1784 = vunpack.c.l.b16 %v1720
        %v1785 = vunpack.c.l.b16 %v1721
        %v1786 = vunpack.c.l.b16 %v1722
        %v1787 = vpack.c.b16 %v1756, %v1755
        %v1788 = vpack.c.b16 %v1758, %v1757
        %v1789 = vpack.c.b16 %v1760, %v1759
        %v1790 = vpack.c.b16 %v1762, %v1761
        %v1791 = vpack.c.b16 %v1764, %v1763
        %v1792 = vpack.c.b16 %v1766, %v1765
        %v1793 = vpack.c.b16 %v1768, %v1767
        %v1794 = vpack.c.b16 %v1770, %v1769
        %v1795 = vpack.c.b16 %v1772, %v1771
        %v1796 = vpack.c.b16 %v1774, %v1773
        %v1797 = vpack.c.b16 %v1776, %v1775
        %v1798 = vpack.c.b16 %v1778, %v1777
        %v1799 = vpack.c.b16 %v1780, %v1779
        %v1800 = vpack.c.b16 %v1782, %v1781
        %v1801 = vpack.c.b16 %v1784, %v1783
        %v1802 = vpack.c.b16 %v1786, %v1785
        %1819 = vst [vmem:[%s354] sm:$0xff] %v1787
        %1820 = vst [vmem:[%s354 + $0x8] sm:$0xff] %v1788
        %1821 = vst [vmem:[%s354 + $0x10] sm:$0xff] %v1789
        %1822 = vst [vmem:[%s354 + $0x18] sm:$0xff] %v1790
        %1823 = vst [vmem:[%s354 + $0x20] sm:$0xff] %v1791
        %1824 = vst [vmem:[%s354 + $0x28] sm:$0xff] %v1792
        %1825 = vst [vmem:[%s354 + $0x30] sm:$0xff] %v1793
        %1826 = vst [vmem:[%s354 + $0x38] sm:$0xff] %v1794
        %1827 = vst [vmem:[%s354 + $0x40] sm:$0xff] %v1795
        %1828 = vst [vmem:[%s354 + $0x48] sm:$0xff] %v1796
        %1829 = vst [vmem:[%s354 + $0x50] sm:$0xff] %v1797
        %1830 = vst [vmem:[%s354 + $0x58] sm:$0xff] %v1798
        %1831 = vst [vmem:[%s354 + $0x60] sm:$0xff] %v1799
        %1832 = vst [vmem:[%s354 + $0x68] sm:$0xff] %v1800
        %1833 = vst [vmem:[%s354 + $0x70] sm:$0xff] %v1801
        %1834 = vst [vmem:[%s354 + $0x78] sm:$0xff] %v1802
        %s1835 = smul.u32 32, %s13
        %p1836 = scmp.lt.s32.totalorder %s1835, 63
        %s1837 = scalar_select %p1836, %s1835, 63
        %s1838 = smul.addr %s1837, 4
        %s1839 = scalar_lea.vmem %s2, %s1838
        // Predicated region
        $region52: #{discriminator128_forward.6} parent=46 // pred_check
          %p1840 = pneg %p78
        $region53: #{discriminator128_forward.6} parent=46 // pred_check_branch
          %1842 = sbr.rel (%p1840) target = $region55
        $region54: #{discriminator128_forward.6} parent=46 // pred_region
          %s1843 = smul.u32 32, %s13
        $region55: #{discriminator128_forward.6} parent=46 // pred_fallthru
          _
      $region47: #{discriminator128_forward.6} parent=5 // pred_fallthru
        _
      %p1844 = scmp.le.s32.totalorder 2, %s8
      // Predicated region
      $region56: #{discriminator128_forward.6} parent=5 // pred_check
        %p1845 = pneg %p1844
      $region57: #{discriminator128_forward.6} parent=5 // pred_check_branch
        %1847 = sbr.rel (%p1845) target = $region59
      $region58: #{discriminator128_forward.6} parent=5 // pred_region
        %s1848 = ssub.s32 %s8, 2
        // Predicated region
        $region60: #{discriminator128_forward.6} parent=58 // pred_check
          %p1849 = pneg %p84
        $region61: #{discriminator128_forward.6} parent=58 // pred_check_branch
          %1851 = sbr.rel (%p1849) target = $region63
        $region62: #{discriminator128_forward.6} parent=58 // pred_region
          %s1852 = smul.u32 32, %s14
          %p1853 = scmp.lt.s32.totalorder %s1852, 63
          %s1854 = scalar_select %p1853, %s1852, 63
          %s1855 = smul.addr %s1854, 4
          %s1856 = scalar_lea.vmem %s2, %s1855
        $region63: #{discriminator128_forward.6} parent=58 // pred_fallthru
          _
      $region59: #{discriminator128_forward.6} parent=5 // pred_fallthru
        _
    $region6: #{discriminator128_forward.6} parent=1 // loop_footer
      %s12 = sadd.s32 1, %s8
    $region7: #{discriminator128_forward.6} parent=1 // loop_footer_branch
      %7 = sbr.rel target = $region3
    $region8: #{discriminator128_forward.6} parent=1 // loop_exit
      _

// kernel: discriminator128_forward.7
$region0: #{discriminator128_forward.7}
  #allocation0 [shape = 'u32[]', space=smem, size = 0x4, offset = 0x4, fixed_abs, tag = 'smem constant byte address 0x4 - core index']
  #allocation1 [shape = 'u32[144,128]{1,0:T(1,128)}', space=vmem, size = 0x12000, scoped, tag = 'internal scratch']
  %s0 = inlined_call_operand.vmem [shape: f32[16,128], index: 0, kind: input, shape index: {}]
  %s1 = inlined_call_operand.vmem [shape: bf16[128,2048], index: 1, kind: input, shape index: {}]
  %s2 = inlined_call_operand.vmem [shape: f32[16,1], index: 2, kind: input, shape index: {}]
  %s3 = inlined_call_operand.vmem [shape: f32[16,1], index: 3, kind: input, shape index: {}]
  %s4 = inlined_call_operand.vmem [shape: bf16[16,2048], index: 4, kind: output, shape index: {}]
  %s5 = sld [smem:[#allocation0]]
  $region26: #{discriminator128_forward.7} parent=0
    _
  %s7 = ssub.s32 1, %s5
  %s8 = scalar_select 0, %s7, %s5
  // Predicated region
  $region2: #{discriminator128_forward.7} parent=0 // pred_check
    _
  $region3: #{discriminator128_forward.7} parent=0 // pred_check_branch
    %10 = sbr.rel (0) target = $region5
  $region4: #{discriminator128_forward.7} parent=0 // pred_region
    _
  $region5: #{discriminator128_forward.7} parent=0 // pred_fallthru
    _
  // Predicated region
  $region6: #{discriminator128_forward.7} parent=0 // pred_check
    _
  $region7: #{discriminator128_forward.7} parent=0 // pred_check_branch
    %12 = sbr.rel (0) target = $region9
  $region8: #{discriminator128_forward.7} parent=0 // pred_region
    _
  $region9: #{discriminator128_forward.7} parent=0 // pred_fallthru
    _
  // Predicated region
  $region10: #{discriminator128_forward.7} parent=0 // pred_check
    _
  $region11: #{discriminator128_forward.7} parent=0 // pred_check_branch
    %14 = sbr.rel (0) target = $region13
  $region12: #{discriminator128_forward.7} parent=0 // pred_region
    _
  $region13: #{discriminator128_forward.7} parent=0 // pred_fallthru
    _
  // Predicated region
  $region14: #{discriminator128_forward.7} parent=0 // pred_check
    _
  $region15: #{discriminator128_forward.7} parent=0 // pred_check_branch
    %16 = sbr.rel (0) target = $region17
  $region16: #{discriminator128_forward.7} parent=0 // pred_region
    _
  $region17: #{discriminator128_forward.7} parent=0 // pred_fallthru
    _
  %v18 = vld [vmem:[%s0] sm:$0xff]
  %v19 = vld [vmem:[%s0 + $0x8] sm:$0xff]
  %v20 = vpack.c.bf16 %v19, %v18
  %v21 = vld [vmem:[%s1] sm:$0xff]
  %v22 = vld [vmem:[%s1 + $0x8] sm:$0xff]
  %v23 = vld [vmem:[%s1 + $0x10] sm:$0xff]
  %v24 = vld [vmem:[%s1 + $0x18] sm:$0xff]
  %v25 = vld [vmem:[%s1 + $0x20] sm:$0xff]
  %v26 = vld [vmem:[%s1 + $0x28] sm:$0xff]
  %v27 = vld [vmem:[%s1 + $0x30] sm:$0xff]
  %v28 = vld [vmem:[%s1 + $0x38] sm:$0xff]
  %v29 = vld [vmem:[%s1 + $0x40] sm:$0xff]
  %v30 = vld [vmem:[%s1 + $0x48] sm:$0xff]
  %v31 = vld [vmem:[%s1 + $0x50] sm:$0xff]
  %v32 = vld [vmem:[%s1 + $0x58] sm:$0xff]
  %v33 = vld [vmem:[%s1 + $0x60] sm:$0xff]
  %v34 = vld [vmem:[%s1 + $0x68] sm:$0xff]
  %v35 = vld [vmem:[%s1 + $0x70] sm:$0xff]
  %v36 = vld [vmem:[%s1 + $0x78] sm:$0xff]
  %v37 = vld [vmem:[%s1 + $0x80] sm:$0xff]
  %v38 = vld [vmem:[%s1 + $0x88] sm:$0xff]
  %v39 = vld [vmem:[%s1 + $0x90] sm:$0xff]
  %v40 = vld [vmem:[%s1 + $0x98] sm:$0xff]
  %v41 = vld [vmem:[%s1 + $0xa0] sm:$0xff]
  %v42 = vld [vmem:[%s1 + $0xa8] sm:$0xff]
  %v43 = vld [vmem:[%s1 + $0xb0] sm:$0xff]
  %v44 = vld [vmem:[%s1 + $0xb8] sm:$0xff]
  %v45 = vld [vmem:[%s1 + $0xc0] sm:$0xff]
  %v46 = vld [vmem:[%s1 + $0xc8] sm:$0xff]
  %v47 = vld [vmem:[%s1 + $0xd0] sm:$0xff]
  %v48 = vld [vmem:[%s1 + $0xd8] sm:$0xff]
  %v49 = vld [vmem:[%s1 + $0xe0] sm:$0xff]
  %v50 = vld [vmem:[%s1 + $0xe8] sm:$0xff]
  %v51 = vld [vmem:[%s1 + $0xf0] sm:$0xff]
  %v52 = vld [vmem:[%s1 + $0xf8] sm:$0xff]
  %v53 = vld [vmem:[%s1 + $0x100] sm:$0xff]
  %v54 = vld [vmem:[%s1 + $0x108] sm:$0xff]
  %v55 = vld [vmem:[%s1 + $0x110] sm:$0xff]
  %v56 = vld [vmem:[%s1 + $0x118] sm:$0xff]
  %v57 = vld [vmem:[%s1 + $0x120] sm:$0xff]
  %v58 = vld [vmem:[%s1 + $0x128] sm:$0xff]
  %v59 = vld [vmem:[%s1 + $0x130] sm:$0xff]
  %v60 = vld [vmem:[%s1 + $0x138] sm:$0xff]
  %v61 = vld [vmem:[%s1 + $0x140] sm:$0xff]
  %v62 = vld [vmem:[%s1 + $0x148] sm:$0xff]
  %v63 = vld [vmem:[%s1 + $0x150] sm:$0xff]
  %v64 = vld [vmem:[%s1 + $0x158] sm:$0xff]
  %v65 = vld [vmem:[%s1 + $0x160] sm:$0xff]
  %v66 = vld [vmem:[%s1 + $0x168] sm:$0xff]
  %v67 = vld [vmem:[%s1 + $0x170] sm:$0xff]
  %v68 = vld [vmem:[%s1 + $0x178] sm:$0xff]
  %v69 = vld [vmem:[%s1 + $0x180] sm:$0xff]
  %v70 = vld [vmem:[%s1 + $0x188] sm:$0xff]
  %v71 = vld [vmem:[%s1 + $0x190] sm:$0xff]
  %v72 = vld [vmem:[%s1 + $0x198] sm:$0xff]
  %v73 = vld [vmem:[%s1 + $0x1a0] sm:$0xff]
  %v74 = vld [vmem:[%s1 + $0x1a8] sm:$0xff]
  %v75 = vld [vmem:[%s1 + $0x1b0] sm:$0xff]
  %v76 = vld [vmem:[%s1 + $0x1b8] sm:$0xff]
  %v77 = vld [vmem:[%s1 + $0x1c0] sm:$0xff]
  %v78 = vld [vmem:[%s1 + $0x1c8] sm:$0xff]
  %v79 = vld [vmem:[%s1 + $0x1d0] sm:$0xff]
  %v80 = vld [vmem:[%s1 + $0x1d8] sm:$0xff]
  %v81 = vld [vmem:[%s1 + $0x1e0] sm:$0xff]
  %v82 = vld [vmem:[%s1 + $0x1e8] sm:$0xff]
  %v83 = vld [vmem:[%s1 + $0x1f0] sm:$0xff]
  %v84 = vld [vmem:[%s1 + $0x1f8] sm:$0xff]
  %v85 = vld [vmem:[%s1 + $0x200] sm:$0xff]
  %v86 = vld [vmem:[%s1 + $0x208] sm:$0xff]
  %v87 = vld [vmem:[%s1 + $0x210] sm:$0xff]
  %v88 = vld [vmem:[%s1 + $0x218] sm:$0xff]
  %v89 = vld [vmem:[%s1 + $0x220] sm:$0xff]
  %v90 = vld [vmem:[%s1 + $0x228] sm:$0xff]
  %v91 = vld [vmem:[%s1 + $0x230] sm:$0xff]
  %v92 = vld [vmem:[%s1 + $0x238] sm:$0xff]
  %v93 = vld [vmem:[%s1 + $0x240] sm:$0xff]
  %v94 = vld [vmem:[%s1 + $0x248] sm:$0xff]
  %v95 = vld [vmem:[%s1 + $0x250] sm:$0xff]
  %v96 = vld [vmem:[%s1 + $0x258] sm:$0xff]
  %v97 = vld [vmem:[%s1 + $0x260] sm:$0xff]
  %v98 = vld [vmem:[%s1 + $0x268] sm:$0xff]
  %v99 = vld [vmem:[%s1 + $0x270] sm:$0xff]
  %v100 = vld [vmem:[%s1 + $0x278] sm:$0xff]
  %v101 = vld [vmem:[%s1 + $0x280] sm:$0xff]
  %v102 = vld [vmem:[%s1 + $0x288] sm:$0xff]
  %v103 = vld [vmem:[%s1 + $0x290] sm:$0xff]
  %v104 = vld [vmem:[%s1 + $0x298] sm:$0xff]
  %v105 = vld [vmem:[%s1 + $0x2a0] sm:$0xff]
  %v106 = vld [vmem:[%s1 + $0x2a8] sm:$0xff]
  %v107 = vld [vmem:[%s1 + $0x2b0] sm:$0xff]
  %v108 = vld [vmem:[%s1 + $0x2b8] sm:$0xff]
  %v109 = vld [vmem:[%s1 + $0x2c0] sm:$0xff]
  %v110 = vld [vmem:[%s1 + $0x2c8] sm:$0xff]
  %v111 = vld [vmem:[%s1 + $0x2d0] sm:$0xff]
  %v112 = vld [vmem:[%s1 + $0x2d8] sm:$0xff]
  %v113 = vld [vmem:[%s1 + $0x2e0] sm:$0xff]
  %v114 = vld [vmem:[%s1 + $0x2e8] sm:$0xff]
  %v115 = vld [vmem:[%s1 + $0x2f0] sm:$0xff]
  %v116 = vld [vmem:[%s1 + $0x2f8] sm:$0xff]
  %v117 = vld [vmem:[%s1 + $0x300] sm:$0xff]
  %v118 = vld [vmem:[%s1 + $0x308] sm:$0xff]
  %v119 = vld [vmem:[%s1 + $0x310] sm:$0xff]
  %v120 = vld [vmem:[%s1 + $0x318] sm:$0xff]
  %v121 = vld [vmem:[%s1 + $0x320] sm:$0xff]
  %v122 = vld [vmem:[%s1 + $0x328] sm:$0xff]
  %v123 = vld [vmem:[%s1 + $0x330] sm:$0xff]
  %v124 = vld [vmem:[%s1 + $0x338] sm:$0xff]
  %v125 = vld [vmem:[%s1 + $0x340] sm:$0xff]
  %v126 = vld [vmem:[%s1 + $0x348] sm:$0xff]
  %v127 = vld [vmem:[%s1 + $0x350] sm:$0xff]
  %v128 = vld [vmem:[%s1 + $0x358] sm:$0xff]
  %v129 = vld [vmem:[%s1 + $0x360] sm:$0xff]
  %v130 = vld [vmem:[%s1 + $0x368] sm:$0xff]
  %v131 = vld [vmem:[%s1 + $0x370] sm:$0xff]
  %v132 = vld [vmem:[%s1 + $0x378] sm:$0xff]
  %v133 = vld [vmem:[%s1 + $0x380] sm:$0xff]
  %v134 = vld [vmem:[%s1 + $0x388] sm:$0xff]
  %v135 = vld [vmem:[%s1 + $0x390] sm:$0xff]
  %v136 = vld [vmem:[%s1 + $0x398] sm:$0xff]
  %v137 = vld [vmem:[%s1 + $0x3a0] sm:$0xff]
  %v138 = vld [vmem:[%s1 + $0x3a8] sm:$0xff]
  %v139 = vld [vmem:[%s1 + $0x3b0] sm:$0xff]
  %v140 = vld [vmem:[%s1 + $0x3b8] sm:$0xff]
  %v141 = vld [vmem:[%s1 + $0x3c0] sm:$0xff]
  %v142 = vld [vmem:[%s1 + $0x3c8] sm:$0xff]
  %v143 = vld [vmem:[%s1 + $0x3d0] sm:$0xff]
  %v144 = vld [vmem:[%s1 + $0x3d8] sm:$0xff]
  %v145 = vld [vmem:[%s1 + $0x3e0] sm:$0xff]
  %v146 = vld [vmem:[%s1 + $0x3e8] sm:$0xff]
  %v147 = vld [vmem:[%s1 + $0x3f0] sm:$0xff]
  %v148 = vld [vmem:[%s1 + $0x3f8] sm:$0xff]
  %v277 = vunpack.c.l.b16 %v21
  %v278 = vunpack.c.h.b16 %v21
  %v279 = vunpack.c.l.b16 %v22
  %v280 = vunpack.c.h.b16 %v22
  %v281 = vunpack.c.l.b16 %v23
  %v282 = vunpack.c.h.b16 %v23
  %v283 = vunpack.c.l.b16 %v24
  %v284 = vunpack.c.h.b16 %v24
  %v285 = vunpack.c.l.b16 %v25
  %v286 = vunpack.c.h.b16 %v25
  %v287 = vunpack.c.l.b16 %v26
  %v288 = vunpack.c.h.b16 %v26
  %v289 = vunpack.c.l.b16 %v27
  %v290 = vunpack.c.h.b16 %v27
  %v291 = vunpack.c.l.b16 %v28
  %v292 = vunpack.c.h.b16 %v28
  %v293 = vunpack.c.l.b16 %v29
  %v294 = vunpack.c.h.b16 %v29
  %v295 = vunpack.c.l.b16 %v30
  %v296 = vunpack.c.h.b16 %v30
  %v297 = vunpack.c.l.b16 %v31
  %v298 = vunpack.c.h.b16 %v31
  %v299 = vunpack.c.l.b16 %v32
  %v300 = vunpack.c.h.b16 %v32
  %v301 = vunpack.c.l.b16 %v33
  %v302 = vunpack.c.h.b16 %v33
  %v303 = vunpack.c.l.b16 %v34
  %v304 = vunpack.c.h.b16 %v34
  %v305 = vunpack.c.l.b16 %v35
  %v306 = vunpack.c.h.b16 %v35
  %v307 = vunpack.c.l.b16 %v36
  %v308 = vunpack.c.h.b16 %v36
  %v309 = vunpack.c.l.b16 %v37
  %v310 = vunpack.c.h.b16 %v37
  %v311 = vunpack.c.l.b16 %v38
  %v312 = vunpack.c.h.b16 %v38
  %v313 = vunpack.c.l.b16 %v39
  %v314 = vunpack.c.h.b16 %v39
  %v315 = vunpack.c.l.b16 %v40
  %v316 = vunpack.c.h.b16 %v40
  %v317 = vunpack.c.l.b16 %v41
  %v318 = vunpack.c.h.b16 %v41
  %v319 = vunpack.c.l.b16 %v42
  %v320 = vunpack.c.h.b16 %v42
  %v321 = vunpack.c.l.b16 %v43
  %v322 = vunpack.c.h.b16 %v43
  %v323 = vunpack.c.l.b16 %v44
  %v324 = vunpack.c.h.b16 %v44
  %v325 = vunpack.c.l.b16 %v45
  %v326 = vunpack.c.h.b16 %v45
  %v327 = vunpack.c.l.b16 %v46
  %v328 = vunpack.c.h.b16 %v46
  %v329 = vunpack.c.l.b16 %v47
  %v330 = vunpack.c.h.b16 %v47
  %v331 = vunpack.c.l.b16 %v48
  %v332 = vunpack.c.h.b16 %v48
  %v333 = vunpack.c.l.b16 %v49
  %v334 = vunpack.c.h.b16 %v49
  %v335 = vunpack.c.l.b16 %v50
  %v336 = vunpack.c.h.b16 %v50
  %v337 = vunpack.c.l.b16 %v51
  %v338 = vunpack.c.h.b16 %v51
  %v339 = vunpack.c.l.b16 %v52
  %v340 = vunpack.c.h.b16 %v52
  %v341 = vunpack.c.l.b16 %v53
  %v342 = vunpack.c.h.b16 %v53
  %v343 = vunpack.c.l.b16 %v54
  %v344 = vunpack.c.h.b16 %v54
  %v345 = vunpack.c.l.b16 %v55
  %v346 = vunpack.c.h.b16 %v55
  %v347 = vunpack.c.l.b16 %v56
  %v348 = vunpack.c.h.b16 %v56
  %v349 = vunpack.c.l.b16 %v57
  %v350 = vunpack.c.h.b16 %v57
  %v351 = vunpack.c.l.b16 %v58
  %v352 = vunpack.c.h.b16 %v58
  %v353 = vunpack.c.l.b16 %v59
  %v354 = vunpack.c.h.b16 %v59
  %v355 = vunpack.c.l.b16 %v60
  %v356 = vunpack.c.h.b16 %v60
  %v357 = vunpack.c.l.b16 %v61
  %v358 = vunpack.c.h.b16 %v61
  %v359 = vunpack.c.l.b16 %v62
  %v360 = vunpack.c.h.b16 %v62
  %v361 = vunpack.c.l.b16 %v63
  %v362 = vunpack.c.h.b16 %v63
  %v363 = vunpack.c.l.b16 %v64
  %v364 = vunpack.c.h.b16 %v64
  %v365 = vunpack.c.l.b16 %v65
  %v366 = vunpack.c.h.b16 %v65
  %v367 = vunpack.c.l.b16 %v66
  %v368 = vunpack.c.h.b16 %v66
  %v369 = vunpack.c.l.b16 %v67
  %v370 = vunpack.c.h.b16 %v67
  %v371 = vunpack.c.l.b16 %v68
  %v372 = vunpack.c.h.b16 %v68
  %v373 = vunpack.c.l.b16 %v69
  %v374 = vunpack.c.h.b16 %v69
  %v375 = vunpack.c.l.b16 %v70
  %v376 = vunpack.c.h.b16 %v70
  %v377 = vunpack.c.l.b16 %v71
  %v378 = vunpack.c.h.b16 %v71
  %v379 = vunpack.c.l.b16 %v72
  %v380 = vunpack.c.h.b16 %v72
  %v381 = vunpack.c.l.b16 %v73
  %v382 = vunpack.c.h.b16 %v73
  %v383 = vunpack.c.l.b16 %v74
  %v384 = vunpack.c.h.b16 %v74
  %v385 = vunpack.c.l.b16 %v75
  %v386 = vunpack.c.h.b16 %v75
  %v387 = vunpack.c.l.b16 %v76
  %v388 = vunpack.c.h.b16 %v76
  %v389 = vunpack.c.l.b16 %v77
  %v390 = vunpack.c.h.b16 %v77
  %v391 = vunpack.c.l.b16 %v78
  %v392 = vunpack.c.h.b16 %v78
  %v393 = vunpack.c.l.b16 %v79
  %v394 = vunpack.c.h.b16 %v79
  %v395 = vunpack.c.l.b16 %v80
  %v396 = vunpack.c.h.b16 %v80
  %v397 = vunpack.c.l.b16 %v81
  %v398 = vunpack.c.h.b16 %v81
  %v399 = vunpack.c.l.b16 %v82
  %v400 = vunpack.c.h.b16 %v82
  %v401 = vunpack.c.l.b16 %v83
  %v402 = vunpack.c.h.b16 %v83
  %v403 = vunpack.c.l.b16 %v84
  %v404 = vunpack.c.h.b16 %v84
  %v405 = vunpack.c.l.b16 %v85
  %v406 = vunpack.c.h.b16 %v85
  %v407 = vunpack.c.l.b16 %v86
  %v408 = vunpack.c.h.b16 %v86
  %v409 = vunpack.c.l.b16 %v87
  %v410 = vunpack.c.h.b16 %v87
  %v411 = vunpack.c.l.b16 %v88
  %v412 = vunpack.c.h.b16 %v88
  %v413 = vunpack.c.l.b16 %v89
  %v414 = vunpack.c.h.b16 %v89
  %v415 = vunpack.c.l.b16 %v90
  %v416 = vunpack.c.h.b16 %v90
  %v417 = vunpack.c.l.b16 %v91
  %v418 = vunpack.c.h.b16 %v91
  %v419 = vunpack.c.l.b16 %v92
  %v420 = vunpack.c.h.b16 %v92
  %v421 = vunpack.c.l.b16 %v93
  %v422 = vunpack.c.h.b16 %v93
  %v423 = vunpack.c.l.b16 %v94
  %v424 = vunpack.c.h.b16 %v94
  %v425 = vunpack.c.l.b16 %v95
  %v426 = vunpack.c.h.b16 %v95
  %v427 = vunpack.c.l.b16 %v96
  %v428 = vunpack.c.h.b16 %v96
  %v429 = vunpack.c.l.b16 %v97
  %v430 = vunpack.c.h.b16 %v97
  %v431 = vunpack.c.l.b16 %v98
  %v432 = vunpack.c.h.b16 %v98
  %v433 = vunpack.c.l.b16 %v99
  %v434 = vunpack.c.h.b16 %v99
  %v435 = vunpack.c.l.b16 %v100
  %v436 = vunpack.c.h.b16 %v100
  %v437 = vunpack.c.l.b16 %v101
  %v438 = vunpack.c.h.b16 %v101
  %v439 = vunpack.c.l.b16 %v102
  %v440 = vunpack.c.h.b16 %v102
  %v441 = vunpack.c.l.b16 %v103
  %v442 = vunpack.c.h.b16 %v103
  %v443 = vunpack.c.l.b16 %v104
  %v444 = vunpack.c.h.b16 %v104
  %v445 = vunpack.c.l.b16 %v105
  %v446 = vunpack.c.h.b16 %v105
  %v447 = vunpack.c.l.b16 %v106
  %v448 = vunpack.c.h.b16 %v106
  %v449 = vunpack.c.l.b16 %v107
  %v450 = vunpack.c.h.b16 %v107
  %v451 = vunpack.c.l.b16 %v108
  %v452 = vunpack.c.h.b16 %v108
  %v453 = vunpack.c.l.b16 %v109
  %v454 = vunpack.c.h.b16 %v109
  %v455 = vunpack.c.l.b16 %v110
  %v456 = vunpack.c.h.b16 %v110
  %v457 = vunpack.c.l.b16 %v111
  %v458 = vunpack.c.h.b16 %v111
  %v459 = vunpack.c.l.b16 %v112
  %v460 = vunpack.c.h.b16 %v112
  %v461 = vunpack.c.l.b16 %v113
  %v462 = vunpack.c.h.b16 %v113
  %v463 = vunpack.c.l.b16 %v114
  %v464 = vunpack.c.h.b16 %v114
  %v465 = vunpack.c.l.b16 %v115
  %v466 = vunpack.c.h.b16 %v115
  %v467 = vunpack.c.l.b16 %v116
  %v468 = vunpack.c.h.b16 %v116
  %v469 = vunpack.c.l.b16 %v117
  %v470 = vunpack.c.h.b16 %v117
  %v471 = vunpack.c.l.b16 %v118
  %v472 = vunpack.c.h.b16 %v118
  %v473 = vunpack.c.l.b16 %v119
  %v474 = vunpack.c.h.b16 %v119
  %v475 = vunpack.c.l.b16 %v120
  %v476 = vunpack.c.h.b16 %v120
  %v477 = vunpack.c.l.b16 %v121
  %v478 = vunpack.c.h.b16 %v121
  %v479 = vunpack.c.l.b16 %v122
  %v480 = vunpack.c.h.b16 %v122
  %v481 = vunpack.c.l.b16 %v123
  %v482 = vunpack.c.h.b16 %v123
  %v483 = vunpack.c.l.b16 %v124
  %v484 = vunpack.c.h.b16 %v124
  %v485 = vunpack.c.l.b16 %v125
  %v486 = vunpack.c.h.b16 %v125
  %v487 = vunpack.c.l.b16 %v126
  %v488 = vunpack.c.h.b16 %v126
  %v489 = vunpack.c.l.b16 %v127
  %v490 = vunpack.c.h.b16 %v127
  %v491 = vunpack.c.l.b16 %v128
  %v492 = vunpack.c.h.b16 %v128
  %v493 = vunpack.c.l.b16 %v129
  %v494 = vunpack.c.h.b16 %v129
  %v495 = vunpack.c.l.b16 %v130
  %v496 = vunpack.c.h.b16 %v130
  %v497 = vunpack.c.l.b16 %v131
  %v498 = vunpack.c.h.b16 %v131
  %v499 = vunpack.c.l.b16 %v132
  %v500 = vunpack.c.h.b16 %v132
  %v501 = vunpack.c.l.b16 %v133
  %v502 = vunpack.c.h.b16 %v133
  %v503 = vunpack.c.l.b16 %v134
  %v504 = vunpack.c.h.b16 %v134
  %v505 = vunpack.c.l.b16 %v135
  %v506 = vunpack.c.h.b16 %v135
  %v507 = vunpack.c.l.b16 %v136
  %v508 = vunpack.c.h.b16 %v136
  %v509 = vunpack.c.l.b16 %v137
  %v510 = vunpack.c.h.b16 %v137
  %v511 = vunpack.c.l.b16 %v138
  %v512 = vunpack.c.h.b16 %v138
  %v513 = vunpack.c.l.b16 %v139
  %v514 = vunpack.c.h.b16 %v139
  %v515 = vunpack.c.l.b16 %v140
  %v516 = vunpack.c.h.b16 %v140
  %v517 = vunpack.c.l.b16 %v141
  %v518 = vunpack.c.h.b16 %v141
  %v519 = vunpack.c.l.b16 %v142
  %v520 = vunpack.c.h.b16 %v142
  %v521 = vunpack.c.l.b16 %v143
  %v522 = vunpack.c.h.b16 %v143
  %v523 = vunpack.c.l.b16 %v144
  %v524 = vunpack.c.h.b16 %v144
  %v525 = vunpack.c.l.b16 %v145
  %v526 = vunpack.c.h.b16 %v145
  %v527 = vunpack.c.l.b16 %v146
  %v528 = vunpack.c.h.b16 %v146
  %v529 = vunpack.c.l.b16 %v147
  %v530 = vunpack.c.h.b16 %v147
  %v531 = vunpack.c.l.b16 %v148
  %v532 = vunpack.c.h.b16 %v148
  %v533 = vpack.c.b16 %v293, %v277
  %v534 = vpack.c.b16 %v294, %v278
  %v535 = vpack.c.b16 %v295, %v279
  %v536 = vpack.c.b16 %v296, %v280
  %v537 = vpack.c.b16 %v297, %v281
  %v538 = vpack.c.b16 %v298, %v282
  %v539 = vpack.c.b16 %v299, %v283
  %v540 = vpack.c.b16 %v300, %v284
  %v541 = vpack.c.b16 %v301, %v285
  %v542 = vpack.c.b16 %v302, %v286
  %v543 = vpack.c.b16 %v303, %v287
  %v544 = vpack.c.b16 %v304, %v288
  %v545 = vpack.c.b16 %v305, %v289
  %v546 = vpack.c.b16 %v306, %v290
  %v547 = vpack.c.b16 %v307, %v291
  %v548 = vpack.c.b16 %v308, %v292
  %v549 = vpack.c.b16 %v325, %v309
  %v550 = vpack.c.b16 %v326, %v310
  %v551 = vpack.c.b16 %v327, %v311
  %v552 = vpack.c.b16 %v328, %v312
  %v553 = vpack.c.b16 %v329, %v313
  %v554 = vpack.c.b16 %v330, %v314
  %v555 = vpack.c.b16 %v331, %v315
  %v556 = vpack.c.b16 %v332, %v316
  %v557 = vpack.c.b16 %v333, %v317
  %v558 = vpack.c.b16 %v334, %v318
  %v559 = vpack.c.b16 %v335, %v319
  %v560 = vpack.c.b16 %v336, %v320
  %v561 = vpack.c.b16 %v337, %v321
  %v562 = vpack.c.b16 %v338, %v322
  %v563 = vpack.c.b16 %v339, %v323
  %v564 = vpack.c.b16 %v340, %v324
  %v565 = vpack.c.b16 %v357, %v341
  %v566 = vpack.c.b16 %v358, %v342
  %v567 = vpack.c.b16 %v359, %v343
  %v568 = vpack.c.b16 %v360, %v344
  %v569 = vpack.c.b16 %v361, %v345
  %v570 = vpack.c.b16 %v362, %v346
  %v571 = vpack.c.b16 %v363, %v347
  %v572 = vpack.c.b16 %v364, %v348
  %v573 = vpack.c.b16 %v365, %v349
  %v574 = vpack.c.b16 %v366, %v350
  %v575 = vpack.c.b16 %v367, %v351
  %v576 = vpack.c.b16 %v368, %v352
  %v577 = vpack.c.b16 %v369, %v353
  %v578 = vpack.c.b16 %v370, %v354
  %v579 = vpack.c.b16 %v371, %v355
  %v580 = vpack.c.b16 %v372, %v356
  %v581 = vpack.c.b16 %v389, %v373
  %v582 = vpack.c.b16 %v390, %v374
  %v583 = vpack.c.b16 %v391, %v375
  %v584 = vpack.c.b16 %v392, %v376
  %v585 = vpack.c.b16 %v393, %v377
  %v586 = vpack.c.b16 %v394, %v378
  %v587 = vpack.c.b16 %v395, %v379
  %v588 = vpack.c.b16 %v396, %v380
  %v589 = vpack.c.b16 %v397, %v381
  %v590 = vpack.c.b16 %v398, %v382
  %v591 = vpack.c.b16 %v399, %v383
  %v592 = vpack.c.b16 %v400, %v384
  %v593 = vpack.c.b16 %v401, %v385
  %v594 = vpack.c.b16 %v402, %v386
  %v595 = vpack.c.b16 %v403, %v387
  %v596 = vpack.c.b16 %v404, %v388
  %v597 = vpack.c.b16 %v421, %v405
  %v598 = vpack.c.b16 %v422, %v406
  %v599 = vpack.c.b16 %v423, %v407
  %v600 = vpack.c.b16 %v424, %v408
  %v601 = vpack.c.b16 %v425, %v409
  %v602 = vpack.c.b16 %v426, %v410
  %v603 = vpack.c.b16 %v427, %v411
  %v604 = vpack.c.b16 %v428, %v412
  %v605 = vpack.c.b16 %v429, %v413
  %v606 = vpack.c.b16 %v430, %v414
  %v607 = vpack.c.b16 %v431, %v415
  %v608 = vpack.c.b16 %v432, %v416
  %v609 = vpack.c.b16 %v433, %v417
  %v610 = vpack.c.b16 %v434, %v418
  %v611 = vpack.c.b16 %v435, %v419
  %v612 = vpack.c.b16 %v436, %v420
  %v613 = vpack.c.b16 %v453, %v437
  %v614 = vpack.c.b16 %v454, %v438
  %v615 = vpack.c.b16 %v455, %v439
  %v616 = vpack.c.b16 %v456, %v440
  %v617 = vpack.c.b16 %v457, %v441
  %v618 = vpack.c.b16 %v458, %v442
  %v619 = vpack.c.b16 %v459, %v443
  %v620 = vpack.c.b16 %v460, %v444
  %v621 = vpack.c.b16 %v461, %v445
  %v622 = vpack.c.b16 %v462, %v446
  %v623 = vpack.c.b16 %v463, %v447
  %v624 = vpack.c.b16 %v464, %v448
  %v625 = vpack.c.b16 %v465, %v449
  %v626 = vpack.c.b16 %v466, %v450
  %v627 = vpack.c.b16 %v467, %v451
  %v628 = vpack.c.b16 %v468, %v452
  %v629 = vpack.c.b16 %v485, %v469
  %v630 = vpack.c.b16 %v486, %v470
  %v631 = vpack.c.b16 %v487, %v471
  %v632 = vpack.c.b16 %v488, %v472
  %v633 = vpack.c.b16 %v489, %v473
  %v634 = vpack.c.b16 %v490, %v474
  %v635 = vpack.c.b16 %v491, %v475
  %v636 = vpack.c.b16 %v492, %v476
  %v637 = vpack.c.b16 %v493, %v477
  %v638 = vpack.c.b16 %v494, %v478
  %v639 = vpack.c.b16 %v495, %v479
  %v640 = vpack.c.b16 %v496, %v480
  %v641 = vpack.c.b16 %v497, %v481
  %v642 = vpack.c.b16 %v498, %v482
  %v643 = vpack.c.b16 %v499, %v483
  %v644 = vpack.c.b16 %v500, %v484
  %v645 = vpack.c.b16 %v517, %v501
  %v646 = vpack.c.b16 %v518, %v502
  %v647 = vpack.c.b16 %v519, %v503
  %v648 = vpack.c.b16 %v520, %v504
  %v649 = vpack.c.b16 %v521, %v505
  %v650 = vpack.c.b16 %v522, %v506
  %v651 = vpack.c.b16 %v523, %v507
  %v652 = vpack.c.b16 %v524, %v508
  %v653 = vpack.c.b16 %v525, %v509
  %v654 = vpack.c.b16 %v526, %v510
  %v655 = vpack.c.b16 %v527, %v511
  %v656 = vpack.c.b16 %v528, %v512
  %v657 = vpack.c.b16 %v529, %v513
  %v658 = vpack.c.b16 %v530, %v514
  %v659 = vpack.c.b16 %v531, %v515
  %v660 = vpack.c.b16 %v532, %v516
  %789 = vmatprep.subr.bf16.mxu0 %v534
  %790 = vmatpush1.bf16.msra.mxu0 %v533
  %791 = vmatprep.subr.bf16.mxu0 %v550
  %792 = vmatpush1.bf16.msra.mxu0 %v549
  %793 = vmatprep.subr.bf16.mxu0 %v566
  %794 = vmatpush1.bf16.msra.mxu0 %v565
  %795 = vmatprep.subr.bf16.mxu0 %v582
  %796 = vmatpush1.bf16.msra.mxu0 %v581
  %797 = vmatprep.subr.bf16.mxu0 %v598
  %798 = vmatpush1.bf16.msra.mxu0 %v597
  %799 = vmatprep.subr.bf16.mxu0 %v614
  %800 = vmatpush1.bf16.msra.mxu0 %v613
  %801 = vmatprep.subr.bf16.mxu0 %v630
  %802 = vmatpush1.bf16.msra.mxu0 %v629
  %803 = vmatprep.subr.bf16.mxu0 %v646
  %804 = vmatpush1.bf16.msra.mxu0 %v645
  %805 = vmatprep.subr.bf16.mxu0 0
  %806 = vmatpush1.bf16.msra.mxu0 0
  %807 = vmatprep.subr.bf16.mxu0 0
  %808 = vmatpush1.bf16.msra.mxu0 0
  %809 = vmatprep.subr.bf16.mxu0 0
  %810 = vmatpush1.bf16.msra.mxu0 0
  %811 = vmatprep.subr.bf16.mxu0 0
  %812 = vmatpush1.bf16.msra.mxu0 0
  %813 = vmatprep.subr.bf16.mxu0 0
  %814 = vmatpush1.bf16.msra.mxu0 0
  %815 = vmatprep.subr.bf16.mxu0 0
  %816 = vmatpush1.bf16.msra.mxu0 0
  %817 = vmatprep.subr.bf16.mxu0 0
  %818 = vmatpush1.bf16.msra.mxu0 0
  %819 = vmatprep.subr.bf16.mxu0 0
  %820 = vmatpush1.bf16.msra.mxu0 0
  %821 = vmatprep.mubr.bf16.mxu0 0
  %822 = vmatmul.mubr.bf16.gmra.mrb[0].mxu0 %v20
  %v823 = vpop.f32.mrb[0].mxu0
  %v824 = vadd.f32 0.0, %v823
  %v825 = vpop.f32.mrb[0].mxu0
  %v826 = vadd.f32 0.0, %v825
  %v827 = vpop.f32.mrb[0].mxu0
  %v828 = vadd.f32 0.0, %v827
  %v829 = vpop.f32.mrb[0].mxu0
  %v830 = vadd.f32 0.0, %v829
  %831 = vdwg.mxu0
  %832 = vmatprep.subr.bf16.mxu0 %v536
  %833 = vmatpush1.bf16.msra.mxu0 %v535
  %834 = vmatprep.subr.bf16.mxu0 %v552
  %835 = vmatpush1.bf16.msra.mxu0 %v551
  %836 = vmatprep.subr.bf16.mxu0 %v568
  %837 = vmatpush1.bf16.msra.mxu0 %v567
  %838 = vmatprep.subr.bf16.mxu0 %v584
  %839 = vmatpush1.bf16.msra.mxu0 %v583
  %840 = vmatprep.subr.bf16.mxu0 %v600
  %841 = vmatpush1.bf16.msra.mxu0 %v599
  %842 = vmatprep.subr.bf16.mxu0 %v616
  %843 = vmatpush1.bf16.msra.mxu0 %v615
  %844 = vmatprep.subr.bf16.mxu0 %v632
  %845 = vmatpush1.bf16.msra.mxu0 %v631
  %846 = vmatprep.subr.bf16.mxu0 %v648
  %847 = vmatpush1.bf16.msra.mxu0 %v647
  %848 = vmatprep.subr.bf16.mxu0 0
  %849 = vmatpush1.bf16.msra.mxu0 0
  %850 = vmatprep.subr.bf16.mxu0 0
  %851 = vmatpush1.bf16.msra.mxu0 0
  %852 = vmatprep.subr.bf16.mxu0 0
  %853 = vmatpush1.bf16.msra.mxu0 0
  %854 = vmatprep.subr.bf16.mxu0 0
  %855 = vmatpush1.bf16.msra.mxu0 0
  %856 = vmatprep.subr.bf16.mxu0 0
  %857 = vmatpush1.bf16.msra.mxu0 0
  %858 = vmatprep.subr.bf16.mxu0 0
  %859 = vmatpush1.bf16.msra.mxu0 0
  %860 = vmatprep.subr.bf16.mxu0 0
  %861 = vmatpush1.bf16.msra.mxu0 0
  %862 = vmatprep.subr.bf16.mxu0 0
  %863 = vmatpush1.bf16.msra.mxu0 0
  %864 = vmatprep.mubr.bf16.mxu0 0
  %865 = vmatmul.mubr.bf16.gmra.mrb[0].mxu0 %v20
  %v866 = vpop.f32.mrb[0].mxu0
  %v867 = vadd.f32 0.0, %v866
  %v868 = vpop.f32.mrb[0].mxu0
  %v869 = vadd.f32 0.0, %v868
  %v870 = vpop.f32.mrb[0].mxu0
  %v871 = vadd.f32 0.0, %v870
  %v872 = vpop.f32.mrb[0].mxu0
  %v873 = vadd.f32 0.0, %v872
  %874 = vdwg.mxu0
  %875 = vmatprep.subr.bf16.mxu0 %v538
  %876 = vmatpush1.bf16.msra.mxu0 %v537
  %877 = vmatprep.subr.bf16.mxu0 %v554
  %878 = vmatpush1.bf16.msra.mxu0 %v553
  %879 = vmatprep.subr.bf16.mxu0 %v570
  %880 = vmatpush1.bf16.msra.mxu0 %v569
  %881 = vmatprep.subr.bf16.mxu0 %v586
  %882 = vmatpush1.bf16.msra.mxu0 %v585
  %883 = vmatprep.subr.bf16.mxu0 %v602
  %884 = vmatpush1.bf16.msra.mxu0 %v601
  %885 = vmatprep.subr.bf16.mxu0 %v618
  %886 = vmatpush1.bf16.msra.mxu0 %v617
  %887 = vmatprep.subr.bf16.mxu0 %v634
  %888 = vmatpush1.bf16.msra.mxu0 %v633
  %889 = vmatprep.subr.bf16.mxu0 %v650
  %890 = vmatpush1.bf16.msra.mxu0 %v649
  %891 = vmatprep.subr.bf16.mxu0 0
  %892 = vmatpush1.bf16.msra.mxu0 0
  %893 = vmatprep.subr.bf16.mxu0 0
  %894 = vmatpush1.bf16.msra.mxu0 0
  %895 = vmatprep.subr.bf16.mxu0 0
  %896 = vmatpush1.bf16.msra.mxu0 0
  %897 = vmatprep.subr.bf16.mxu0 0
  %898 = vmatpush1.bf16.msra.mxu0 0
  %899 = vmatprep.subr.bf16.mxu0 0
  %900 = vmatpush1.bf16.msra.mxu0 0
  %901 = vmatprep.subr.bf16.mxu0 0
  %902 = vmatpush1.bf16.msra.mxu0 0
  %903 = vmatprep.subr.bf16.mxu0 0
  %904 = vmatpush1.bf16.msra.mxu0 0
  %905 = vmatprep.subr.bf16.mxu0 0
  %906 = vmatpush1.bf16.msra.mxu0 0
  %907 = vmatprep.mubr.bf16.mxu0 0
  %908 = vmatmul.mubr.bf16.gmra.mrb[0].mxu0 %v20
  %v909 = vpop.f32.mrb[0].mxu0
  %v910 = vadd.f32 0.0, %v909
  %v911 = vpop.f32.mrb[0].mxu0
  %v912 = vadd.f32 0.0, %v911
  %v913 = vpop.f32.mrb[0].mxu0
  %v914 = vadd.f32 0.0, %v913
  %v915 = vpop.f32.mrb[0].mxu0
  %v916 = vadd.f32 0.0, %v915
  %917 = vdwg.mxu0
  %918 = vmatprep.subr.bf16.mxu0 %v540
  %919 = vmatpush1.bf16.msra.mxu0 %v539
  %920 = vmatprep.subr.bf16.mxu0 %v556
  %921 = vmatpush1.bf16.msra.mxu0 %v555
  %922 = vmatprep.subr.bf16.mxu0 %v572
  %923 = vmatpush1.bf16.msra.mxu0 %v571
  %924 = vmatprep.subr.bf16.mxu0 %v588
  %925 = vmatpush1.bf16.msra.mxu0 %v587
  %926 = vmatprep.subr.bf16.mxu0 %v604
  %927 = vmatpush1.bf16.msra.mxu0 %v603
  %928 = vmatprep.subr.bf16.mxu0 %v620
  %929 = vmatpush1.bf16.msra.mxu0 %v619
  %930 = vmatprep.subr.bf16.mxu0 %v636
  %931 = vmatpush1.bf16.msra.mxu0 %v635
  %932 = vmatprep.subr.bf16.mxu0 %v652
  %933 = vmatpush1.bf16.msra.mxu0 %v651
  %934 = vmatprep.subr.bf16.mxu0 0
  %935 = vmatpush1.bf16.msra.mxu0 0
  %936 = vmatprep.subr.bf16.mxu0 0
  %937 = vmatpush1.bf16.msra.mxu0 0
  %938 = vmatprep.subr.bf16.mxu0 0
  %939 = vmatpush1.bf16.msra.mxu0 0
  %940 = vmatprep.subr.bf16.mxu0 0
  %941 = vmatpush1.bf16.msra.mxu0 0
  %942 = vmatprep.subr.bf16.mxu0 0
  %943 = vmatpush1.bf16.msra.mxu0 0
  %944 = vmatprep.subr.bf16.mxu0 0
  %945 = vmatpush1.bf16.msra.mxu0 0
  %946 = vmatprep.subr.bf16.mxu0 0
  %947 = vmatpush1.bf16.msra.mxu0 0
  %948 = vmatprep.subr.bf16.mxu0 0
  %949 = vmatpush1.bf16.msra.mxu0 0
  %950 = vmatprep.mubr.bf16.mxu0 0
  %951 = vmatmul.mubr.bf16.gmra.mrb[0].mxu0 %v20
  %v952 = vpop.f32.mrb[0].mxu0
  %v953 = vadd.f32 0.0, %v952
  %v954 = vpop.f32.mrb[0].mxu0
  %v955 = vadd.f32 0.0, %v954
  %v956 = vpop.f32.mrb[0].mxu0
  %v957 = vadd.f32 0.0, %v956
  %v958 = vpop.f32.mrb[0].mxu0
  %v959 = vadd.f32 0.0, %v958
  %960 = vdwg.mxu0
  %961 = vmatprep.subr.bf16.mxu0 %v542
  %962 = vmatpush1.bf16.msra.mxu0 %v541
  %963 = vmatprep.subr.bf16.mxu0 %v558
  %964 = vmatpush1.bf16.msra.mxu0 %v557
  %965 = vmatprep.subr.bf16.mxu0 %v574
  %966 = vmatpush1.bf16.msra.mxu0 %v573
  %967 = vmatprep.subr.bf16.mxu0 %v590
  %968 = vmatpush1.bf16.msra.mxu0 %v589
  %969 = vmatprep.subr.bf16.mxu0 %v606
  %970 = vmatpush1.bf16.msra.mxu0 %v605
  %971 = vmatprep.subr.bf16.mxu0 %v622
  %972 = vmatpush1.bf16.msra.mxu0 %v621
  %973 = vmatprep.subr.bf16.mxu0 %v638
  %974 = vmatpush1.bf16.msra.mxu0 %v637
  %975 = vmatprep.subr.bf16.mxu0 %v654
  %976 = vmatpush1.bf16.msra.mxu0 %v653
  %977 = vmatprep.subr.bf16.mxu0 0
  %978 = vmatpush1.bf16.msra.mxu0 0
  %979 = vmatprep.subr.bf16.mxu0 0
  %980 = vmatpush1.bf16.msra.mxu0 0
  %981 = vmatprep.subr.bf16.mxu0 0
  %982 = vmatpush1.bf16.msra.mxu0 0
  %983 = vmatprep.subr.bf16.mxu0 0
  %984 = vmatpush1.bf16.msra.mxu0 0
  %985 = vmatprep.subr.bf16.mxu0 0
  %986 = vmatpush1.bf16.msra.mxu0 0
  %987 = vmatprep.subr.bf16.mxu0 0
  %988 = vmatpush1.bf16.msra.mxu0 0
  %989 = vmatprep.subr.bf16.mxu0 0
  %990 = vmatpush1.bf16.msra.mxu0 0
  %991 = vmatprep.subr.bf16.mxu0 0
  %992 = vmatpush1.bf16.msra.mxu0 0
  %993 = vmatprep.mubr.bf16.mxu0 0
  %994 = vmatmul.mubr.bf16.gmra.mrb[0].mxu0 %v20
  %v995 = vpop.f32.mrb[0].mxu0
  %v996 = vadd.f32 0.0, %v995
  %v997 = vpop.f32.mrb[0].mxu0
  %v998 = vadd.f32 0.0, %v997
  %v999 = vpop.f32.mrb[0].mxu0
  %v1000 = vadd.f32 0.0, %v999
  %v1001 = vpop.f32.mrb[0].mxu0
  %v1002 = vadd.f32 0.0, %v1001
  %1003 = vdwg.mxu0
  %1004 = vmatprep.subr.bf16.mxu0 %v544
  %1005 = vmatpush1.bf16.msra.mxu0 %v543
  %1006 = vmatprep.subr.bf16.mxu0 %v560
  %1007 = vmatpush1.bf16.msra.mxu0 %v559
  %1008 = vmatprep.subr.bf16.mxu0 %v576
  %1009 = vmatpush1.bf16.msra.mxu0 %v575
  %1010 = vmatprep.subr.bf16.mxu0 %v592
  %1011 = vmatpush1.bf16.msra.mxu0 %v591
  %1012 = vmatprep.subr.bf16.mxu0 %v608
  %1013 = vmatpush1.bf16.msra.mxu0 %v607
  %1014 = vmatprep.subr.bf16.mxu0 %v624
  %1015 = vmatpush1.bf16.msra.mxu0 %v623
  %1016 = vmatprep.subr.bf16.mxu0 %v640
  %1017 = vmatpush1.bf16.msra.mxu0 %v639
  %1018 = vmatprep.subr.bf16.mxu0 %v656
  %1019 = vmatpush1.bf16.msra.mxu0 %v655
  %1020 = vmatprep.subr.bf16.mxu0 0
  %1021 = vmatpush1.bf16.msra.mxu0 0
  %1022 = vmatprep.subr.bf16.mxu0 0
  %1023 = vmatpush1.bf16.msra.mxu0 0
  %1024 = vmatprep.subr.bf16.mxu0 0
  %1025 = vmatpush1.bf16.msra.mxu0 0
  %1026 = vmatprep.subr.bf16.mxu0 0
  %1027 = vmatpush1.bf16.msra.mxu0 0
  %1028 = vmatprep.subr.bf16.mxu0 0
  %1029 = vmatpush1.bf16.msra.mxu0 0
  %1030 = vmatprep.subr.bf16.mxu0 0
  %1031 = vmatpush1.bf16.msra.mxu0 0
  %1032 = vmatprep.subr.bf16.mxu0 0
  %1033 = vmatpush1.bf16.msra.mxu0 0
  %1034 = vmatprep.subr.bf16.mxu0 0
  %1035 = vmatpush1.bf16.msra.mxu0 0
  %1036 = vmatprep.mubr.bf16.mxu0 0
  %1037 = vmatmul.mubr.bf16.gmra.mrb[0].mxu0 %v20
  %v1038 = vpop.f32.mrb[0].mxu0
  %v1039 = vadd.f32 0.0, %v1038
  %v1040 = vpop.f32.mrb[0].mxu0
  %v1041 = vadd.f32 0.0, %v1040
  %v1042 = vpop.f32.mrb[0].mxu0
  %v1043 = vadd.f32 0.0, %v1042
  %v1044 = vpop.f32.mrb[0].mxu0
  %v1045 = vadd.f32 0.0, %v1044
  %1046 = vdwg.mxu0
  %1047 = vmatprep.subr.bf16.mxu0 %v546
  %1048 = vmatpush1.bf16.msra.mxu0 %v545
  %1049 = vmatprep.subr.bf16.mxu0 %v562
  %1050 = vmatpush1.bf16.msra.mxu0 %v561
  %1051 = vmatprep.subr.bf16.mxu0 %v578
  %1052 = vmatpush1.bf16.msra.mxu0 %v577
  %1053 = vmatprep.subr.bf16.mxu0 %v594
  %1054 = vmatpush1.bf16.msra.mxu0 %v593
  %1055 = vmatprep.subr.bf16.mxu0 %v610
  %1056 = vmatpush1.bf16.msra.mxu0 %v609
  %1057 = vmatprep.subr.bf16.mxu0 %v626
  %1058 = vmatpush1.bf16.msra.mxu0 %v625
  %1059 = vmatprep.subr.bf16.mxu0 %v642
  %1060 = vmatpush1.bf16.msra.mxu0 %v641
  %1061 = vmatprep.subr.bf16.mxu0 %v658
  %1062 = vmatpush1.bf16.msra.mxu0 %v657
  %1063 = vmatprep.subr.bf16.mxu0 0
  %1064 = vmatpush1.bf16.msra.mxu0 0
  %1065 = vmatprep.subr.bf16.mxu0 0
  %1066 = vmatpush1.bf16.msra.mxu0 0
  %1067 = vmatprep.subr.bf16.mxu0 0
  %1068 = vmatpush1.bf16.msra.mxu0 0
  %1069 = vmatprep.subr.bf16.mxu0 0
  %1070 = vmatpush1.bf16.msra.mxu0 0
  %1071 = vmatprep.subr.bf16.mxu0 0
  %1072 = vmatpush1.bf16.msra.mxu0 0
  %1073 = vmatprep.subr.bf16.mxu0 0
  %1074 = vmatpush1.bf16.msra.mxu0 0
  %1075 = vmatprep.subr.bf16.mxu0 0
  %1076 = vmatpush1.bf16.msra.mxu0 0
  %1077 = vmatprep.subr.bf16.mxu0 0
  %1078 = vmatpush1.bf16.msra.mxu0 0
  %1079 = vmatprep.mubr.bf16.mxu0 0
  %1080 = vmatmul.mubr.bf16.gmra.mrb[0].mxu0 %v20
  %v1081 = vpop.f32.mrb[0].mxu0
  %v1082 = vadd.f32 0.0, %v1081
  %v1083 = vpop.f32.mrb[0].mxu0
  %v1084 = vadd.f32 0.0, %v1083
  %v1085 = vpop.f32.mrb[0].mxu0
  %v1086 = vadd.f32 0.0, %v1085
  %v1087 = vpop.f32.mrb[0].mxu0
  %v1088 = vadd.f32 0.0, %v1087
  %1089 = vdwg.mxu0
  %1090 = vmatprep.subr.bf16.mxu0 %v548
  %1091 = vmatpush1.bf16.msra.mxu0 %v547
  %1092 = vmatprep.subr.bf16.mxu0 %v564
  %1093 = vmatpush1.bf16.msra.mxu0 %v563
  %1094 = vmatprep.subr.bf16.mxu0 %v580
  %1095 = vmatpush1.bf16.msra.mxu0 %v579
  %1096 = vmatprep.subr.bf16.mxu0 %v596
  %1097 = vmatpush1.bf16.msra.mxu0 %v595
  %1098 = vmatprep.subr.bf16.mxu0 %v612
  %1099 = vmatpush1.bf16.msra.mxu0 %v611
  %1100 = vmatprep.subr.bf16.mxu0 %v628
  %1101 = vmatpush1.bf16.msra.mxu0 %v627
  %1102 = vmatprep.subr.bf16.mxu0 %v644
  %1103 = vmatpush1.bf16.msra.mxu0 %v643
  %1104 = vmatprep.subr.bf16.mxu0 %v660
  %1105 = vmatpush1.bf16.msra.mxu0 %v659
  %1106 = vmatprep.subr.bf16.mxu0 0
  %1107 = vmatpush1.bf16.msra.mxu0 0
  %1108 = vmatprep.subr.bf16.mxu0 0
  %1109 = vmatpush1.bf16.msra.mxu0 0
  %1110 = vmatprep.subr.bf16.mxu0 0
  %1111 = vmatpush1.bf16.msra.mxu0 0
  %1112 = vmatprep.subr.bf16.mxu0 0
  %1113 = vmatpush1.bf16.msra.mxu0 0
  %1114 = vmatprep.subr.bf16.mxu0 0
  %1115 = vmatpush1.bf16.msra.mxu0 0
  %1116 = vmatprep.subr.bf16.mxu0 0
  %1117 = vmatpush1.bf16.msra.mxu0 0
  %1118 = vmatprep.subr.bf16.mxu0 0
  %1119 = vmatpush1.bf16.msra.mxu0 0
  %1120 = vmatprep.subr.bf16.mxu0 0
  %1121 = vmatpush1.bf16.msra.mxu0 0
  %1122 = vmatprep.mubr.bf16.mxu0 0
  %1123 = vmatmul.mubr.bf16.gmra.mrb[0].mxu0 %v20
  %v1124 = vpop.f32.mrb[0].mxu0
  %v1125 = vadd.f32 0.0, %v1124
  %v1126 = vpop.f32.mrb[0].mxu0
  %v1127 = vadd.f32 0.0, %v1126
  %v1128 = vpop.f32.mrb[0].mxu0
  %v1129 = vadd.f32 0.0, %v1128
  %v1130 = vpop.f32.mrb[0].mxu0
  %v1131 = vadd.f32 0.0, %v1130
  %1132 = vdwg.mxu0
  %v1133 = vadd.f32 %v824, %v826
  %v1134 = vadd.f32 %v1133, %v867
  %v1135 = vadd.f32 %v1134, %v869
  %v1136 = vadd.f32 %v1135, %v910
  %v1137 = vadd.f32 %v1136, %v912
  %v1138 = vadd.f32 %v1137, %v953
  %v1139 = vadd.f32 %v1138, %v955
  %v1140 = vadd.f32 %v1139, %v996
  %v1141 = vadd.f32 %v1140, %v998
  %v1142 = vadd.f32 %v1141, %v1039
  %v1143 = vadd.f32 %v1142, %v1041
  %v1144 = vadd.f32 %v1143, %v1082
  %v1145 = vadd.f32 %v1144, %v1084
  %v1146 = vadd.f32 %v1145, %v1125
  %v1147 = vadd.f32 %v1146, %v1127
  %1148 = vadd.xlane.f32.xlu0 %v1147
  %v1149 = vpop.xlane.xlu0 %1148
  %v1150 = vadd.f32 %v828, %v830
  %v1151 = vadd.f32 %v1150, %v871
  %v1152 = vadd.f32 %v1151, %v873
  %v1153 = vadd.f32 %v1152, %v914
  %v1154 = vadd.f32 %v1153, %v916
  %v1155 = vadd.f32 %v1154, %v957
  %v1156 = vadd.f32 %v1155, %v959
  %v1157 = vadd.f32 %v1156, %v1000
  %v1158 = vadd.f32 %v1157, %v1002
  %v1159 = vadd.f32 %v1158, %v1043
  %v1160 = vadd.f32 %v1159, %v1045
  %v1161 = vadd.f32 %v1160, %v1086
  %v1162 = vadd.f32 %v1161, %v1088
  %v1163 = vadd.f32 %v1162, %v1129
  %v1164 = vadd.f32 %v1163, %v1131
  %1165 = vadd.xlane.f32.xlu0 %v1164
  %v1166 = vpop.xlane.xlu0 %1165
  %v1167 = vmul.f32 %v1149, 0.00048828125
  %v1168 = vmul.f32 %v1166, 0.00048828125
  %v1169 = vmul.f32 %v824, %v824
  %v1170 = vmul.f32 %v826, %v826
  %v1171 = vmul.f32 %v867, %v867
  %v1172 = vmul.f32 %v869, %v869
  %v1173 = vmul.f32 %v910, %v910
  %v1174 = vmul.f32 %v912, %v912
  %v1175 = vmul.f32 %v953, %v953
  %v1176 = vmul.f32 %v955, %v955
  %v1177 = vmul.f32 %v996, %v996
  %v1178 = vmul.f32 %v998, %v998
  %v1179 = vmul.f32 %v1039, %v1039
  %v1180 = vmul.f32 %v1041, %v1041
  %v1181 = vmul.f32 %v1082, %v1082
  %v1182 = vmul.f32 %v1084, %v1084
  %v1183 = vmul.f32 %v1125, %v1125
  %v1184 = vmul.f32 %v1127, %v1127
  %v1185 = vmul.f32 %v828, %v828
  %v1186 = vmul.f32 %v830, %v830
  %v1187 = vmul.f32 %v871, %v871
  %v1188 = vmul.f32 %v873, %v873
  %v1189 = vmul.f32 %v914, %v914
  %v1190 = vmul.f32 %v916, %v916
  %v1191 = vmul.f32 %v957, %v957
  %v1192 = vmul.f32 %v959, %v959
  %v1193 = vmul.f32 %v1000, %v1000
  %v1194 = vmul.f32 %v1002, %v1002
  %v1195 = vmul.f32 %v1043, %v1043
  %v1196 = vmul.f32 %v1045, %v1045
  %v1197 = vmul.f32 %v1086, %v1086
  %v1198 = vmul.f32 %v1088, %v1088
  %v1199 = vmul.f32 %v1129, %v1129
  %v1200 = vmul.f32 %v1131, %v1131
  %v1201 = vadd.f32 %v1169, %v1170
  %v1202 = vadd.f32 %v1201, %v1171
  %v1203 = vadd.f32 %v1202, %v1172
  %v1204 = vadd.f32 %v1203, %v1173
  %v1205 = vadd.f32 %v1204, %v1174
  %v1206 = vadd.f32 %v1205, %v1175
  %v1207 = vadd.f32 %v1206, %v1176
  %v1208 = vadd.f32 %v1207, %v1177
  %v1209 = vadd.f32 %v1208, %v1178
  %v1210 = vadd.f32 %v1209, %v1179
  %v1211 = vadd.f32 %v1210, %v1180
  %v1212 = vadd.f32 %v1211, %v1181
  %v1213 = vadd.f32 %v1212, %v1182
  %v1214 = vadd.f32 %v1213, %v1183
  %v1215 = vadd.f32 %v1214, %v1184
  %1216 = vadd.xlane.f32.xlu0 %v1215
  %v1217 = vpop.xlane.xlu0 %1216
  %v1218 = vadd.f32 %v1185, %v1186
  %v1219 = vadd.f32 %v1218, %v1187
  %v1220 = vadd.f32 %v1219, %v1188
  %v1221 = vadd.f32 %v1220, %v1189
  %v1222 = vadd.f32 %v1221, %v1190
  %v1223 = vadd.f32 %v1222, %v1191
  %v1224 = vadd.f32 %v1223, %v1192
  %v1225 = vadd.f32 %v1224, %v1193
  %v1226 = vadd.f32 %v1225, %v1194
  %v1227 = vadd.f32 %v1226, %v1195
  %v1228 = vadd.f32 %v1227, %v1196
  %v1229 = vadd.f32 %v1228, %v1197
  %v1230 = vadd.f32 %v1229, %v1198
  %v1231 = vadd.f32 %v1230, %v1199
  %v1232 = vadd.f32 %v1231, %v1200
  %1233 = vadd.xlane.f32.xlu0 %v1232
  %v1234 = vpop.xlane.xlu0 %1233
  %v1235 = vmul.f32 %v1217, 0.00048828125
  %v1236 = vmul.f32 %v1234, 0.00048828125
  %v1237 = vmul.f32 %v1167, %v1167
  %v1238 = vmul.f32 %v1168, %v1168
  %v1239 = vsub.f32 %v1235, %v1237
  %v1240 = vsub.f32 %v1236, %v1238
  %v1241 = vmax.f32 %v1239, 0.0
  %v1242 = vmax.f32 %v1240, 0.0
  %v1243 = vld [vmem:[%s2] sm:$0xff]
  %v1244 = vld [vmem:[%s2 + $0x8] sm:$0xff]
  %v1245 = vadd.f32 %v1241, 1e-05
  %v1246 = vadd.f32 %v1242, 1e-05
  %v1247 = vrsqrt.pop %v1245
  %v1248 = vrsqrt.pop %v1246
  %v1249 = vmul.f32 %v1243, %v1247
  %v1250 = vmul.f32 %v1244, %v1248
  %v1251 = vld [vmem:[%s3] sm:$0xff]
  %v1252 = vld [vmem:[%s3 + $0x8] sm:$0xff]
  %v1253 = vmul.f32 %v1167, %v1249
  %v1254 = vmul.f32 %v1168, %v1250
  %v1255 = vsub.f32 %v1251, %v1253
  %v1256 = vsub.f32 %v1252, %v1254
  %1258 = vset.pattern.permute.xlu0 0
  %1259 = vperm.xlu0 %1258, %v1249
  %v1260 = vpop.permute.xlu0 %1259
  %1263 = vset.pattern.permute.xlu0 0
  %1264 = vperm.xlu0 %1263, %v1250
  %v1265 = vpop.permute.xlu0 %1264
  %v1267 = vmul.f32 %v824, %v1260
  %v1268 = vmul.f32 %v826, %v1260
  %v1269 = vmul.f32 %v867, %v1260
  %v1270 = vmul.f32 %v869, %v1260
  %v1271 = vmul.f32 %v910, %v1260
  %v1272 = vmul.f32 %v912, %v1260
  %v1273 = vmul.f32 %v953, %v1260
  %v1274 = vmul.f32 %v955, %v1260
  %v1275 = vmul.f32 %v996, %v1260
  %v1276 = vmul.f32 %v998, %v1260
  %v1277 = vmul.f32 %v1039, %v1260
  %v1278 = vmul.f32 %v1041, %v1260
  %v1279 = vmul.f32 %v1082, %v1260
  %v1280 = vmul.f32 %v1084, %v1260
  %v1281 = vmul.f32 %v1125, %v1260
  %v1282 = vmul.f32 %v1127, %v1260
  %v1283 = vmul.f32 %v828, %v1265
  %v1284 = vmul.f32 %v830, %v1265
  %v1285 = vmul.f32 %v871, %v1265
  %v1286 = vmul.f32 %v873, %v1265
  %v1287 = vmul.f32 %v914, %v1265
  %v1288 = vmul.f32 %v916, %v1265
  %v1289 = vmul.f32 %v957, %v1265
  %v1290 = vmul.f32 %v959, %v1265
  %v1291 = vmul.f32 %v1000, %v1265
  %v1292 = vmul.f32 %v1002, %v1265
  %v1293 = vmul.f32 %v1043, %v1265
  %v1294 = vmul.f32 %v1045, %v1265
  %v1295 = vmul.f32 %v1086, %v1265
  %v1296 = vmul.f32 %v1088, %v1265
  %v1297 = vmul.f32 %v1129, %v1265
  %v1298 = vmul.f32 %v1131, %v1265
  %1300 = vset.pattern.permute.xlu0 0
  %1301 = vperm.xlu0 %1300, %v1255
  %v1302 = vpop.permute.xlu0 %1301
  %1305 = vset.pattern.permute.xlu0 0
  %1306 = vperm.xlu0 %1305, %v1256
  %v1307 = vpop.permute.xlu0 %1306
  %v1309 = vadd.f32 %v1267, %v1302
  %v1310 = vadd.f32 %v1268, %v1302
  %v1311 = vadd.f32 %v1269, %v1302
  %v1312 = vadd.f32 %v1270, %v1302
  %v1313 = vadd.f32 %v1271, %v1302
  %v1314 = vadd.f32 %v1272, %v1302
  %v1315 = vadd.f32 %v1273, %v1302
  %v1316 = vadd.f32 %v1274, %v1302
  %v1317 = vadd.f32 %v1275, %v1302
  %v1318 = vadd.f32 %v1276, %v1302
  %v1319 = vadd.f32 %v1277, %v1302
  %v1320 = vadd.f32 %v1278, %v1302
  %v1321 = vadd.f32 %v1279, %v1302
  %v1322 = vadd.f32 %v1280, %v1302
  %v1323 = vadd.f32 %v1281, %v1302
  %v1324 = vadd.f32 %v1282, %v1302
  %v1325 = vadd.f32 %v1283, %v1307
  %v1326 = vadd.f32 %v1284, %v1307
  %v1327 = vadd.f32 %v1285, %v1307
  %v1328 = vadd.f32 %v1286, %v1307
  %v1329 = vadd.f32 %v1287, %v1307
  %v1330 = vadd.f32 %v1288, %v1307
  %v1331 = vadd.f32 %v1289, %v1307
  %v1332 = vadd.f32 %v1290, %v1307
  %v1333 = vadd.f32 %v1291, %v1307
  %v1334 = vadd.f32 %v1292, %v1307
  %v1335 = vadd.f32 %v1293, %v1307
  %v1336 = vadd.f32 %v1294, %v1307
  %v1337 = vadd.f32 %v1295, %v1307
  %v1338 = vadd.f32 %v1296, %v1307
  %v1339 = vadd.f32 %v1297, %v1307
  %v1340 = vadd.f32 %v1298, %v1307
  %vm1341 = vcmp.gt.f32.partialorder %v1309, 0.0
  %vm1342 = vcmp.gt.f32.partialorder %v1310, 0.0
  %vm1343 = vcmp.gt.f32.partialorder %v1311, 0.0
  %vm1344 = vcmp.gt.f32.partialorder %v1312, 0.0
  %vm1345 = vcmp.gt.f32.partialorder %v1313, 0.0
  %vm1346 = vcmp.gt.f32.partialorder %v1314, 0.0
  %vm1347 = vcmp.gt.f32.partialorder %v1315, 0.0
  %vm1348 = vcmp.gt.f32.partialorder %v1316, 0.0
  %vm1349 = vcmp.gt.f32.partialorder %v1317, 0.0
  %vm1350 = vcmp.gt.f32.partialorder %v1318, 0.0
  %vm1351 = vcmp.gt.f32.partialorder %v1319, 0.0
  %vm1352 = vcmp.gt.f32.partialorder %v1320, 0.0
  %vm1353 = vcmp.gt.f32.partialorder %v1321, 0.0
  %vm1354 = vcmp.gt.f32.partialorder %v1322, 0.0
  %vm1355 = vcmp.gt.f32.partialorder %v1323, 0.0
  %vm1356 = vcmp.gt.f32.partialorder %v1324, 0.0
  %vm1357 = vcmp.gt.f32.partialorder %v1325, 0.0
  %vm1358 = vcmp.gt.f32.partialorder %v1326, 0.0
  %vm1359 = vcmp.gt.f32.partialorder %v1327, 0.0
  %vm1360 = vcmp.gt.f32.partialorder %v1328, 0.0
  %vm1361 = vcmp.gt.f32.partialorder %v1329, 0.0
  %vm1362 = vcmp.gt.f32.partialorder %v1330, 0.0
  %vm1363 = vcmp.gt.f32.partialorder %v1331, 0.0
  %vm1364 = vcmp.gt.f32.partialorder %v1332, 0.0
  %vm1365 = vcmp.gt.f32.partialorder %v1333, 0.0
  %vm1366 = vcmp.gt.f32.partialorder %v1334, 0.0
  %vm1367 = vcmp.gt.f32.partialorder %v1335, 0.0
  %vm1368 = vcmp.gt.f32.partialorder %v1336, 0.0
  %vm1369 = vcmp.gt.f32.partialorder %v1337, 0.0
  %vm1370 = vcmp.gt.f32.partialorder %v1338, 0.0
  %vm1371 = vcmp.gt.f32.partialorder %v1339, 0.0
  %vm1372 = vcmp.gt.f32.partialorder %v1340, 0.0
  %v1373 = vmul.f32 %v1309, 0.2
  %v1374 = vmul.f32 %v1310, 0.2
  %v1375 = vmul.f32 %v1311, 0.2
  %v1376 = vmul.f32 %v1312, 0.2
  %v1377 = vmul.f32 %v1313, 0.2
  %v1378 = vmul.f32 %v1314, 0.2
  %v1379 = vmul.f32 %v1315, 0.2
  %v1380 = vmul.f32 %v1316, 0.2
  %v1381 = vmul.f32 %v1317, 0.2
  %v1382 = vmul.f32 %v1318, 0.2
  %v1383 = vmul.f32 %v1319, 0.2
  %v1384 = vmul.f32 %v1320, 0.2
  %v1385 = vmul.f32 %v1321, 0.2
  %v1386 = vmul.f32 %v1322, 0.2
  %v1387 = vmul.f32 %v1323, 0.2
  %v1388 = vmul.f32 %v1324, 0.2
  %v1389 = vmul.f32 %v1325, 0.2
  %v1390 = vmul.f32 %v1326, 0.2
  %v1391 = vmul.f32 %v1327, 0.2
  %v1392 = vmul.f32 %v1328, 0.2
  %v1393 = vmul.f32 %v1329, 0.2
  %v1394 = vmul.f32 %v1330, 0.2
  %v1395 = vmul.f32 %v1331, 0.2
  %v1396 = vmul.f32 %v1332, 0.2
  %v1397 = vmul.f32 %v1333, 0.2
  %v1398 = vmul.f32 %v1334, 0.2
  %v1399 = vmul.f32 %v1335, 0.2
  %v1400 = vmul.f32 %v1336, 0.2
  %v1401 = vmul.f32 %v1337, 0.2
  %v1402 = vmul.f32 %v1338, 0.2
  %v1403 = vmul.f32 %v1339, 0.2
  %v1404 = vmul.f32 %v1340, 0.2
  %v1405 = vsel %vm1341, %v1309, %v1373
  %v1406 = vsel %vm1342, %v1310, %v1374
  %v1407 = vsel %vm1343, %v1311, %v1375
  %v1408 = vsel %vm1344, %v1312, %v1376
  %v1409 = vsel %vm1345, %v1313, %v1377
  %v1410 = vsel %vm1346, %v1314, %v1378
  %v1411 = vsel %vm1347, %v1315, %v1379
  %v1412 = vsel %vm1348, %v1316, %v1380
  %v1413 = vsel %vm1349, %v1317, %v1381
  %v1414 = vsel %vm1350, %v1318, %v1382
  %v1415 = vsel %vm1351, %v1319, %v1383
  %v1416 = vsel %vm1352, %v1320, %v1384
  %v1417 = vsel %vm1353, %v1321, %v1385
  %v1418 = vsel %vm1354, %v1322, %v1386
  %v1419 = vsel %vm1355, %v1323, %v1387
  %v1420 = vsel %vm1356, %v1324, %v1388
  %v1421 = vsel %vm1357, %v1325, %v1389
  %v1422 = vsel %vm1358, %v1326, %v1390
  %v1423 = vsel %vm1359, %v1327, %v1391
  %v1424 = vsel %vm1360, %v1328, %v1392
  %v1425 = vsel %vm1361, %v1329, %v1393
  %v1426 = vsel %vm1362, %v1330, %v1394
  %v1427 = vsel %vm1363, %v1331, %v1395
  %v1428 = vsel %vm1364, %v1332, %v1396
  %v1429 = vsel %vm1365, %v1333, %v1397
  %v1430 = vsel %vm1366, %v1334, %v1398
  %v1431 = vsel %vm1367, %v1335, %v1399
  %v1432 = vsel %vm1368, %v1336, %v1400
  %v1433 = vsel %vm1369, %v1337, %v1401
  %v1434 = vsel %vm1370, %v1338, %v1402
  %v1435 = vsel %vm1371, %v1339, %v1403
  %v1436 = vsel %vm1372, %v1340, %v1404
  %v1437 = vpack.c.bf16 %v1421, %v1405
  %v1438 = vpack.c.bf16 %v1422, %v1406
  %v1439 = vpack.c.bf16 %v1423, %v1407
  %v1440 = vpack.c.bf16 %v1424, %v1408
  %v1441 = vpack.c.bf16 %v1425, %v1409
  %v1442 = vpack.c.bf16 %v1426, %v1410
  %v1443 = vpack.c.bf16 %v1427, %v1411
  %v1444 = vpack.c.bf16 %v1428, %v1412
  %v1445 = vpack.c.bf16 %v1429, %v1413
  %v1446 = vpack.c.bf16 %v1430, %v1414
  %v1447 = vpack.c.bf16 %v1431, %v1415
  %v1448 = vpack.c.bf16 %v1432, %v1416
  %v1449 = vpack.c.bf16 %v1433, %v1417
  %v1450 = vpack.c.bf16 %v1434, %v1418
  %v1451 = vpack.c.bf16 %v1435, %v1419
  %v1452 = vpack.c.bf16 %v1436, %v1420
  %v1469 = vunpack.c.l.b16 %v1437
  %v1470 = vunpack.c.l.b16 %v1438
  %v1471 = vunpack.c.l.b16 %v1439
  %v1472 = vunpack.c.l.b16 %v1440
  %v1473 = vunpack.c.l.b16 %v1441
  %v1474 = vunpack.c.l.b16 %v1442
  %v1475 = vunpack.c.l.b16 %v1443
  %v1476 = vunpack.c.l.b16 %v1444
  %v1477 = vunpack.c.l.b16 %v1445
  %v1478 = vunpack.c.l.b16 %v1446
  %v1479 = vunpack.c.l.b16 %v1447
  %v1480 = vunpack.c.l.b16 %v1448
  %v1481 = vunpack.c.l.b16 %v1449
  %v1482 = vunpack.c.l.b16 %v1450
  %v1483 = vunpack.c.l.b16 %v1451
  %v1484 = vunpack.c.l.b16 %v1452
  %v1485 = vunpack.c.h.b16 %v1437
  %v1486 = vunpack.c.h.b16 %v1438
  %v1487 = vunpack.c.h.b16 %v1439
  %v1488 = vunpack.c.h.b16 %v1440
  %v1489 = vunpack.c.h.b16 %v1441
  %v1490 = vunpack.c.h.b16 %v1442
  %v1491 = vunpack.c.h.b16 %v1443
  %v1492 = vunpack.c.h.b16 %v1444
  %v1493 = vunpack.c.h.b16 %v1445
  %v1494 = vunpack.c.h.b16 %v1446
  %v1495 = vunpack.c.h.b16 %v1447
  %v1496 = vunpack.c.h.b16 %v1448
  %v1497 = vunpack.c.h.b16 %v1449
  %v1498 = vunpack.c.h.b16 %v1450
  %v1499 = vunpack.c.h.b16 %v1451
  %v1500 = vunpack.c.h.b16 %v1452
  %v1501 = vpack.c.b16 %v1470, %v1469
  %v1502 = vpack.c.b16 %v1472, %v1471
  %v1503 = vpack.c.b16 %v1474, %v1473
  %v1504 = vpack.c.b16 %v1476, %v1475
  %v1505 = vpack.c.b16 %v1478, %v1477
  %v1506 = vpack.c.b16 %v1480, %v1479
  %v1507 = vpack.c.b16 %v1482, %v1481
  %v1508 = vpack.c.b16 %v1484, %v1483
  %v1509 = vpack.c.b16 %v1486, %v1485
  %v1510 = vpack.c.b16 %v1488, %v1487
  %v1511 = vpack.c.b16 %v1490, %v1489
  %v1512 = vpack.c.b16 %v1492, %v1491
  %v1513 = vpack.c.b16 %v1494, %v1493
  %v1514 = vpack.c.b16 %v1496, %v1495
  %v1515 = vpack.c.b16 %v1498, %v1497
  %v1516 = vpack.c.b16 %v1500, %v1499
  %1533 = vst [vmem:[%s4] sm:$0xff] %v1501
  %1534 = vst [vmem:[%s4 + $0x8] sm:$0xff] %v1502
  %1535 = vst [vmem:[%s4 + $0x10] sm:$0xff] %v1503
  %1536 = vst [vmem:[%s4 + $0x18] sm:$0xff] %v1504
  %1537 = vst [vmem:[%s4 + $0x20] sm:$0xff] %v1505
  %1538 = vst [vmem:[%s4 + $0x28] sm:$0xff] %v1506
  %1539 = vst [vmem:[%s4 + $0x30] sm:$0xff] %v1507
  %1540 = vst [vmem:[%s4 + $0x38] sm:$0xff] %v1508
  %1541 = vst [vmem:[%s4 + $0x40] sm:$0xff] %v1509
  %1542 = vst [vmem:[%s4 + $0x48] sm:$0xff] %v1510
  %1543 = vst [vmem:[%s4 + $0x50] sm:$0xff] %v1511
  %1544 = vst [vmem:[%s4 + $0x58] sm:$0xff] %v1512
  %1545 = vst [vmem:[%s4 + $0x60] sm:$0xff] %v1513
  %1546 = vst [vmem:[%s4 + $0x68] sm:$0xff] %v1514
  %1547 = vst [vmem:[%s4 + $0x70] sm:$0xff] %v1515
  %1548 = vst [vmem:[%s4 + $0x78] sm:$0xff] %v1516
  // Predicated region
  $region18: #{discriminator128_forward.7} parent=0 // pred_check
    _
  $region19: #{discriminator128_forward.7} parent=0 // pred_check_branch
    %1550 = sbr.rel (0) target = $region21
  $region20: #{discriminator128_forward.7} parent=0 // pred_region
    _
  $region21: #{discriminator128_forward.7} parent=0 // pred_fallthru
    _
  // Predicated region
  $region22: #{discriminator128_forward.7} parent=0 // pred_check
    _
  $region23: #{discriminator128_forward.7} parent=0 // pred_check_branch
    %1552 = sbr.rel (0) target = $region25
  $region24: #{discriminator128_forward.7} parent=0 // pred_region
    _
  $region25: #{discriminator128_forward.7} parent=0 // pred_fallthru
    _

// kernel: discriminator128_forward.8
$region0: #{discriminator128_forward.8}
  #allocation0 [shape = 'u32[]', space=smem, size = 0x4, offset = 0x4, fixed_abs, tag = 'smem constant byte address 0x4 - core index']
  #allocation1 [shape = 'u32[144,128]{1,0:T(1,128)}', space=vmem, size = 0x12000, scoped, tag = 'internal scratch']
  %s0 = inlined_call_operand.vmem [shape: f32[32,256], index: 0, kind: input, shape index: {}]
  %s1 = inlined_call_operand.vmem [shape: bf16[256,512], index: 1, kind: input, shape index: {}]
  %s2 = inlined_call_operand.vmem [shape: f32[32,1], index: 2, kind: input, shape index: {}]
  %s3 = inlined_call_operand.vmem [shape: f32[32,1], index: 3, kind: input, shape index: {}]
  %s4 = inlined_call_operand.vmem [shape: bf16[32,512], index: 4, kind: output, shape index: {}]
  %s5 = sld [smem:[#allocation0]]
  $region49: #{discriminator128_forward.8} parent=0
    _
  %s7 = ssub.s32 1, %s5
  %s8 = scalar_select 0, %s7, %s5
  loop: start=0, step=1, limit=4
  $region2: #{discriminator128_forward.8} parent=0 // loop_pre_header
    _
  $region3: #{discriminator128_forward.8} parent=0 // loop_header
    %s10 = sphi 0, %s14
    %p11 = scmp.ge.s32.totalorder %s10, 4
    %s20 = sphi 0, %s22
    %s23 = sphi 0, %s20
    %s24 = sphi 0, %s23
    %s40 = sphi 0, %s24
    %s44 = sphi 0, %s44
    %s46 = sphi 0, %s44
    %s47 = sphi 0, %s46
    %s61 = sphi 0, %s47
    %s67 = sphi 0, %s69
    %s70 = sphi 0, %s67
    %s71 = sphi 0, %s70
    %s87 = sphi 0, %s71
    %s93 = sphi 0, %s95
    %s96 = sphi 0, %s93
    %s97 = sphi 0, %s96
    %s113 = sphi 0, %s97
    %s119 = sphi 0, %s121
    %s122 = sphi 0, %s119
    %s123 = sphi 0, %s122
    %s139 = sphi 0, %s123
  $region4: #{discriminator128_forward.8} parent=0 // loop_header_branch
    %13 = sbr.rel (%p11) target = $region8
  $region5: #{discriminator128_forward.8} parent=0 // loop_body
    %s15 = ssub.s32 %s10, 1
    %s16 = ssub.s32 %s10, 2
    %s17 = sadd.s32 %s10, 1
    %s18 = ssub.s32 %s10, %s17
    %p19 = scmp.eq.s32.totalorder %s18, 0
    %s21 = sadd.s32 %s20, 1
    %s22 = scalar_select %p19, %s20, %s21
    %p25 = pneg %p19
    %p26 = scmp.eq.s32.totalorder %s10, 1
    %p27 = por %p25, %p26
    %p28 = scmp.ne.s32.totalorder %s20, %s23
    %p29 = scmp.eq.s32.totalorder %s10, 0
    %p30 = por %p28, %p29
    %p31 = scmp.ne.s32.totalorder %s20, %s23
    %p32 = scmp.eq.s32.totalorder %s15, 1
    %p33 = por %p31, %p32
    %p34 = scmp.ne.s32.totalorder %s23, %s24
    %p35 = scmp.eq.s32.totalorder %s15, 0
    %p36 = por %p34, %p35
    %p37 = scmp.ne.s32.totalorder %s23, %s24
    %p38 = scmp.eq.s32.totalorder %s16, 1
    %p39 = por %p37, %p38
    %p41 = scmp.ne.s32.totalorder %s24, %s40
    %p42 = scmp.eq.s32.totalorder %s16, 0
    %p43 = por %p41, %p42
    %s45 = sadd.s32 %s44, 1
    %p48 = scmp.eq.s32.totalorder %s10, 1
    %p49 = scmp.ne.s32.totalorder %s44, %s46
    %p50 = scmp.eq.s32.totalorder %s10, 0
    %p51 = por %p49, %p50
    %p52 = scmp.ne.s32.totalorder %s44, %s46
    %p53 = scmp.eq.s32.totalorder %s15, 1
    %p54 = por %p52, %p53
    %p55 = scmp.ne.s32.totalorder %s46, %s47
    %p56 = scmp.eq.s32.totalorder %s15, 0
    %p57 = por %p55, %p56
    %p58 = scmp.ne.s32.totalorder %s46, %s47
    %p59 = scmp.eq.s32.totalorder %s16, 1
    %p60 = por %p58, %p59
    %p62 = scmp.ne.s32.totalorder %s47, %s61
    %p63 = scmp.eq.s32.totalorder %s16, 0
    %p64 = por %p62, %p63
    %s65 = ssub.s32 %s10, %s17
    %p66 = scmp.eq.s32.totalorder %s65, 0
    %s68 = sadd.s32 %s67, 1
    %s69 = scalar_select %p66, %s67, %s68
    %p72 = pneg %p66
    %p73 = scmp.eq.s32.totalorder %s10, 1
    %p74 = por %p72, %p73
    %p75 = scmp.ne.s32.totalorder %s67, %s70
    %p76 = scmp.eq.s32.totalorder %s10, 0
    %p77 = por %p75, %p76
    %p78 = scmp.ne.s32.totalorder %s67, %s70
    %p79 = scmp.eq.s32.totalorder %s15, 1
    %p80 = por %p78, %p79
    %p81 = scmp.ne.s32.totalorder %s70, %s71
    %p82 = scmp.eq.s32.totalorder %s15, 0
    %p83 = por %p81, %p82
    %p84 = scmp.ne.s32.totalorder %s70, %s71
    %p85 = scmp.eq.s32.totalorder %s16, 1
    %p86 = por %p84, %p85
    %p88 = scmp.ne.s32.totalorder %s71, %s87
    %p89 = scmp.eq.s32.totalorder %s16, 0
    %p90 = por %p88, %p89
    %s91 = ssub.s32 %s10, %s17
    %p92 = scmp.eq.s32.totalorder %s91, 0
    %s94 = sadd.s32 %s93, 1
    %s95 = scalar_select %p92, %s93, %s94
    %p98 = pneg %p92
    %p99 = scmp.eq.s32.totalorder %s10, 1
    %p100 = por %p98, %p99
    %p101 = scmp.ne.s32.totalorder %s93, %s96
    %p102 = scmp.eq.s32.totalorder %s10, 0
    %p103 = por %p101, %p102
    %p104 = scmp.ne.s32.totalorder %s93, %s96
    %p105 = scmp.eq.s32.totalorder %s15, 1
    %p106 = por %p104, %p105
    %p107 = scmp.ne.s32.totalorder %s96, %s97
    %p108 = scmp.eq.s32.totalorder %s15, 0
    %p109 = por %p107, %p108
    %p110 = scmp.ne.s32.totalorder %s96, %s97
    %p111 = scmp.eq.s32.totalorder %s16, 1
    %p112 = por %p110, %p111
    %p114 = scmp.ne.s32.totalorder %s97, %s113
    %p115 = scmp.eq.s32.totalorder %s16, 0
    %p116 = por %p114, %p115
    %s117 = ssub.s32 %s10, %s17
    %p118 = scmp.eq.s32.totalorder %s117, 0
    %s120 = sadd.s32 %s119, 1
    %s121 = scalar_select %p118, %s119, %s120
    %p124 = pneg %p118
    %p125 = scmp.eq.s32.totalorder %s10, 1
    %p126 = por %p124, %p125
    %p127 = scmp.ne.s32.totalorder %s119, %s122
    %p128 = scmp.eq.s32.totalorder %s10, 0
    %p129 = por %p127, %p128
    %p130 = scmp.ne.s32.totalorder %s119, %s122
    %p131 = scmp.eq.s32.totalorder %s15, 1
    %p132 = por %p130, %p131
    %p133 = scmp.ne.s32.totalorder %s122, %s123
    %p134 = scmp.eq.s32.totalorder %s15, 0
    %p135 = por %p133, %p134
    %p136 = scmp.ne.s32.totalorder %s122, %s123
    %p137 = scmp.eq.s32.totalorder %s16, 1
    %p138 = por %p136, %p137
    %p140 = scmp.ne.s32.totalorder %s123, %s139
    %p141 = scmp.eq.s32.totalorder %s16, 0
    %p142 = por %p140, %p141
    %p143 = scmp.le.s32.totalorder 1, %s10
    %p144 = scmp.lt.s32.totalorder %s10, 3
    %p145 = pnand %p143, %p144
    %p146 = pneg %p145
    // Predicated region
    $region9: #{discriminator128_forward.8} parent=5 // pred_check
      _
    $region10: #{discriminator128_forward.8} parent=5 // pred_check_branch
      %148 = sbr.rel (%p145) target = $region12
    $region11: #{discriminator128_forward.8} parent=5 // pred_region
      %s149 = ssub.s32 %s10, 1
      // Predicated region
      $region13: #{discriminator128_forward.8} parent=11 // pred_check
        %p150 = pneg %p57
      $region14: #{discriminator128_forward.8} parent=11 // pred_check_branch
        %152 = sbr.rel (%p150) target = $region16
      $region15: #{discriminator128_forward.8} parent=11 // pred_region
        _
      $region16: #{discriminator128_forward.8} parent=11 // pred_fallthru
        _
    $region12: #{discriminator128_forward.8} parent=5 // pred_fallthru
      _
    %p153 = scmp.lt.s32.totalorder %s10, 2
    // Predicated region
    $region17: #{discriminator128_forward.8} parent=5 // pred_check
      %p154 = pneg %p153
    $region18: #{discriminator128_forward.8} parent=5 // pred_check_branch
      %156 = sbr.rel (%p154) target = $region20
    $region19: #{discriminator128_forward.8} parent=5 // pred_region
      // Predicated region
      $region21: #{discriminator128_forward.8} parent=19 // pred_check
        %p157 = pneg %p30
      $region22: #{discriminator128_forward.8} parent=19 // pred_check_branch
        %159 = sbr.rel (%p157) target = $region24
      $region23: #{discriminator128_forward.8} parent=19 // pred_region
        %s160 = smul.u32 2, %s10
        %p161 = scmp.lt.s32.totalorder %s160, 3
        %s162 = scalar_select %p161, %s160, 3
        %s163 = smul.addr %s162, 2
        %s164 = smul.addr %s163, 8
        %s165 = scalar_lea.vmem %s0, %s164
        %s166 = smul.u32 2, %s10
      $region24: #{discriminator128_forward.8} parent=19 // pred_fallthru
        _
      // Predicated region
      $region25: #{discriminator128_forward.8} parent=19 // pred_check
        %p167 = pneg %p77
      $region26: #{discriminator128_forward.8} parent=19 // pred_check_branch
        %169 = sbr.rel (%p167) target = $region28
      $region27: #{discriminator128_forward.8} parent=19 // pred_region
        %s170 = smul.u32 2, %s10
        %p171 = scmp.lt.s32.totalorder %s170, 3
        %s172 = scalar_select %p171, %s170, 3
        %s173 = smul.addr %s172, 8
        %s174 = scalar_lea.vmem %s2, %s173
        %s175 = smul.u32 2, %s10
      $region28: #{discriminator128_forward.8} parent=19 // pred_fallthru
        _
      // Predicated region
      $region29: #{discriminator128_forward.8} parent=19 // pred_check
        %p176 = pneg %p103
      $region30: #{discriminator128_forward.8} parent=19 // pred_check_branch
        %178 = sbr.rel (%p176) target = $region32
      $region31: #{discriminator128_forward.8} parent=19 // pred_region
        %s179 = smul.u32 2, %s10
        %p180 = scmp.lt.s32.totalorder %s179, 3
        %s181 = scalar_select %p180, %s179, 3
        %s182 = smul.addr %s181, 8
        %s183 = scalar_lea.vmem %s3, %s182
        %s184 = smul.u32 2, %s10
      $region32: #{discriminator128_forward.8} parent=19 // pred_fallthru
        _
    $region20: #{discriminator128_forward.8} parent=5 // pred_fallthru
      _
    %p185 = scmp.le.s32.totalorder 1, %s10
    %p186 = scmp.lt.s32.totalorder %s10, 3
    %p187 = pnand %p185, %p186
    %p188 = pneg %p187
    // Predicated region
    $region33: #{discriminator128_forward.8} parent=5 // pred_check
      _
    $region34: #{discriminator128_forward.8} parent=5 // pred_check_branch
      %190 = sbr.rel (%p187) target = $region36
    $region35: #{discriminator128_forward.8} parent=5 // pred_region
      %s191 = ssub.s32 %s10, 1
      %s192 = smul.u32 2, %s15
      %p193 = scmp.lt.s32.totalorder %s192, 3
      %s194 = scalar_select %p193, %s192, 3
      %s195 = smul.addr %s194, 2
      %s196 = smul.addr %s195, 8
      %s197 = scalar_lea.vmem %s0, %s196
      %p198 = pneg %p36
      %p199 = pneg %p33
      %p200 = pneg %p57
      %p201 = pneg %p54
      %s202 = smul.u32 2, %s15
      %p203 = scmp.lt.s32.totalorder %s202, 3
      %s204 = scalar_select %p203, %s202, 3
      %s205 = smul.addr %s204, 8
      %s206 = scalar_lea.vmem %s2, %s205
      %p207 = pneg %p83
      %p208 = pneg %p80
      %s209 = smul.u32 2, %s15
      %p210 = scmp.lt.s32.totalorder %s209, 3
      %s211 = scalar_select %p210, %s209, 3
      %s212 = smul.addr %s211, 8
      %s213 = scalar_lea.vmem %s3, %s212
      %p214 = pneg %p109
      %p215 = pneg %p106
      %p216 = pneg %p135
      %p217 = pneg %p132
      %s218 = smul.u32 2, %s15
      %p219 = scmp.lt.s32.totalorder %s218, 3
      %s220 = scalar_select %p219, %s218, 3
      %s221 = smul.addr %s220, 4
      %s222 = smul.addr %s221, 4
      %s223 = scalar_lea.vmem %s4, %s222
      %s224 = smul.u32 2, %s15
      %p225 = scmp.lt.s32.totalorder %s224, 3
      %s226 = scalar_select %p225, %s224, 3
      %s227 = smul.addr %s226, 2
      %s228 = smul.addr %s227, 8
      %s229 = scalar_lea.vmem %s0, %s228
      %s230 = smul.u32 2, %s15
      %s231 = smul.u32 2, %s15
      %p232 = scmp.lt.s32.totalorder %s231, 3
      %s233 = scalar_select %p232, %s231, 3
      %s234 = smul.addr %s233, 8
      %s235 = scalar_lea.vmem %s2, %s234
      %s236 = smul.u32 2, %s15
      %s237 = smul.u32 2, %s15
      %p238 = scmp.lt.s32.totalorder %s237, 3
      %s239 = scalar_select %p238, %s237, 3
      %s240 = smul.addr %s239, 8
      %s241 = scalar_lea.vmem %s3, %s240
      %s242 = smul.u32 2, %s15
      %s243 = smul.u32 2, %s15
      %p244 = scmp.lt.s32.totalorder %s243, 3
      %s245 = scalar_select %p244, %s243, 3
      %s246 = smul.addr %s245, 4
      %s247 = smul.addr %s246, 4
      %s248 = scalar_lea.vmem %s4, %s247
      %s249 = smul.u32 2, %s15
      %v250 = vld [vmem:[%s229] sm:$0xff]
      %v251 = vld [vmem:[%s229 + $0x8] sm:$0xff]
      %v252 = vld [vmem:[%s229 + $0x10] sm:$0xff]
      %v253 = vld [vmem:[%s229 + $0x18] sm:$0xff]
      %v254 = vpack.c.bf16 %v252, %v250
      %v255 = vpack.c.bf16 %v253, %v251
      %v256 = vld [vmem:[%s1] sm:$0xff]
      %v257 = vld [vmem:[%s1 + $0x8] sm:$0xff]
      %v258 = vld [vmem:[%s1 + $0x10] sm:$0xff]
      %v259 = vld [vmem:[%s1 + $0x18] sm:$0xff]
      %v260 = vld [vmem:[%s1 + $0x20] sm:$0xff]
      %v261 = vld [vmem:[%s1 + $0x28] sm:$0xff]
      %v262 = vld [vmem:[%s1 + $0x30] sm:$0xff]
      %v263 = vld [vmem:[%s1 + $0x38] sm:$0xff]
      %v264 = vld [vmem:[%s1 + $0x40] sm:$0xff]
      %v265 = vld [vmem:[%s1 + $0x48] sm:$0xff]
      %v266 = vld [vmem:[%s1 + $0x50] sm:$0xff]
      %v267 = vld [vmem:[%s1 + $0x58] sm:$0xff]
      %v268 = vld [vmem:[%s1 + $0x60] sm:$0xff]
      %v269 = vld [vmem:[%s1 + $0x68] sm:$0xff]
      %v270 = vld [vmem:[%s1 + $0x70] sm:$0xff]
      %v271 = vld [vmem:[%s1 + $0x78] sm:$0xff]
      %v272 = vld [vmem:[%s1 + $0x80] sm:$0xff]
      %v273 = vld [vmem:[%s1 + $0x88] sm:$0xff]
      %v274 = vld [vmem:[%s1 + $0x90] sm:$0xff]
      %v275 = vld [vmem:[%s1 + $0x98] sm:$0xff]
      %v276 = vld [vmem:[%s1 + $0xa0] sm:$0xff]
      %v277 = vld [vmem:[%s1 + $0xa8] sm:$0xff]
      %v278 = vld [vmem:[%s1 + $0xb0] sm:$0xff]
      %v279 = vld [vmem:[%s1 + $0xb8] sm:$0xff]
      %v280 = vld [vmem:[%s1 + $0xc0] sm:$0xff]
      %v281 = vld [vmem:[%s1 + $0xc8] sm:$0xff]
      %v282 = vld [vmem:[%s1 + $0xd0] sm:$0xff]
      %v283 = vld [vmem:[%s1 + $0xd8] sm:$0xff]
      %v284 = vld [vmem:[%s1 + $0xe0] sm:$0xff]
      %v285 = vld [vmem:[%s1 + $0xe8] sm:$0xff]
      %v286 = vld [vmem:[%s1 + $0xf0] sm:$0xff]
      %v287 = vld [vmem:[%s1 + $0xf8] sm:$0xff]
      %v288 = vld [vmem:[%s1 + $0x100] sm:$0xff]
      %v289 = vld [vmem:[%s1 + $0x108] sm:$0xff]
      %v290 = vld [vmem:[%s1 + $0x110] sm:$0xff]
      %v291 = vld [vmem:[%s1 + $0x118] sm:$0xff]
      %v292 = vld [vmem:[%s1 + $0x120] sm:$0xff]
      %v293 = vld [vmem:[%s1 + $0x128] sm:$0xff]
      %v294 = vld [vmem:[%s1 + $0x130] sm:$0xff]
      %v295 = vld [vmem:[%s1 + $0x138] sm:$0xff]
      %v296 = vld [vmem:[%s1 + $0x140] sm:$0xff]
      %v297 = vld [vmem:[%s1 + $0x148] sm:$0xff]
      %v298 = vld [vmem:[%s1 + $0x150] sm:$0xff]
      %v299 = vld [vmem:[%s1 + $0x158] sm:$0xff]
      %v300 = vld [vmem:[%s1 + $0x160] sm:$0xff]
      %v301 = vld [vmem:[%s1 + $0x168] sm:$0xff]
      %v302 = vld [vmem:[%s1 + $0x170] sm:$0xff]
      %v303 = vld [vmem:[%s1 + $0x178] sm:$0xff]
      %v304 = vld [vmem:[%s1 + $0x180] sm:$0xff]
      %v305 = vld [vmem:[%s1 + $0x188] sm:$0xff]
      %v306 = vld [vmem:[%s1 + $0x190] sm:$0xff]
      %v307 = vld [vmem:[%s1 + $0x198] sm:$0xff]
      %v308 = vld [vmem:[%s1 + $0x1a0] sm:$0xff]
      %v309 = vld [vmem:[%s1 + $0x1a8] sm:$0xff]
      %v310 = vld [vmem:[%s1 + $0x1b0] sm:$0xff]
      %v311 = vld [vmem:[%s1 + $0x1b8] sm:$0xff]
      %v312 = vld [vmem:[%s1 + $0x1c0] sm:$0xff]
      %v313 = vld [vmem:[%s1 + $0x1c8] sm:$0xff]
      %v314 = vld [vmem:[%s1 + $0x1d0] sm:$0xff]
      %v315 = vld [vmem:[%s1 + $0x1d8] sm:$0xff]
      %v316 = vld [vmem:[%s1 + $0x1e0] sm:$0xff]
      %v317 = vld [vmem:[%s1 + $0x1e8] sm:$0xff]
      %v318 = vld [vmem:[%s1 + $0x1f0] sm:$0xff]
      %v319 = vld [vmem:[%s1 + $0x1f8] sm:$0xff]
      %v384 = vunpack.c.l.b16 %v256
      %v385 = vunpack.c.h.b16 %v256
      %v386 = vunpack.c.l.b16 %v257
      %v387 = vunpack.c.h.b16 %v257
      %v388 = vunpack.c.l.b16 %v258
      %v389 = vunpack.c.h.b16 %v258
      %v390 = vunpack.c.l.b16 %v259
      %v391 = vunpack.c.h.b16 %v259
      %v392 = vunpack.c.l.b16 %v260
      %v393 = vunpack.c.h.b16 %v260
      %v394 = vunpack.c.l.b16 %v261
      %v395 = vunpack.c.h.b16 %v261
      %v396 = vunpack.c.l.b16 %v262
      %v397 = vunpack.c.h.b16 %v262
      %v398 = vunpack.c.l.b16 %v263
      %v399 = vunpack.c.h.b16 %v263
      %v400 = vunpack.c.l.b16 %v264
      %v401 = vunpack.c.h.b16 %v264
      %v402 = vunpack.c.l.b16 %v265
      %v403 = vunpack.c.h.b16 %v265
      %v404 = vunpack.c.l.b16 %v266
      %v405 = vunpack.c.h.b16 %v266
      %v406 = vunpack.c.l.b16 %v267
      %v407 = vunpack.c.h.b16 %v267
      %v408 = vunpack.c.l.b16 %v268
      %v409 = vunpack.c.h.b16 %v268
      %v410 = vunpack.c.l.b16 %v269
      %v411 = vunpack.c.h.b16 %v269
      %v412 = vunpack.c.l.b16 %v270
      %v413 = vunpack.c.h.b16 %v270
      %v414 = vunpack.c.l.b16 %v271
      %v415 = vunpack.c.h.b16 %v271
      %v416 = vunpack.c.l.b16 %v272
      %v417 = vunpack.c.h.b16 %v272
      %v418 = vunpack.c.l.b16 %v273
      %v419 = vunpack.c.h.b16 %v273
      %v420 = vunpack.c.l.b16 %v274
      %v421 = vunpack.c.h.b16 %v274
      %v422 = vunpack.c.l.b16 %v275
      %v423 = vunpack.c.h.b16 %v275
      %v424 = vunpack.c.l.b16 %v276
      %v425 = vunpack.c.h.b16 %v276
      %v426 = vunpack.c.l.b16 %v277
      %v427 = vunpack.c.h.b16 %v277
      %v428 = vunpack.c.l.b16 %v278
      %v429 = vunpack.c.h.b16 %v278
      %v430 = vunpack.c.l.b16 %v279
      %v431 = vunpack.c.h.b16 %v279
      %v432 = vunpack.c.l.b16 %v280
      %v433 = vunpack.c.h.b16 %v280
      %v434 = vunpack.c.l.b16 %v281
      %v435 = vunpack.c.h.b16 %v281
      %v436 = vunpack.c.l.b16 %v282
      %v437 = vunpack.c.h.b16 %v282
      %v438 = vunpack.c.l.b16 %v283
      %v439 = vunpack.c.h.b16 %v283
      %v440 = vunpack.c.l.b16 %v284
      %v441 = vunpack.c.h.b16 %v284
      %v442 = vunpack.c.l.b16 %v285
      %v443 = vunpack.c.h.b16 %v285
      %v444 = vunpack.c.l.b16 %v286
      %v445 = vunpack.c.h.b16 %v286
      %v446 = vunpack.c.l.b16 %v287
      %v447 = vunpack.c.h.b16 %v287
      %v448 = vunpack.c.l.b16 %v288
      %v449 = vunpack.c.h.b16 %v288
      %v450 = vunpack.c.l.b16 %v289
      %v451 = vunpack.c.h.b16 %v289
      %v452 = vunpack.c.l.b16 %v290
      %v453 = vunpack.c.h.b16 %v290
      %v454 = vunpack.c.l.b16 %v291
      %v455 = vunpack.c.h.b16 %v291
      %v456 = vunpack.c.l.b16 %v292
      %v457 = vunpack.c.h.b16 %v292
      %v458 = vunpack.c.l.b16 %v293
      %v459 = vunpack.c.h.b16 %v293
      %v460 = vunpack.c.l.b16 %v294
      %v461 = vunpack.c.h.b16 %v294
      %v462 = vunpack.c.l.b16 %v295
      %v463 = vunpack.c.h.b16 %v295
      %v464 = vunpack.c.l.b16 %v296
      %v465 = vunpack.c.h.b16 %v296
      %v466 = vunpack.c.l.b16 %v297
      %v467 = vunpack.c.h.b16 %v297
      %v468 = vunpack.c.l.b16 %v298
      %v469 = vunpack.c.h.b16 %v298
      %v470 = vunpack.c.l.b16 %v299
      %v471 = vunpack.c.h.b16 %v299
      %v472 = vunpack.c.l.b16 %v300
      %v473 = vunpack.c.h.b16 %v300
      %v474 = vunpack.c.l.b16 %v301
      %v475 = vunpack.c.h.b16 %v301
      %v476 = vunpack.c.l.b16 %v302
      %v477 = vunpack.c.h.b16 %v302
      %v478 = vunpack.c.l.b16 %v303
      %v479 = vunpack.c.h.b16 %v303
      %v480 = vunpack.c.l.b16 %v304
      %v481 = vunpack.c.h.b16 %v304
      %v482 = vunpack.c.l.b16 %v305
      %v483 = vunpack.c.h.b16 %v305
      %v484 = vunpack.c.l.b16 %v306
      %v485 = vunpack.c.h.b16 %v306
      %v486 = vunpack.c.l.b16 %v307
      %v487 = vunpack.c.h.b16 %v307
      %v488 = vunpack.c.l.b16 %v308
      %v489 = vunpack.c.h.b16 %v308
      %v490 = vunpack.c.l.b16 %v309
      %v491 = vunpack.c.h.b16 %v309
      %v492 = vunpack.c.l.b16 %v310
      %v493 = vunpack.c.h.b16 %v310
      %v494 = vunpack.c.l.b16 %v311
      %v495 = vunpack.c.h.b16 %v311
      %v496 = vunpack.c.l.b16 %v312
      %v497 = vunpack.c.h.b16 %v312
      %v498 = vunpack.c.l.b16 %v313
      %v499 = vunpack.c.h.b16 %v313
      %v500 = vunpack.c.l.b16 %v314
      %v501 = vunpack.c.h.b16 %v314
      %v502 = vunpack.c.l.b16 %v315
      %v503 = vunpack.c.h.b16 %v315
      %v504 = vunpack.c.l.b16 %v316
      %v505 = vunpack.c.h.b16 %v316
      %v506 = vunpack.c.l.b16 %v317
      %v507 = vunpack.c.h.b16 %v317
      %v508 = vunpack.c.l.b16 %v318
      %v509 = vunpack.c.h.b16 %v318
      %v510 = vunpack.c.l.b16 %v319
      %v511 = vunpack.c.h.b16 %v319
      %v512 = vpack.c.b16 %v388, %v384
      %v513 = vpack.c.b16 %v389, %v385
      %v514 = vpack.c.b16 %v390, %v386
      %v515 = vpack.c.b16 %v391, %v387
      %v516 = vpack.c.b16 %v396, %v392
      %v517 = vpack.c.b16 %v397, %v393
      %v518 = vpack.c.b16 %v398, %v394
      %v519 = vpack.c.b16 %v399, %v395
      %v520 = vpack.c.b16 %v404, %v400
      %v521 = vpack.c.b16 %v405, %v401
      %v522 = vpack.c.b16 %v406, %v402
      %v523 = vpack.c.b16 %v407, %v403
      %v524 = vpack.c.b16 %v412, %v408
      %v525 = vpack.c.b16 %v413, %v409
      %v526 = vpack.c.b16 %v414, %v410
      %v527 = vpack.c.b16 %v415, %v411
      %v528 = vpack.c.b16 %v420, %v416
      %v529 = vpack.c.b16 %v421, %v417
      %v530 = vpack.c.b16 %v422, %v418
      %v531 = vpack.c.b16 %v423, %v419
      %v532 = vpack.c.b16 %v428, %v424
      %v533 = vpack.c.b16 %v429, %v425
      %v534 = vpack.c.b16 %v430, %v426
      %v535 = vpack.c.b16 %v431, %v427
      %v536 = vpack.c.b16 %v436, %v432
      %v537 = vpack.c.b16 %v437, %v433
      %v538 = vpack.c.b16 %v438, %v434
      %v539 = vpack.c.b16 %v439, %v435
      %v540 = vpack.c.b16 %v444, %v440
      %v541 = vpack.c.b16 %v445, %v441
      %v542 = vpack.c.b16 %v446, %v442
      %v543 = vpack.c.b16 %v447, %v443
      %v544 = vpack.c.b16 %v452, %v448
      %v545 = vpack.c.b16 %v453, %v449
      %v546 = vpack.c.b16 %v454, %v450
      %v547 = vpack.c.b16 %v455, %v451
      %v548 = vpack.c.b16 %v460, %v456
      %v549 = vpack.c.b16 %v461, %v457
      %v550 = vpack.c.b16 %v462, %v458
      %v551 = vpack.c.b16 %v463, %v459
      %v552 = vpack.c.b16 %v468, %v464
      %v553 = vpack.c.b16 %v469, %v465
      %v554 = vpack.c.b16 %v470, %v466
      %v555 = vpack.c.b16 %v471, %v467
      %v556 = vpack.c.b16 %v476, %v472
      %v557 = vpack.c.b16 %v477, %v473
      %v558 = vpack.c.b16 %v478, %v474
      %v559 = vpack.c.b16 %v479, %v475
      %v560 = vpack.c.b16 %v484, %v480
      %v561 = vpack.c.b16 %v485, %v481
      %v562 = vpack.c.b16 %v486, %v482
      %v563 = vpack.c.b16 %v487, %v483
      %v564 = vpack.c.b16 %v492, %v488
      %v565 = vpack.c.b16 %v493, %v489
      %v566 = vpack.c.b16 %v494, %v490
      %v567 = vpack.c.b16 %v495, %v491
      %v568 = vpack.c.b16 %v500, %v496
      %v569 = vpack.c.b16 %v501, %v497
      %v570 = vpack.c.b16 %v502, %v498
      %v571 = vpack.c.b16 %v503, %v499
      %v572 = vpack.c.b16 %v508, %v504
      %v573 = vpack.c.b16 %v509, %v505
      %v574 = vpack.c.b16 %v510, %v506
      %v575 = vpack.c.b16 %v511, %v507
      %640 = vmatprep.subr.bf16.mxu0 %v513
      %641 = vmatpush1.bf16.msra.mxu0 %v512
      %642 = vmatprep.subr.bf16.mxu0 %v517
      %643 = vmatpush1.bf16.msra.mxu0 %v516
      %644 = vmatprep.subr.bf16.mxu0 %v521
      %645 = vmatpush1.bf16.msra.mxu0 %v520
      %646 = vmatprep.subr.bf16.mxu0 %v525
      %647 = vmatpush1.bf16.msra.mxu0 %v524
      %648 = vmatprep.subr.bf16.mxu0 %v529
      %649 = vmatpush1.bf16.msra.mxu0 %v528
      %650 = vmatprep.subr.bf16.mxu0 %v533
      %651 = vmatpush1.bf16.msra.mxu0 %v532
      %652 = vmatprep.subr.bf16.mxu0 %v537
      %653 = vmatpush1.bf16.msra.mxu0 %v536
      %654 = vmatprep.subr.bf16.mxu0 %v541
      %655 = vmatpush1.bf16.msra.mxu0 %v540
      %656 = vmatprep.subr.bf16.mxu0 %v545
      %657 = vmatpush1.bf16.msra.mxu0 %v544
      %658 = vmatprep.subr.bf16.mxu0 %v549
      %659 = vmatpush1.bf16.msra.mxu0 %v548
      %660 = vmatprep.subr.bf16.mxu0 %v553
      %661 = vmatpush1.bf16.msra.mxu0 %v552
      %662 = vmatprep.subr.bf16.mxu0 %v557
      %663 = vmatpush1.bf16.msra.mxu0 %v556
      %664 = vmatprep.subr.bf16.mxu0 %v561
      %665 = vmatpush1.bf16.msra.mxu0 %v560
      %666 = vmatprep.subr.bf16.mxu0 %v565
      %667 = vmatpush1.bf16.msra.mxu0 %v564
      %668 = vmatprep.subr.bf16.mxu0 %v569
      %669 = vmatpush1.bf16.msra.mxu0 %v568
      %670 = vmatprep.subr.bf16.mxu0 %v573
      %671 = vmatpush1.bf16.msra.mxu0 %v572
      %672 = vmatprep.mubr.bf16.mxu0 %v255
      %673 = vmatmul.mubr.bf16.gmra.mrb[0].mxu0 %v254
      %v674 = vpop.f32.mrb[0].mxu0
      %v675 = vadd.f32 0.0, %v674
      %v676 = vpop.f32.mrb[0].mxu0
      %v677 = vadd.f32 0.0, %v676
      %v678 = vpop.f32.mrb[0].mxu0
      %v679 = vadd.f32 0.0, %v678
      %v680 = vpop.f32.mrb[0].mxu0
      %v681 = vadd.f32 0.0, %v680
      %682 = vdwg.mxu0
      %683 = vmatprep.subr.bf16.mxu0 %v515
      %684 = vmatpush1.bf16.msra.mxu0 %v514
      %685 = vmatprep.subr.bf16.mxu0 %v519
      %686 = vmatpush1.bf16.msra.mxu0 %v518
      %687 = vmatprep.subr.bf16.mxu0 %v523
      %688 = vmatpush1.bf16.msra.mxu0 %v522
      %689 = vmatprep.subr.bf16.mxu0 %v527
      %690 = vmatpush1.bf16.msra.mxu0 %v526
      %691 = vmatprep.subr.bf16.mxu0 %v531
      %692 = vmatpush1.bf16.msra.mxu0 %v530
      %693 = vmatprep.subr.bf16.mxu0 %v535
      %694 = vmatpush1.bf16.msra.mxu0 %v534
      %695 = vmatprep.subr.bf16.mxu0 %v539
      %696 = vmatpush1.bf16.msra.mxu0 %v538
      %697 = vmatprep.subr.bf16.mxu0 %v543
      %698 = vmatpush1.bf16.msra.mxu0 %v542
      %699 = vmatprep.subr.bf16.mxu0 %v547
      %700 = vmatpush1.bf16.msra.mxu0 %v546
      %701 = vmatprep.subr.bf16.mxu0 %v551
      %702 = vmatpush1.bf16.msra.mxu0 %v550
      %703 = vmatprep.subr.bf16.mxu0 %v555
      %704 = vmatpush1.bf16.msra.mxu0 %v554
      %705 = vmatprep.subr.bf16.mxu0 %v559
      %706 = vmatpush1.bf16.msra.mxu0 %v558
      %707 = vmatprep.subr.bf16.mxu0 %v563
      %708 = vmatpush1.bf16.msra.mxu0 %v562
      %709 = vmatprep.subr.bf16.mxu0 %v567
      %710 = vmatpush1.bf16.msra.mxu0 %v566
      %711 = vmatprep.subr.bf16.mxu0 %v571
      %712 = vmatpush1.bf16.msra.mxu0 %v570
      %713 = vmatprep.subr.bf16.mxu0 %v575
      %714 = vmatpush1.bf16.msra.mxu0 %v574
      %715 = vmatprep.mubr.bf16.mxu0 %v255
      %716 = vmatmul.mubr.bf16.gmra.mrb[0].mxu0 %v254
      %v717 = vpop.f32.mrb[0].mxu0
      %v718 = vadd.f32 0.0, %v717
      %v719 = vpop.f32.mrb[0].mxu0
      %v720 = vadd.f32 0.0, %v719
      %v721 = vpop.f32.mrb[0].mxu0
      %v722 = vadd.f32 0.0, %v721
      %v723 = vpop.f32.mrb[0].mxu0
      %v724 = vadd.f32 0.0, %v723
      %725 = vdwg.mxu0
      %v726 = vadd.f32 %v675, %v677
      %v727 = vadd.f32 %v726, %v718
      %v728 = vadd.f32 %v727, %v720
      %729 = vadd.xlane.f32.xlu0 %v728
      %v730 = vpop.xlane.xlu0 %729
      %v731 = vadd.f32 %v679, %v681
      %v732 = vadd.f32 %v731, %v722
      %v733 = vadd.f32 %v732, %v724
      %734 = vadd.xlane.f32.xlu0 %v733
      %v735 = vpop.xlane.xlu0 %734
      %v736 = vmul.f32 %v730, 0.001953125
      %v737 = vmul.f32 %v735, 0.001953125
      %v738 = vmul.f32 %v675, %v675
      %v739 = vmul.f32 %v677, %v677
      %v740 = vmul.f32 %v718, %v718
      %v741 = vmul.f32 %v720, %v720
      %v742 = vmul.f32 %v679, %v679
      %v743 = vmul.f32 %v681, %v681
      %v744 = vmul.f32 %v722, %v722
      %v745 = vmul.f32 %v724, %v724
      %v746 = vadd.f32 %v738, %v739
      %v747 = vadd.f32 %v746, %v740
      %v748 = vadd.f32 %v747, %v741
      %749 = vadd.xlane.f32.xlu0 %v748
      %v750 = vpop.xlane.xlu0 %749
      %v751 = vadd.f32 %v742, %v743
      %v752 = vadd.f32 %v751, %v744
      %v753 = vadd.f32 %v752, %v745
      %754 = vadd.xlane.f32.xlu0 %v753
      %v755 = vpop.xlane.xlu0 %754
      %v756 = vmul.f32 %v750, 0.001953125
      %v757 = vmul.f32 %v755, 0.001953125
      %v758 = vmul.f32 %v736, %v736
      %v759 = vmul.f32 %v737, %v737
      %v760 = vsub.f32 %v756, %v758
      %v761 = vsub.f32 %v757, %v759
      %v762 = vmax.f32 %v760, 0.0
      %v763 = vmax.f32 %v761, 0.0
      %v764 = vld [vmem:[%s235] sm:$0xff]
      %v765 = vld [vmem:[%s235 + $0x8] sm:$0xff]
      %v766 = vadd.f32 %v762, 1e-05
      %v767 = vadd.f32 %v763, 1e-05
      %v768 = vrsqrt.pop %v766
      %v769 = vrsqrt.pop %v767
      %v770 = vmul.f32 %v764, %v768
      %v771 = vmul.f32 %v765, %v769
      %v772 = vld [vmem:[%s241] sm:$0xff]
      %v773 = vld [vmem:[%s241 + $0x8] sm:$0xff]
      %v774 = vmul.f32 %v736, %v770
      %v775 = vmul.f32 %v737, %v771
      %v776 = vsub.f32 %v772, %v774
      %v777 = vsub.f32 %v773, %v775
      %779 = vset.pattern.permute.xlu0 0
      %780 = vperm.xlu0 %779, %v770
      %v781 = vpop.permute.xlu0 %780
      %784 = vset.pattern.permute.xlu0 0
      %785 = vperm.xlu0 %784, %v771
      %v786 = vpop.permute.xlu0 %785
      %v788 = vmul.f32 %v675, %v781
      %v789 = vmul.f32 %v677, %v781
      %v790 = vmul.f32 %v718, %v781
      %v791 = vmul.f32 %v720, %v781
      %v792 = vmul.f32 %v679, %v786
      %v793 = vmul.f32 %v681, %v786
      %v794 = vmul.f32 %v722, %v786
      %v795 = vmul.f32 %v724, %v786
      %797 = vset.pattern.permute.xlu0 0
      %798 = vperm.xlu0 %797, %v776
      %v799 = vpop.permute.xlu0 %798
      %802 = vset.pattern.permute.xlu0 0
      %803 = vperm.xlu0 %802, %v777
      %v804 = vpop.permute.xlu0 %803
      %v806 = vadd.f32 %v788, %v799
      %v807 = vadd.f32 %v789, %v799
      %v808 = vadd.f32 %v790, %v799
      %v809 = vadd.f32 %v791, %v799
      %v810 = vadd.f32 %v792, %v804
      %v811 = vadd.f32 %v793, %v804
      %v812 = vadd.f32 %v794, %v804
      %v813 = vadd.f32 %v795, %v804
      %vm814 = vcmp.gt.f32.partialorder %v806, 0.0
      %vm815 = vcmp.gt.f32.partialorder %v807, 0.0
      %vm816 = vcmp.gt.f32.partialorder %v808, 0.0
      %vm817 = vcmp.gt.f32.partialorder %v809, 0.0
      %vm818 = vcmp.gt.f32.partialorder %v810, 0.0
      %vm819 = vcmp.gt.f32.partialorder %v811, 0.0
      %vm820 = vcmp.gt.f32.partialorder %v812, 0.0
      %vm821 = vcmp.gt.f32.partialorder %v813, 0.0
      %v822 = vmul.f32 %v806, 0.2
      %v823 = vmul.f32 %v807, 0.2
      %v824 = vmul.f32 %v808, 0.2
      %v825 = vmul.f32 %v809, 0.2
      %v826 = vmul.f32 %v810, 0.2
      %v827 = vmul.f32 %v811, 0.2
      %v828 = vmul.f32 %v812, 0.2
      %v829 = vmul.f32 %v813, 0.2
      %v830 = vsel %vm814, %v806, %v822
      %v831 = vsel %vm815, %v807, %v823
      %v832 = vsel %vm816, %v808, %v824
      %v833 = vsel %vm817, %v809, %v825
      %v834 = vsel %vm818, %v810, %v826
      %v835 = vsel %vm819, %v811, %v827
      %v836 = vsel %vm820, %v812, %v828
      %v837 = vsel %vm821, %v813, %v829
      %v838 = vpack.c.bf16 %v834, %v830
      %v839 = vpack.c.bf16 %v835, %v831
      %v840 = vpack.c.bf16 %v836, %v832
      %v841 = vpack.c.bf16 %v837, %v833
      %v846 = vunpack.c.l.b16 %v838
      %v847 = vunpack.c.l.b16 %v839
      %v848 = vunpack.c.l.b16 %v840
      %v849 = vunpack.c.l.b16 %v841
      %v850 = vunpack.c.h.b16 %v838
      %v851 = vunpack.c.h.b16 %v839
      %v852 = vunpack.c.h.b16 %v840
      %v853 = vunpack.c.h.b16 %v841
      %v854 = vpack.c.b16 %v847, %v846
      %v855 = vpack.c.b16 %v849, %v848
      %v856 = vpack.c.b16 %v851, %v850
      %v857 = vpack.c.b16 %v853, %v852
      %862 = vst [vmem:[%s248] sm:$0xff] %v854
      %863 = vst [vmem:[%s248 + $0x8] sm:$0xff] %v855
      %864 = vst [vmem:[%s248 + $0x10] sm:$0xff] %v856
      %865 = vst [vmem:[%s248 + $0x18] sm:$0xff] %v857
      %s866 = smul.u32 2, %s15
      %p867 = scmp.lt.s32.totalorder %s866, 3
      %s868 = scalar_select %p867, %s866, 3
      %s869 = smul.addr %s868, 4
      %s870 = smul.addr %s869, 4
      %s871 = scalar_lea.vmem %s4, %s870
      // Predicated region
      $region37: #{discriminator128_forward.8} parent=35 // pred_check
        %p872 = pneg %p132
      $region38: #{discriminator128_forward.8} parent=35 // pred_check_branch
        %874 = sbr.rel (%p872) target = $region40
      $region39: #{discriminator128_forward.8} parent=35 // pred_region
        %s875 = smul.u32 2, %s15
      $region40: #{discriminator128_forward.8} parent=35 // pred_fallthru
        _
    $region36: #{discriminator128_forward.8} parent=5 // pred_fallthru
      _
    %p876 = scmp.le.s32.totalorder 2, %s10
    // Predicated region
    $region41: #{discriminator128_forward.8} parent=5 // pred_check
      %p877 = pneg %p876
    $region42: #{discriminator128_forward.8} parent=5 // pred_check_branch
      %879 = sbr.rel (%p877) target = $region44
    $region43: #{discriminator128_forward.8} parent=5 // pred_region
      %s880 = ssub.s32 %s10, 2
      // Predicated region
      $region45: #{discriminator128_forward.8} parent=43 // pred_check
        %p881 = pneg %p138
      $region46: #{discriminator128_forward.8} parent=43 // pred_check_branch
        %883 = sbr.rel (%p881) target = $region48
      $region47: #{discriminator128_forward.8} parent=43 // pred_region
        %s884 = smul.u32 2, %s16
        %p885 = scmp.lt.s32.totalorder %s884, 3
        %s886 = scalar_select %p885, %s884, 3
        %s887 = smul.addr %s886, 4
        %s888 = smul.addr %s887, 4
        %s889 = scalar_lea.vmem %s4, %s888
      $region48: #{discriminator128_forward.8} parent=43 // pred_fallthru
        _
    $region44: #{discriminator128_forward.8} parent=5 // pred_fallthru
      _
  $region6: #{discriminator128_forward.8} parent=0 // loop_footer
    %s14 = sadd.s32 1, %s10
  $region7: #{discriminator128_forward.8} parent=0 // loop_footer_branch
    %9 = sbr.rel target = $region3
  $region8: #{discriminator128_forward.8} parent=0 // loop_exit
    _

// kernel: discriminator128_forward.9
$region0: #{discriminator128_forward.9}
  #allocation0 [shape = 'u32[]', space=smem, size = 0x4, offset = 0x4, fixed_abs, tag = 'smem constant byte address 0x4 - core index']
  #allocation1 [shape = 'u32[144,128]{1,0:T(1,128)}', space=vmem, size = 0x12000, scoped, tag = 'internal scratch']
  %s0 = inlined_call_operand.vmem [shape: f32[64,512], index: 0, kind: input, shape index: {}]
  %s1 = inlined_call_operand.vmem [shape: bf16[512,128], index: 1, kind: input, shape index: {}]
  %s2 = inlined_call_operand.vmem [shape: f32[64,1], index: 2, kind: input, shape index: {}]
  %s3 = inlined_call_operand.vmem [shape: f32[64,1], index: 3, kind: input, shape index: {}]
  %s4 = inlined_call_operand.vmem [shape: bf16[64,128], index: 4, kind: output, shape index: {}]
  %s5 = sld [smem:[#allocation0]]
  $region49: #{discriminator128_forward.9} parent=0
    _
  %s7 = ssub.s32 1, %s5
  %s8 = scalar_select 0, %s7, %s5
  loop: start=0, step=1, limit=4
  $region2: #{discriminator128_forward.9} parent=0 // loop_pre_header
    _
  $region3: #{discriminator128_forward.9} parent=0 // loop_header
    %s10 = sphi 0, %s14
    %p11 = scmp.ge.s32.totalorder %s10, 4
    %s20 = sphi 0, %s22
    %s23 = sphi 0, %s20
    %s24 = sphi 0, %s23
    %s40 = sphi 0, %s24
    %s44 = sphi 0, %s44
    %s46 = sphi 0, %s44
    %s47 = sphi 0, %s46
    %s61 = sphi 0, %s47
    %s67 = sphi 0, %s69
    %s70 = sphi 0, %s67
    %s71 = sphi 0, %s70
    %s87 = sphi 0, %s71
    %s93 = sphi 0, %s95
    %s96 = sphi 0, %s93
    %s97 = sphi 0, %s96
    %s113 = sphi 0, %s97
    %s119 = sphi 0, %s121
    %s122 = sphi 0, %s119
    %s123 = sphi 0, %s122
    %s139 = sphi 0, %s123
  $region4: #{discriminator128_forward.9} parent=0 // loop_header_branch
    %13 = sbr.rel (%p11) target = $region8
  $region5: #{discriminator128_forward.9} parent=0 // loop_body
    %s15 = ssub.s32 %s10, 1
    %s16 = ssub.s32 %s10, 2
    %s17 = sadd.s32 %s10, 1
    %s18 = ssub.s32 %s10, %s17
    %p19 = scmp.eq.s32.totalorder %s18, 0
    %s21 = sadd.s32 %s20, 1
    %s22 = scalar_select %p19, %s20, %s21
    %p25 = pneg %p19
    %p26 = scmp.eq.s32.totalorder %s10, 1
    %p27 = por %p25, %p26
    %p28 = scmp.ne.s32.totalorder %s20, %s23
    %p29 = scmp.eq.s32.totalorder %s10, 0
    %p30 = por %p28, %p29
    %p31 = scmp.ne.s32.totalorder %s20, %s23
    %p32 = scmp.eq.s32.totalorder %s15, 1
    %p33 = por %p31, %p32
    %p34 = scmp.ne.s32.totalorder %s23, %s24
    %p35 = scmp.eq.s32.totalorder %s15, 0
    %p36 = por %p34, %p35
    %p37 = scmp.ne.s32.totalorder %s23, %s24
    %p38 = scmp.eq.s32.totalorder %s16, 1
    %p39 = por %p37, %p38
    %p41 = scmp.ne.s32.totalorder %s24, %s40
    %p42 = scmp.eq.s32.totalorder %s16, 0
    %p43 = por %p41, %p42
    %s45 = sadd.s32 %s44, 1
    %p48 = scmp.eq.s32.totalorder %s10, 1
    %p49 = scmp.ne.s32.totalorder %s44, %s46
    %p50 = scmp.eq.s32.totalorder %s10, 0
    %p51 = por %p49, %p50
    %p52 = scmp.ne.s32.totalorder %s44, %s46
    %p53 = scmp.eq.s32.totalorder %s15, 1
    %p54 = por %p52, %p53
    %p55 = scmp.ne.s32.totalorder %s46, %s47
    %p56 = scmp.eq.s32.totalorder %s15, 0
    %p57 = por %p55, %p56
    %p58 = scmp.ne.s32.totalorder %s46, %s47
    %p59 = scmp.eq.s32.totalorder %s16, 1
    %p60 = por %p58, %p59
    %p62 = scmp.ne.s32.totalorder %s47, %s61
    %p63 = scmp.eq.s32.totalorder %s16, 0
    %p64 = por %p62, %p63
    %s65 = ssub.s32 %s10, %s17
    %p66 = scmp.eq.s32.totalorder %s65, 0
    %s68 = sadd.s32 %s67, 1
    %s69 = scalar_select %p66, %s67, %s68
    %p72 = pneg %p66
    %p73 = scmp.eq.s32.totalorder %s10, 1
    %p74 = por %p72, %p73
    %p75 = scmp.ne.s32.totalorder %s67, %s70
    %p76 = scmp.eq.s32.totalorder %s10, 0
    %p77 = por %p75, %p76
    %p78 = scmp.ne.s32.totalorder %s67, %s70
    %p79 = scmp.eq.s32.totalorder %s15, 1
    %p80 = por %p78, %p79
    %p81 = scmp.ne.s32.totalorder %s70, %s71
    %p82 = scmp.eq.s32.totalorder %s15, 0
    %p83 = por %p81, %p82
    %p84 = scmp.ne.s32.totalorder %s70, %s71
    %p85 = scmp.eq.s32.totalorder %s16, 1
    %p86 = por %p84, %p85
    %p88 = scmp.ne.s32.totalorder %s71, %s87
    %p89 = scmp.eq.s32.totalorder %s16, 0
    %p90 = por %p88, %p89
    %s91 = ssub.s32 %s10, %s17
    %p92 = scmp.eq.s32.totalorder %s91, 0
    %s94 = sadd.s32 %s93, 1
    %s95 = scalar_select %p92, %s93, %s94
    %p98 = pneg %p92
    %p99 = scmp.eq.s32.totalorder %s10, 1
    %p100 = por %p98, %p99
    %p101 = scmp.ne.s32.totalorder %s93, %s96
    %p102 = scmp.eq.s32.totalorder %s10, 0
    %p103 = por %p101, %p102
    %p104 = scmp.ne.s32.totalorder %s93, %s96
    %p105 = scmp.eq.s32.totalorder %s15, 1
    %p106 = por %p104, %p105
    %p107 = scmp.ne.s32.totalorder %s96, %s97
    %p108 = scmp.eq.s32.totalorder %s15, 0
    %p109 = por %p107, %p108
    %p110 = scmp.ne.s32.totalorder %s96, %s97
    %p111 = scmp.eq.s32.totalorder %s16, 1
    %p112 = por %p110, %p111
    %p114 = scmp.ne.s32.totalorder %s97, %s113
    %p115 = scmp.eq.s32.totalorder %s16, 0
    %p116 = por %p114, %p115
    %s117 = ssub.s32 %s10, %s17
    %p118 = scmp.eq.s32.totalorder %s117, 0
    %s120 = sadd.s32 %s119, 1
    %s121 = scalar_select %p118, %s119, %s120
    %p124 = pneg %p118
    %p125 = scmp.eq.s32.totalorder %s10, 1
    %p126 = por %p124, %p125
    %p127 = scmp.ne.s32.totalorder %s119, %s122
    %p128 = scmp.eq.s32.totalorder %s10, 0
    %p129 = por %p127, %p128
    %p130 = scmp.ne.s32.totalorder %s119, %s122
    %p131 = scmp.eq.s32.totalorder %s15, 1
    %p132 = por %p130, %p131
    %p133 = scmp.ne.s32.totalorder %s122, %s123
    %p134 = scmp.eq.s32.totalorder %s15, 0
    %p135 = por %p133, %p134
    %p136 = scmp.ne.s32.totalorder %s122, %s123
    %p137 = scmp.eq.s32.totalorder %s16, 1
    %p138 = por %p136, %p137
    %p140 = scmp.ne.s32.totalorder %s123, %s139
    %p141 = scmp.eq.s32.totalorder %s16, 0
    %p142 = por %p140, %p141
    %p143 = scmp.le.s32.totalorder 1, %s10
    %p144 = scmp.lt.s32.totalorder %s10, 3
    %p145 = pnand %p143, %p144
    %p146 = pneg %p145
    // Predicated region
    $region9: #{discriminator128_forward.9} parent=5 // pred_check
      _
    $region10: #{discriminator128_forward.9} parent=5 // pred_check_branch
      %148 = sbr.rel (%p145) target = $region12
    $region11: #{discriminator128_forward.9} parent=5 // pred_region
      %s149 = ssub.s32 %s10, 1
      // Predicated region
      $region13: #{discriminator128_forward.9} parent=11 // pred_check
        %p150 = pneg %p57
      $region14: #{discriminator128_forward.9} parent=11 // pred_check_branch
        %152 = sbr.rel (%p150) target = $region16
      $region15: #{discriminator128_forward.9} parent=11 // pred_region
        _
      $region16: #{discriminator128_forward.9} parent=11 // pred_fallthru
        _
    $region12: #{discriminator128_forward.9} parent=5 // pred_fallthru
      _
    %p153 = scmp.lt.s32.totalorder %s10, 2
    // Predicated region
    $region17: #{discriminator128_forward.9} parent=5 // pred_check
      %p154 = pneg %p153
    $region18: #{discriminator128_forward.9} parent=5 // pred_check_branch
      %156 = sbr.rel (%p154) target = $region20
    $region19: #{discriminator128_forward.9} parent=5 // pred_region
      // Predicated region
      $region21: #{discriminator128_forward.9} parent=19 // pred_check
        %p157 = pneg %p30
      $region22: #{discriminator128_forward.9} parent=19 // pred_check_branch
        %159 = sbr.rel (%p157) target = $region24
      $region23: #{discriminator128_forward.9} parent=19 // pred_region
        %s160 = smul.u32 4, %s10
        %p161 = scmp.lt.s32.totalorder %s160, 7
        %s162 = scalar_select %p161, %s160, 7
        %s163 = smul.addr %s162, 4
        %s164 = smul.addr %s163, 8
        %s165 = scalar_lea.vmem %s0, %s164
        %s166 = smul.u32 4, %s10
      $region24: #{discriminator128_forward.9} parent=19 // pred_fallthru
        _
      // Predicated region
      $region25: #{discriminator128_forward.9} parent=19 // pred_check
        %p167 = pneg %p77
      $region26: #{discriminator128_forward.9} parent=19 // pred_check_branch
        %169 = sbr.rel (%p167) target = $region28
      $region27: #{discriminator128_forward.9} parent=19 // pred_region
        %s170 = smul.u32 4, %s10
        %p171 = scmp.lt.s32.totalorder %s170, 7
        %s172 = scalar_select %p171, %s170, 7
        %s173 = smul.addr %s172, 8
        %s174 = scalar_lea.vmem %s2, %s173
        %s175 = smul.u32 4, %s10
      $region28: #{discriminator128_forward.9} parent=19 // pred_fallthru
        _
      // Predicated region
      $region29: #{discriminator128_forward.9} parent=19 // pred_check
        %p176 = pneg %p103
      $region30: #{discriminator128_forward.9} parent=19 // pred_check_branch
        %178 = sbr.rel (%p176) target = $region32
      $region31: #{discriminator128_forward.9} parent=19 // pred_region
        %s179 = smul.u32 4, %s10
        %p180 = scmp.lt.s32.totalorder %s179, 7
        %s181 = scalar_select %p180, %s179, 7
        %s182 = smul.addr %s181, 8
        %s183 = scalar_lea.vmem %s3, %s182
        %s184 = smul.u32 4, %s10
      $region32: #{discriminator128_forward.9} parent=19 // pred_fallthru
        _
    $region20: #{discriminator128_forward.9} parent=5 // pred_fallthru
      _
    %p185 = scmp.le.s32.totalorder 1, %s10
    %p186 = scmp.lt.s32.totalorder %s10, 3
    %p187 = pnand %p185, %p186
    %p188 = pneg %p187
    // Predicated region
    $region33: #{discriminator128_forward.9} parent=5 // pred_check
      _
    $region34: #{discriminator128_forward.9} parent=5 // pred_check_branch
      %190 = sbr.rel (%p187) target = $region36
    $region35: #{discriminator128_forward.9} parent=5 // pred_region
      %s191 = ssub.s32 %s10, 1
      %s192 = smul.u32 4, %s15
      %p193 = scmp.lt.s32.totalorder %s192, 7
      %s194 = scalar_select %p193, %s192, 7
      %s195 = smul.addr %s194, 4
      %s196 = smul.addr %s195, 8
      %s197 = scalar_lea.vmem %s0, %s196
      %p198 = pneg %p36
      %p199 = pneg %p33
      %p200 = pneg %p57
      %p201 = pneg %p54
      %s202 = smul.u32 4, %s15
      %p203 = scmp.lt.s32.totalorder %s202, 7
      %s204 = scalar_select %p203, %s202, 7
      %s205 = smul.addr %s204, 8
      %s206 = scalar_lea.vmem %s2, %s205
      %p207 = pneg %p83
      %p208 = pneg %p80
      %s209 = smul.u32 4, %s15
      %p210 = scmp.lt.s32.totalorder %s209, 7
      %s211 = scalar_select %p210, %s209, 7
      %s212 = smul.addr %s211, 8
      %s213 = scalar_lea.vmem %s3, %s212
      %p214 = pneg %p109
      %p215 = pneg %p106
      %p216 = pneg %p135
      %p217 = pneg %p132
      %s218 = smul.u32 4, %s15
      %p219 = scmp.lt.s32.totalorder %s218, 7
      %s220 = scalar_select %p219, %s218, 7
      %s221 = smul.addr %s220, 4
      %s222 = scalar_lea.vmem %s4, %s221
      %s223 = smul.u32 4, %s15
      %p224 = scmp.lt.s32.totalorder %s223, 7
      %s225 = scalar_select %p224, %s223, 7
      %s226 = smul.addr %s225, 4
      %s227 = smul.addr %s226, 8
      %s228 = scalar_lea.vmem %s0, %s227
      %s229 = smul.u32 4, %s15
      %s230 = smul.u32 4, %s15
      %p231 = scmp.lt.s32.totalorder %s230, 7
      %s232 = scalar_select %p231, %s230, 7
      %s233 = smul.addr %s232, 8
      %s234 = scalar_lea.vmem %s2, %s233
      %s235 = smul.u32 4, %s15
      %s236 = smul.u32 4, %s15
      %p237 = scmp.lt.s32.totalorder %s236, 7
      %s238 = scalar_select %p237, %s236, 7
      %s239 = smul.addr %s238, 8
      %s240 = scalar_lea.vmem %s3, %s239
      %s241 = smul.u32 4, %s15
      %s242 = smul.u32 4, %s15
      %p243 = scmp.lt.s32.totalorder %s242, 7
      %s244 = scalar_select %p243, %s242, 7
      %s245 = smul.addr %s244, 4
      %s246 = scalar_lea.vmem %s4, %s245
      %s247 = smul.u32 4, %s15
      %v249 = vld [vmem:[%s228] sm:$0xff]
      %v250 = vld [vmem:[%s228 + $0x8] sm:$0xff]
      %v251 = vld [vmem:[%s228 + $0x10] sm:$0xff]
      %v252 = vld [vmem:[%s228 + $0x18] sm:$0xff]
      %v253 = vld [vmem:[%s228 + $0x20] sm:$0xff]
      %v254 = vld [vmem:[%s228 + $0x28] sm:$0xff]
      %v255 = vld [vmem:[%s228 + $0x30] sm:$0xff]
      %v256 = vld [vmem:[%s228 + $0x38] sm:$0xff]
      %v257 = vld [vmem:[%s228 + $0x40] sm:$0xff]
      %v258 = vld [vmem:[%s228 + $0x48] sm:$0xff]
      %v259 = vld [vmem:[%s228 + $0x50] sm:$0xff]
      %v260 = vld [vmem:[%s228 + $0x58] sm:$0xff]
      %v261 = vld [vmem:[%s228 + $0x60] sm:$0xff]
      %v262 = vld [vmem:[%s228 + $0x68] sm:$0xff]
      %v263 = vld [vmem:[%s228 + $0x70] sm:$0xff]
      %v264 = vld [vmem:[%s228 + $0x78] sm:$0xff]
      %v265 = vpack.c.bf16 %v253, %v249
      %v266 = vpack.c.bf16 %v254, %v250
      %v267 = vpack.c.bf16 %v255, %v251
      %v268 = vpack.c.bf16 %v256, %v252
      %v269 = vpack.c.bf16 %v261, %v257
      %v270 = vpack.c.bf16 %v262, %v258
      %v271 = vpack.c.bf16 %v263, %v259
      %v272 = vpack.c.bf16 %v264, %v260
      %v273 = vld [vmem:[%s1] sm:$0xf]
      %v274 = vld [vmem:[%s1 + $0x4] sm:$0xf]
      %v275 = vld [vmem:[%s1 + $0x8] sm:$0xf]
      %v276 = vld [vmem:[%s1 + $0xc] sm:$0xf]
      %v277 = vld [vmem:[%s1 + $0x10] sm:$0xf]
      %v278 = vld [vmem:[%s1 + $0x14] sm:$0xf]
      %v279 = vld [vmem:[%s1 + $0x18] sm:$0xf]
      %v280 = vld [vmem:[%s1 + $0x1c] sm:$0xf]
      %v281 = vld [vmem:[%s1 + $0x20] sm:$0xf]
      %v282 = vld [vmem:[%s1 + $0x24] sm:$0xf]
      %v283 = vld [vmem:[%s1 + $0x28] sm:$0xf]
      %v284 = vld [vmem:[%s1 + $0x2c] sm:$0xf]
      %v285 = vld [vmem:[%s1 + $0x30] sm:$0xf]
      %v286 = vld [vmem:[%s1 + $0x34] sm:$0xf]
      %v287 = vld [vmem:[%s1 + $0x38] sm:$0xf]
      %v288 = vld [vmem:[%s1 + $0x3c] sm:$0xf]
      %v289 = vld [vmem:[%s1 + $0x40] sm:$0xf]
      %v290 = vld [vmem:[%s1 + $0x44] sm:$0xf]
      %v291 = vld [vmem:[%s1 + $0x48] sm:$0xf]
      %v292 = vld [vmem:[%s1 + $0x4c] sm:$0xf]
      %v293 = vld [vmem:[%s1 + $0x50] sm:$0xf]
      %v294 = vld [vmem:[%s1 + $0x54] sm:$0xf]
      %v295 = vld [vmem:[%s1 + $0x58] sm:$0xf]
      %v296 = vld [vmem:[%s1 + $0x5c] sm:$0xf]
      %v297 = vld [vmem:[%s1 + $0x60] sm:$0xf]
      %v298 = vld [vmem:[%s1 + $0x64] sm:$0xf]
      %v299 = vld [vmem:[%s1 + $0x68] sm:$0xf]
      %v300 = vld [vmem:[%s1 + $0x6c] sm:$0xf]
      %v301 = vld [vmem:[%s1 + $0x70] sm:$0xf]
      %v302 = vld [vmem:[%s1 + $0x74] sm:$0xf]
      %v303 = vld [vmem:[%s1 + $0x78] sm:$0xf]
      %v304 = vld [vmem:[%s1 + $0x7c] sm:$0xf]
      %v305 = vld [vmem:[%s1 + $0x80] sm:$0xf]
      %v306 = vld [vmem:[%s1 + $0x84] sm:$0xf]
      %v307 = vld [vmem:[%s1 + $0x88] sm:$0xf]
      %v308 = vld [vmem:[%s1 + $0x8c] sm:$0xf]
      %v309 = vld [vmem:[%s1 + $0x90] sm:$0xf]
      %v310 = vld [vmem:[%s1 + $0x94] sm:$0xf]
      %v311 = vld [vmem:[%s1 + $0x98] sm:$0xf]
      %v312 = vld [vmem:[%s1 + $0x9c] sm:$0xf]
      %v313 = vld [vmem:[%s1 + $0xa0] sm:$0xf]
      %v314 = vld [vmem:[%s1 + $0xa4] sm:$0xf]
      %v315 = vld [vmem:[%s1 + $0xa8] sm:$0xf]
      %v316 = vld [vmem:[%s1 + $0xac] sm:$0xf]
      %v317 = vld [vmem:[%s1 + $0xb0] sm:$0xf]
      %v318 = vld [vmem:[%s1 + $0xb4] sm:$0xf]
      %v319 = vld [vmem:[%s1 + $0xb8] sm:$0xf]
      %v320 = vld [vmem:[%s1 + $0xbc] sm:$0xf]
      %v321 = vld [vmem:[%s1 + $0xc0] sm:$0xf]
      %v322 = vld [vmem:[%s1 + $0xc4] sm:$0xf]
      %v323 = vld [vmem:[%s1 + $0xc8] sm:$0xf]
      %v324 = vld [vmem:[%s1 + $0xcc] sm:$0xf]
      %v325 = vld [vmem:[%s1 + $0xd0] sm:$0xf]
      %v326 = vld [vmem:[%s1 + $0xd4] sm:$0xf]
      %v327 = vld [vmem:[%s1 + $0xd8] sm:$0xf]
      %v328 = vld [vmem:[%s1 + $0xdc] sm:$0xf]
      %v329 = vld [vmem:[%s1 + $0xe0] sm:$0xf]
      %v330 = vld [vmem:[%s1 + $0xe4] sm:$0xf]
      %v331 = vld [vmem:[%s1 + $0xe8] sm:$0xf]
      %v332 = vld [vmem:[%s1 + $0xec] sm:$0xf]
      %v333 = vld [vmem:[%s1 + $0xf0] sm:$0xf]
      %v334 = vld [vmem:[%s1 + $0xf4] sm:$0xf]
      %v335 = vld [vmem:[%s1 + $0xf8] sm:$0xf]
      %v336 = vld [vmem:[%s1 + $0xfc] sm:$0xf]
      %v401 = vunpack.c.l.b16 %v273
      %v402 = vunpack.c.l.b16 %v274
      %v403 = vunpack.c.l.b16 %v275
      %v404 = vunpack.c.l.b16 %v276
      %v405 = vunpack.c.l.b16 %v277
      %v406 = vunpack.c.l.b16 %v278
      %v407 = vunpack.c.l.b16 %v279
      %v408 = vunpack.c.l.b16 %v280
      %v409 = vunpack.c.l.b16 %v281
      %v410 = vunpack.c.l.b16 %v282
      %v411 = vunpack.c.l.b16 %v283
      %v412 = vunpack.c.l.b16 %v284
      %v413 = vunpack.c.l.b16 %v285
      %v414 = vunpack.c.l.b16 %v286
      %v415 = vunpack.c.l.b16 %v287
      %v416 = vunpack.c.l.b16 %v288
      %v417 = vunpack.c.l.b16 %v289
      %v418 = vunpack.c.l.b16 %v290
      %v419 = vunpack.c.l.b16 %v291
      %v420 = vunpack.c.l.b16 %v292
      %v421 = vunpack.c.l.b16 %v293
      %v422 = vunpack.c.l.b16 %v294
      %v423 = vunpack.c.l.b16 %v295
      %v424 = vunpack.c.l.b16 %v296
      %v425 = vunpack.c.l.b16 %v297
      %v426 = vunpack.c.l.b16 %v298
      %v427 = vunpack.c.l.b16 %v299
      %v428 = vunpack.c.l.b16 %v300
      %v429 = vunpack.c.l.b16 %v301
      %v430 = vunpack.c.l.b16 %v302
      %v431 = vunpack.c.l.b16 %v303
      %v432 = vunpack.c.l.b16 %v304
      %v433 = vunpack.c.l.b16 %v305
      %v434 = vunpack.c.l.b16 %v306
      %v435 = vunpack.c.l.b16 %v307
      %v436 = vunpack.c.l.b16 %v308
      %v437 = vunpack.c.l.b16 %v309
      %v438 = vunpack.c.l.b16 %v310
      %v439 = vunpack.c.l.b16 %v311
      %v440 = vunpack.c.l.b16 %v312
      %v441 = vunpack.c.l.b16 %v313
      %v442 = vunpack.c.l.b16 %v314
      %v443 = vunpack.c.l.b16 %v315
      %v444 = vunpack.c.l.b16 %v316
      %v445 = vunpack.c.l.b16 %v317
      %v446 = vunpack.c.l.b16 %v318
      %v447 = vunpack.c.l.b16 %v319
      %v448 = vunpack.c.l.b16 %v320
      %v449 = vunpack.c.l.b16 %v321
      %v450 = vunpack.c.l.b16 %v322
      %v451 = vunpack.c.l.b16 %v323
      %v452 = vunpack.c.l.b16 %v324
      %v453 = vunpack.c.l.b16 %v325
      %v454 = vunpack.c.l.b16 %v326
      %v455 = vunpack.c.l.b16 %v327
      %v456 = vunpack.c.l.b16 %v328
      %v457 = vunpack.c.l.b16 %v329
      %v458 = vunpack.c.l.b16 %v330
      %v459 = vunpack.c.l.b16 %v331
      %v460 = vunpack.c.l.b16 %v332
      %v461 = vunpack.c.l.b16 %v333
      %v462 = vunpack.c.l.b16 %v334
      %v463 = vunpack.c.l.b16 %v335
      %v464 = vunpack.c.l.b16 %v336
      %v465 = vpack.c.b16 %v402, %v401
      %v466 = vpack.c.b16 %v404, %v403
      %v467 = vpack.c.b16 %v406, %v405
      %v468 = vpack.c.b16 %v408, %v407
      %v469 = vpack.c.b16 %v410, %v409
      %v470 = vpack.c.b16 %v412, %v411
      %v471 = vpack.c.b16 %v414, %v413
      %v472 = vpack.c.b16 %v416, %v415
      %v473 = vpack.c.b16 %v418, %v417
      %v474 = vpack.c.b16 %v420, %v419
      %v475 = vpack.c.b16 %v422, %v421
      %v476 = vpack.c.b16 %v424, %v423
      %v477 = vpack.c.b16 %v426, %v425
      %v478 = vpack.c.b16 %v428, %v427
      %v479 = vpack.c.b16 %v430, %v429
      %v480 = vpack.c.b16 %v432, %v431
      %v481 = vpack.c.b16 %v434, %v433
      %v482 = vpack.c.b16 %v436, %v435
      %v483 = vpack.c.b16 %v438, %v437
      %v484 = vpack.c.b16 %v440, %v439
      %v485 = vpack.c.b16 %v442, %v441
      %v486 = vpack.c.b16 %v444, %v443
      %v487 = vpack.c.b16 %v446, %v445
      %v488 = vpack.c.b16 %v448, %v447
      %v489 = vpack.c.b16 %v450, %v449
      %v490 = vpack.c.b16 %v452, %v451
      %v491 = vpack.c.b16 %v454, %v453
      %v492 = vpack.c.b16 %v456, %v455
      %v493 = vpack.c.b16 %v458, %v457
      %v494 = vpack.c.b16 %v460, %v459
      %v495 = vpack.c.b16 %v462, %v461
      %v496 = vpack.c.b16 %v464, %v463
      %529 = vmatprep.subr.bf16.mxu0 0
      %530 = vmatpush1.bf16.msra.mxu0 %v465
      %531 = vmatprep.subr.bf16.mxu0 0
      %532 = vmatpush1.bf16.msra.mxu0 %v466
      %533 = vmatprep.subr.bf16.mxu0 0
      %534 = vmatpush1.bf16.msra.mxu0 %v467
      %535 = vmatprep.subr.bf16.mxu0 0
      %536 = vmatpush1.bf16.msra.mxu0 %v468
      %537 = vmatprep.subr.bf16.mxu0 0
      %538 = vmatpush1.bf16.msra.mxu0 %v469
      %539 = vmatprep.subr.bf16.mxu0 0
      %540 = vmatpush1.bf16.msra.mxu0 %v470
      %541 = vmatprep.subr.bf16.mxu0 0
      %542 = vmatpush1.bf16.msra.mxu0 %v471
      %543 = vmatprep.subr.bf16.mxu0 0
      %544 = vmatpush1.bf16.msra.mxu0 %v472
      %545 = vmatprep.subr.bf16.mxu0 0
      %546 = vmatpush1.bf16.msra.mxu0 %v473
      %547 = vmatprep.subr.bf16.mxu0 0
      %548 = vmatpush1.bf16.msra.mxu0 %v474
      %549 = vmatprep.subr.bf16.mxu0 0
      %550 = vmatpush1.bf16.msra.mxu0 %v475
      %551 = vmatprep.subr.bf16.mxu0 0
      %552 = vmatpush1.bf16.msra.mxu0 %v476
      %553 = vmatprep.subr.bf16.mxu0 0
      %554 = vmatpush1.bf16.msra.mxu0 %v477
      %555 = vmatprep.subr.bf16.mxu0 0
      %556 = vmatpush1.bf16.msra.mxu0 %v478
      %557 = vmatprep.subr.bf16.mxu0 0
      %558 = vmatpush1.bf16.msra.mxu0 %v479
      %559 = vmatprep.subr.bf16.mxu0 0
      %560 = vmatpush1.bf16.msra.mxu0 %v480
      %561 = vmatprep.mubr.bf16.mxu0 %v266
      %562 = vmatmul.mubr.bf16.gmra.mrb[0].mxu0 %v265
      %v563 = vpop.f32.mrb[0].mxu0
      %v564 = vadd.f32 0.0, %v563
      %v565 = vpop.f32.mrb[0].mxu0
      %v566 = vpop.f32.mrb[0].mxu0
      %v567 = vadd.f32 0.0, %v566
      %v568 = vpop.f32.mrb[0].mxu0
      %569 = vmatprep.mubr.bf16.mxu0 %v270
      %570 = vmatmul.mubr.bf16.gmra.mrb[0].mxu0 %v269
      %v571 = vpop.f32.mrb[0].mxu0
      %v572 = vadd.f32 0.0, %v571
      %v573 = vpop.f32.mrb[0].mxu0
      %v574 = vpop.f32.mrb[0].mxu0
      %v575 = vadd.f32 0.0, %v574
      %v576 = vpop.f32.mrb[0].mxu0
      %577 = vdwg.mxu0
      %578 = vmatprep.subr.bf16.mxu0 0
      %579 = vmatpush1.bf16.msra.mxu0 %v481
      %580 = vmatprep.subr.bf16.mxu0 0
      %581 = vmatpush1.bf16.msra.mxu0 %v482
      %582 = vmatprep.subr.bf16.mxu0 0
      %583 = vmatpush1.bf16.msra.mxu0 %v483
      %584 = vmatprep.subr.bf16.mxu0 0
      %585 = vmatpush1.bf16.msra.mxu0 %v484
      %586 = vmatprep.subr.bf16.mxu0 0
      %587 = vmatpush1.bf16.msra.mxu0 %v485
      %588 = vmatprep.subr.bf16.mxu0 0
      %589 = vmatpush1.bf16.msra.mxu0 %v486
      %590 = vmatprep.subr.bf16.mxu0 0
      %591 = vmatpush1.bf16.msra.mxu0 %v487
      %592 = vmatprep.subr.bf16.mxu0 0
      %593 = vmatpush1.bf16.msra.mxu0 %v488
      %594 = vmatprep.subr.bf16.mxu0 0
      %595 = vmatpush1.bf16.msra.mxu0 %v489
      %596 = vmatprep.subr.bf16.mxu0 0
      %597 = vmatpush1.bf16.msra.mxu0 %v490
      %598 = vmatprep.subr.bf16.mxu0 0
      %599 = vmatpush1.bf16.msra.mxu0 %v491
      %600 = vmatprep.subr.bf16.mxu0 0
      %601 = vmatpush1.bf16.msra.mxu0 %v492
      %602 = vmatprep.subr.bf16.mxu0 0
      %603 = vmatpush1.bf16.msra.mxu0 %v493
      %604 = vmatprep.subr.bf16.mxu0 0
      %605 = vmatpush1.bf16.msra.mxu0 %v494
      %606 = vmatprep.subr.bf16.mxu0 0
      %607 = vmatpush1.bf16.msra.mxu0 %v495
      %608 = vmatprep.subr.bf16.mxu0 0
      %609 = vmatpush1.bf16.msra.mxu0 %v496
      %610 = vmatprep.mubr.bf16.mxu0 %v268
      %611 = vmatmul.mubr.bf16.gmra.mrb[0].mxu0 %v267
      %v612 = vpop.f32.mrb[0].mxu0
      %v613 = vadd.f32 %v564, %v612
      %v614 = vpop.f32.mrb[0].mxu0
      %v615 = vpop.f32.mrb[0].mxu0
      %v616 = vadd.f32 %v567, %v615
      %v617 = vpop.f32.mrb[0].mxu0
      %618 = vmatprep.mubr.bf16.mxu0 %v272
      %619 = vmatmul.mubr.bf16.gmra.mrb[0].mxu0 %v271
      %v620 = vpop.f32.mrb[0].mxu0
      %v621 = vadd.f32 %v572, %v620
      %v622 = vpop.f32.mrb[0].mxu0
      %v623 = vpop.f32.mrb[0].mxu0
      %v624 = vadd.f32 %v575, %v623
      %v625 = vpop.f32.mrb[0].mxu0
      %626 = vdwg.mxu0
      %627 = vadd.xlane.f32.xlu0 %v613
      %v628 = vpop.xlane.xlu0 %627
      %629 = vadd.xlane.f32.xlu0 %v616
      %v630 = vpop.xlane.xlu0 %629
      %631 = vadd.xlane.f32.xlu0 %v621
      %v632 = vpop.xlane.xlu0 %631
      %633 = vadd.xlane.f32.xlu0 %v624
      %v634 = vpop.xlane.xlu0 %633
      %v635 = vmul.f32 %v628, 0.0078125
      %v636 = vmul.f32 %v630, 0.0078125
      %v637 = vmul.f32 %v632, 0.0078125
      %v638 = vmul.f32 %v634, 0.0078125
      %v639 = vmul.f32 %v613, %v613
      %v640 = vmul.f32 %v616, %v616
      %v641 = vmul.f32 %v621, %v621
      %v642 = vmul.f32 %v624, %v624
      %643 = vadd.xlane.f32.xlu0 %v639
      %v644 = vpop.xlane.xlu0 %643
      %645 = vadd.xlane.f32.xlu0 %v640
      %v646 = vpop.xlane.xlu0 %645
      %647 = vadd.xlane.f32.xlu0 %v641
      %v648 = vpop.xlane.xlu0 %647
      %649 = vadd.xlane.f32.xlu0 %v642
      %v650 = vpop.xlane.xlu0 %649
      %v651 = vmul.f32 %v644, 0.0078125
      %v652 = vmul.f32 %v646, 0.0078125
      %v653 = vmul.f32 %v648, 0.0078125
      %v654 = vmul.f32 %v650, 0.0078125
      %v655 = vmul.f32 %v635, %v635
      %v656 = vmul.f32 %v636, %v636
      %v657 = vmul.f32 %v637, %v637
      %v658 = vmul.f32 %v638, %v638
      %v659 = vsub.f32 %v651, %v655
      %v660 = vsub.f32 %v652, %v656
      %v661 = vsub.f32 %v653, %v657
      %v662 = vsub.f32 %v654, %v658
      %v663 = vmax.f32 %v659, 0.0
      %v664 = vmax.f32 %v660, 0.0
      %v665 = vmax.f32 %v661, 0.0
      %v666 = vmax.f32 %v662, 0.0
      %v667 = vld [vmem:[%s234] sm:$0xff]
      %v668 = vld [vmem:[%s234 + $0x8] sm:$0xff]
      %v669 = vld [vmem:[%s234 + $0x10] sm:$0xff]
      %v670 = vld [vmem:[%s234 + $0x18] sm:$0xff]
      %v671 = vadd.f32 %v663, 1e-05
      %v672 = vadd.f32 %v664, 1e-05
      %v673 = vadd.f32 %v665, 1e-05
      %v674 = vadd.f32 %v666, 1e-05
      %v675 = vrsqrt.pop %v671
      %v676 = vrsqrt.pop %v672
      %v677 = vrsqrt.pop %v673
      %v678 = vrsqrt.pop %v674
      %v679 = vmul.f32 %v667, %v675
      %v680 = vmul.f32 %v668, %v676
      %v681 = vmul.f32 %v669, %v677
      %v682 = vmul.f32 %v670, %v678
      %v683 = vld [vmem:[%s240] sm:$0xff]
      %v684 = vld [vmem:[%s240 + $0x8] sm:$0xff]
      %v685 = vld [vmem:[%s240 + $0x10] sm:$0xff]
      %v686 = vld [vmem:[%s240 + $0x18] sm:$0xff]
      %v687 = vmul.f32 %v635, %v679
      %v688 = vmul.f32 %v636, %v680
      %v689 = vmul.f32 %v637, %v681
      %v690 = vmul.f32 %v638, %v682
      %v691 = vsub.f32 %v683, %v687
      %v692 = vsub.f32 %v684, %v688
      %v693 = vsub.f32 %v685, %v689
      %v694 = vsub.f32 %v686, %v690
      %696 = vset.pattern.permute.xlu0 0
      %697 = vperm.xlu0 %696, %v679
      %v698 = vpop.permute.xlu0 %697
      %701 = vset.pattern.permute.xlu0 0
      %702 = vperm.xlu0 %701, %v680
      %v703 = vpop.permute.xlu0 %702
      %706 = vset.pattern.permute.xlu0 0
      %707 = vperm.xlu0 %706, %v681
      %v708 = vpop.permute.xlu0 %707
      %711 = vset.pattern.permute.xlu0 0
      %712 = vperm.xlu0 %711, %v682
      %v713 = vpop.permute.xlu0 %712
      %v715 = vmul.f32 %v613, %v698
      %v716 = vmul.f32 %v616, %v703
      %v717 = vmul.f32 %v621, %v708
      %v718 = vmul.f32 %v624, %v713
      %720 = vset.pattern.permute.xlu0 0
      %721 = vperm.xlu0 %720, %v691
      %v722 = vpop.permute.xlu0 %721
      %725 = vset.pattern.permute.xlu0 0
      %726 = vperm.xlu0 %725, %v692
      %v727 = vpop.permute.xlu0 %726
      %730 = vset.pattern.permute.xlu0 0
      %731 = vperm.xlu0 %730, %v693
      %v732 = vpop.permute.xlu0 %731
      %735 = vset.pattern.permute.xlu0 0
      %736 = vperm.xlu0 %735, %v694
      %v737 = vpop.permute.xlu0 %736
      %v739 = vadd.f32 %v715, %v722
      %v740 = vadd.f32 %v716, %v727
      %v741 = vadd.f32 %v717, %v732
      %v742 = vadd.f32 %v718, %v737
      %vm743 = vcmp.gt.f32.partialorder %v739, 0.0
      %vm744 = vcmp.gt.f32.partialorder %v740, 0.0
      %vm745 = vcmp.gt.f32.partialorder %v741, 0.0
      %vm746 = vcmp.gt.f32.partialorder %v742, 0.0
      %v747 = vmul.f32 %v739, 0.2
      %v748 = vmul.f32 %v740, 0.2
      %v749 = vmul.f32 %v741, 0.2
      %v750 = vmul.f32 %v742, 0.2
      %v751 = vsel %vm743, %v739, %v747
      %v752 = vsel %vm744, %v740, %v748
      %v753 = vsel %vm745, %v741, %v749
      %v754 = vsel %vm746, %v742, %v750
      %v755 = vpack.c.bf16 %v752, %v751
      %v756 = vpack.c.bf16 %v754, %v753
      %v759 = vunpack.c.l.b16 %v755
      %v760 = vunpack.c.h.b16 %v755
      %v761 = vunpack.c.l.b16 %v756
      %v762 = vunpack.c.h.b16 %v756
      %v763 = vpack.c.b16 %v759, %v759
      %v764 = vpack.c.b16 %v760, %v760
      %v765 = vpack.c.b16 %v761, %v761
      %v766 = vpack.c.b16 %v762, %v762
      %771 = vst [vmem:[%s246] sm:$0xf] %v763
      %772 = vst [vmem:[%s246 + $0x4] sm:$0xf] %v764
      %773 = vst [vmem:[%s246 + $0x8] sm:$0xf] %v765
      %774 = vst [vmem:[%s246 + $0xc] sm:$0xf] %v766
      %s775 = smul.u32 4, %s15
      %p776 = scmp.lt.s32.totalorder %s775, 7
      %s777 = scalar_select %p776, %s775, 7
      %s778 = smul.addr %s777, 4
      %s779 = scalar_lea.vmem %s4, %s778
      // Predicated region
      $region37: #{discriminator128_forward.9} parent=35 // pred_check
        %p780 = pneg %p132
      $region38: #{discriminator128_forward.9} parent=35 // pred_check_branch
        %782 = sbr.rel (%p780) target = $region40
      $region39: #{discriminator128_forward.9} parent=35 // pred_region
        %s783 = smul.u32 4, %s15
      $region40: #{discriminator128_forward.9} parent=35 // pred_fallthru
        _
    $region36: #{discriminator128_forward.9} parent=5 // pred_fallthru
      _
    %p784 = scmp.le.s32.totalorder 2, %s10
    // Predicated region
    $region41: #{discriminator128_forward.9} parent=5 // pred_check
      %p785 = pneg %p784
    $region42: #{discriminator128_forward.9} parent=5 // pred_check_branch
      %787 = sbr.rel (%p785) target = $region44
    $region43: #{discriminator128_forward.9} parent=5 // pred_region
      %s788 = ssub.s32 %s10, 2
      // Predicated region
      $region45: #{discriminator128_forward.9} parent=43 // pred_check
        %p789 = pneg %p138
      $region46: #{discriminator128_forward.9} parent=43 // pred_check_branch
        %791 = sbr.rel (%p789) target = $region48
      $region47: #{discriminator128_forward.9} parent=43 // pred_region
        %s792 = smul.u32 4, %s16
        %p793 = scmp.lt.s32.totalorder %s792, 7
        %s794 = scalar_select %p793, %s792, 7
        %s795 = smul.addr %s794, 4
        %s796 = scalar_lea.vmem %s4, %s795
      $region48: #{discriminator128_forward.9} parent=43 // pred_fallthru
        _
    $region44: #{discriminator128_forward.9} parent=5 // pred_fallthru
      _
  $region6: #{discriminator128_forward.9} parent=0 // loop_footer
    %s14 = sadd.s32 1, %s10
  $region7: #{discriminator128_forward.9} parent=0 // loop_footer_branch
    %9 = sbr.rel target = $region3
  $region8: #{discriminator128_forward.9} parent=0 // loop_exit
    _

// kernel: discriminator128_forward.10
$region0: #{discriminator128_forward.10}
  #allocation0 [shape = 'u32[]', space=smem, size = 0x4, offset = 0x4, fixed_abs, tag = 'smem constant byte address 0x4 - core index']
  #allocation1 [shape = 'u32[144,128]{1,0:T(1,128)}', space=vmem, size = 0x12000, scoped, tag = 'internal scratch']
  %s0 = inlined_call_operand.vmem [shape: f32[32,1024], index: 0, kind: input, shape index: {}]
  %s1 = inlined_call_operand.vmem [shape: bf16[1024,32], index: 1, kind: input, shape index: {}]
  %s2 = inlined_call_operand.vmem [shape: f32[32,1], index: 2, kind: input, shape index: {}]
  %s3 = inlined_call_operand.vmem [shape: f32[32,1], index: 3, kind: input, shape index: {}]
  %s4 = inlined_call_operand.vmem [shape: bf16[32,32], index: 4, kind: output, shape index: {}]
  %s5 = sld [smem:[#allocation0]]
  $region49: #{discriminator128_forward.10} parent=0
    _
  %s7 = ssub.s32 1, %s5
  %s8 = scalar_select 0, %s7, %s5
  loop: start=0, step=1, limit=4
  $region2: #{discriminator128_forward.10} parent=0 // loop_pre_header
    _
  $region3: #{discriminator128_forward.10} parent=0 // loop_header
    %s10 = sphi 0, %s14
    %p11 = scmp.ge.s32.totalorder %s10, 4
    %s20 = sphi 0, %s22
    %s23 = sphi 0, %s20
    %s24 = sphi 0, %s23
    %s40 = sphi 0, %s24
    %s44 = sphi 0, %s44
    %s46 = sphi 0, %s44
    %s47 = sphi 0, %s46
    %s61 = sphi 0, %s47
    %s67 = sphi 0, %s69
    %s70 = sphi 0, %s67
    %s71 = sphi 0, %s70
    %s87 = sphi 0, %s71
    %s93 = sphi 0, %s95
    %s96 = sphi 0, %s93
    %s97 = sphi 0, %s96
    %s113 = sphi 0, %s97
    %s119 = sphi 0, %s121
    %s122 = sphi 0, %s119
    %s123 = sphi 0, %s122
    %s139 = sphi 0, %s123
  $region4: #{discriminator128_forward.10} parent=0 // loop_header_branch
    %13 = sbr.rel (%p11) target = $region8
  $region5: #{discriminator128_forward.10} parent=0 // loop_body
    %s15 = ssub.s32 %s10, 1
    %s16 = ssub.s32 %s10, 2
    %s17 = sadd.s32 %s10, 1
    %s18 = ssub.s32 %s10, %s17
    %p19 = scmp.eq.s32.totalorder %s18, 0
    %s21 = sadd.s32 %s20, 1
    %s22 = scalar_select %p19, %s20, %s21
    %p25 = pneg %p19
    %p26 = scmp.eq.s32.totalorder %s10, 1
    %p27 = por %p25, %p26
    %p28 = scmp.ne.s32.totalorder %s20, %s23
    %p29 = scmp.eq.s32.totalorder %s10, 0
    %p30 = por %p28, %p29
    %p31 = scmp.ne.s32.totalorder %s20, %s23
    %p32 = scmp.eq.s32.totalorder %s15, 1
    %p33 = por %p31, %p32
    %p34 = scmp.ne.s32.totalorder %s23, %s24
    %p35 = scmp.eq.s32.totalorder %s15, 0
    %p36 = por %p34, %p35
    %p37 = scmp.ne.s32.totalorder %s23, %s24
    %p38 = scmp.eq.s32.totalorder %s16, 1
    %p39 = por %p37, %p38
    %p41 = scmp.ne.s32.totalorder %s24, %s40
    %p42 = scmp.eq.s32.totalorder %s16, 0
    %p43 = por %p41, %p42
    %s45 = sadd.s32 %s44, 1
    %p48 = scmp.eq.s32.totalorder %s10, 1
    %p49 = scmp.ne.s32.totalorder %s44, %s46
    %p50 = scmp.eq.s32.totalorder %s10, 0
    %p51 = por %p49, %p50
    %p52 = scmp.ne.s32.totalorder %s44, %s46
    %p53 = scmp.eq.s32.totalorder %s15, 1
    %p54 = por %p52, %p53
    %p55 = scmp.ne.s32.totalorder %s46, %s47
    %p56 = scmp.eq.s32.totalorder %s15, 0
    %p57 = por %p55, %p56
    %p58 = scmp.ne.s32.totalorder %s46, %s47
    %p59 = scmp.eq.s32.totalorder %s16, 1
    %p60 = por %p58, %p59
    %p62 = scmp.ne.s32.totalorder %s47, %s61
    %p63 = scmp.eq.s32.totalorder %s16, 0
    %p64 = por %p62, %p63
    %s65 = ssub.s32 %s10, %s17
    %p66 = scmp.eq.s32.totalorder %s65, 0
    %s68 = sadd.s32 %s67, 1
    %s69 = scalar_select %p66, %s67, %s68
    %p72 = pneg %p66
    %p73 = scmp.eq.s32.totalorder %s10, 1
    %p74 = por %p72, %p73
    %p75 = scmp.ne.s32.totalorder %s67, %s70
    %p76 = scmp.eq.s32.totalorder %s10, 0
    %p77 = por %p75, %p76
    %p78 = scmp.ne.s32.totalorder %s67, %s70
    %p79 = scmp.eq.s32.totalorder %s15, 1
    %p80 = por %p78, %p79
    %p81 = scmp.ne.s32.totalorder %s70, %s71
    %p82 = scmp.eq.s32.totalorder %s15, 0
    %p83 = por %p81, %p82
    %p84 = scmp.ne.s32.totalorder %s70, %s71
    %p85 = scmp.eq.s32.totalorder %s16, 1
    %p86 = por %p84, %p85
    %p88 = scmp.ne.s32.totalorder %s71, %s87
    %p89 = scmp.eq.s32.totalorder %s16, 0
    %p90 = por %p88, %p89
    %s91 = ssub.s32 %s10, %s17
    %p92 = scmp.eq.s32.totalorder %s91, 0
    %s94 = sadd.s32 %s93, 1
    %s95 = scalar_select %p92, %s93, %s94
    %p98 = pneg %p92
    %p99 = scmp.eq.s32.totalorder %s10, 1
    %p100 = por %p98, %p99
    %p101 = scmp.ne.s32.totalorder %s93, %s96
    %p102 = scmp.eq.s32.totalorder %s10, 0
    %p103 = por %p101, %p102
    %p104 = scmp.ne.s32.totalorder %s93, %s96
    %p105 = scmp.eq.s32.totalorder %s15, 1
    %p106 = por %p104, %p105
    %p107 = scmp.ne.s32.totalorder %s96, %s97
    %p108 = scmp.eq.s32.totalorder %s15, 0
    %p109 = por %p107, %p108
    %p110 = scmp.ne.s32.totalorder %s96, %s97
    %p111 = scmp.eq.s32.totalorder %s16, 1
    %p112 = por %p110, %p111
    %p114 = scmp.ne.s32.totalorder %s97, %s113
    %p115 = scmp.eq.s32.totalorder %s16, 0
    %p116 = por %p114, %p115
    %s117 = ssub.s32 %s10, %s17
    %p118 = scmp.eq.s32.totalorder %s117, 0
    %s120 = sadd.s32 %s119, 1
    %s121 = scalar_select %p118, %s119, %s120
    %p124 = pneg %p118
    %p125 = scmp.eq.s32.totalorder %s10, 1
    %p126 = por %p124, %p125
    %p127 = scmp.ne.s32.totalorder %s119, %s122
    %p128 = scmp.eq.s32.totalorder %s10, 0
    %p129 = por %p127, %p128
    %p130 = scmp.ne.s32.totalorder %s119, %s122
    %p131 = scmp.eq.s32.totalorder %s15, 1
    %p132 = por %p130, %p131
    %p133 = scmp.ne.s32.totalorder %s122, %s123
    %p134 = scmp.eq.s32.totalorder %s15, 0
    %p135 = por %p133, %p134
    %p136 = scmp.ne.s32.totalorder %s122, %s123
    %p137 = scmp.eq.s32.totalorder %s16, 1
    %p138 = por %p136, %p137
    %p140 = scmp.ne.s32.totalorder %s123, %s139
    %p141 = scmp.eq.s32.totalorder %s16, 0
    %p142 = por %p140, %p141
    %p143 = scmp.le.s32.totalorder 1, %s10
    %p144 = scmp.lt.s32.totalorder %s10, 3
    %p145 = pnand %p143, %p144
    %p146 = pneg %p145
    // Predicated region
    $region9: #{discriminator128_forward.10} parent=5 // pred_check
      _
    $region10: #{discriminator128_forward.10} parent=5 // pred_check_branch
      %148 = sbr.rel (%p145) target = $region12
    $region11: #{discriminator128_forward.10} parent=5 // pred_region
      %s149 = ssub.s32 %s10, 1
      // Predicated region
      $region13: #{discriminator128_forward.10} parent=11 // pred_check
        %p150 = pneg %p57
      $region14: #{discriminator128_forward.10} parent=11 // pred_check_branch
        %152 = sbr.rel (%p150) target = $region16
      $region15: #{discriminator128_forward.10} parent=11 // pred_region
        _
      $region16: #{discriminator128_forward.10} parent=11 // pred_fallthru
        _
    $region12: #{discriminator128_forward.10} parent=5 // pred_fallthru
      _
    %p153 = scmp.lt.s32.totalorder %s10, 2
    // Predicated region
    $region17: #{discriminator128_forward.10} parent=5 // pred_check
      %p154 = pneg %p153
    $region18: #{discriminator128_forward.10} parent=5 // pred_check_branch
      %156 = sbr.rel (%p154) target = $region20
    $region19: #{discriminator128_forward.10} parent=5 // pred_region
      // Predicated region
      $region21: #{discriminator128_forward.10} parent=19 // pred_check
        %p157 = pneg %p30
      $region22: #{discriminator128_forward.10} parent=19 // pred_check_branch
        %159 = sbr.rel (%p157) target = $region24
      $region23: #{discriminator128_forward.10} parent=19 // pred_region
        %s160 = smul.u32 2, %s10
        %p161 = scmp.lt.s32.totalorder %s160, 3
        %s162 = scalar_select %p161, %s160, 3
        %s163 = smul.addr %s162, 8
        %s164 = smul.addr %s163, 8
        %s165 = scalar_lea.vmem %s0, %s164
        %s166 = smul.u32 2, %s10
      $region24: #{discriminator128_forward.10} parent=19 // pred_fallthru
        _
      // Predicated region
      $region25: #{discriminator128_forward.10} parent=19 // pred_check
        %p167 = pneg %p77
      $region26: #{discriminator128_forward.10} parent=19 // pred_check_branch
        %169 = sbr.rel (%p167) target = $region28
      $region27: #{discriminator128_forward.10} parent=19 // pred_region
        %s170 = smul.u32 2, %s10
        %p171 = scmp.lt.s32.totalorder %s170, 3
        %s172 = scalar_select %p171, %s170, 3
        %s173 = smul.addr %s172, 8
        %s174 = scalar_lea.vmem %s2, %s173
        %s175 = smul.u32 2, %s10
      $region28: #{discriminator128_forward.10} parent=19 // pred_fallthru
        _
      // Predicated region
      $region29: #{discriminator128_forward.10} parent=19 // pred_check
        %p176 = pneg %p103
      $region30: #{discriminator128_forward.10} parent=19 // pred_check_branch
        %178 = sbr.rel (%p176) target = $region32
      $region31: #{discriminator128_forward.10} parent=19 // pred_region
        %s179 = smul.u32 2, %s10
        %p180 = scmp.lt.s32.totalorder %s179, 3
        %s181 = scalar_select %p180, %s179, 3
        %s182 = smul.addr %s181, 8
        %s183 = scalar_lea.vmem %s3, %s182
        %s184 = smul.u32 2, %s10
      $region32: #{discriminator128_forward.10} parent=19 // pred_fallthru
        _
    $region20: #{discriminator128_forward.10} parent=5 // pred_fallthru
      _
    %p185 = scmp.le.s32.totalorder 1, %s10
    %p186 = scmp.lt.s32.totalorder %s10, 3
    %p187 = pnand %p185, %p186
    %p188 = pneg %p187
    // Predicated region
    $region33: #{discriminator128_forward.10} parent=5 // pred_check
      _
    $region34: #{discriminator128_forward.10} parent=5 // pred_check_branch
      %190 = sbr.rel (%p187) target = $region36
    $region35: #{discriminator128_forward.10} parent=5 // pred_region
      %s191 = ssub.s32 %s10, 1
      %s192 = smul.u32 2, %s15
      %p193 = scmp.lt.s32.totalorder %s192, 3
      %s194 = scalar_select %p193, %s192, 3
      %s195 = smul.addr %s194, 8
      %s196 = smul.addr %s195, 8
      %s197 = scalar_lea.vmem %s0, %s196
      %p198 = pneg %p36
      %p199 = pneg %p33
      %p200 = pneg %p57
      %p201 = pneg %p54
      %s202 = smul.u32 2, %s15
      %p203 = scmp.lt.s32.totalorder %s202, 3
      %s204 = scalar_select %p203, %s202, 3
      %s205 = smul.addr %s204, 8
      %s206 = scalar_lea.vmem %s2, %s205
      %p207 = pneg %p83
      %p208 = pneg %p80
      %s209 = smul.u32 2, %s15
      %p210 = scmp.lt.s32.totalorder %s209, 3
      %s211 = scalar_select %p210, %s209, 3
      %s212 = smul.addr %s211, 8
      %s213 = scalar_lea.vmem %s3, %s212
      %p214 = pneg %p109
      %p215 = pneg %p106
      %p216 = pneg %p135
      %p217 = pneg %p132
      %s218 = smul.u32 2, %s15
      %p219 = scmp.lt.s32.totalorder %s218, 3
      %s220 = scalar_select %p219, %s218, 3
      %s221 = smul.addr %s220, 4
      %s222 = scalar_lea.vmem %s4, %s221
      %s223 = smul.u32 2, %s15
      %p224 = scmp.lt.s32.totalorder %s223, 3
      %s225 = scalar_select %p224, %s223, 3
      %s226 = smul.addr %s225, 8
      %s227 = smul.addr %s226, 8
      %s228 = scalar_lea.vmem %s0, %s227
      %s229 = smul.u32 2, %s15
      %s230 = smul.u32 2, %s15
      %p231 = scmp.lt.s32.totalorder %s230, 3
      %s232 = scalar_select %p231, %s230, 3
      %s233 = smul.addr %s232, 8
      %s234 = scalar_lea.vmem %s2, %s233
      %s235 = smul.u32 2, %s15
      %s236 = smul.u32 2, %s15
      %p237 = scmp.lt.s32.totalorder %s236, 3
      %s238 = scalar_select %p237, %s236, 3
      %s239 = smul.addr %s238, 8
      %s240 = scalar_lea.vmem %s3, %s239
      %s241 = smul.u32 2, %s15
      %s242 = smul.u32 2, %s15
      %p243 = scmp.lt.s32.totalorder %s242, 3
      %s244 = scalar_select %p243, %s242, 3
      %s245 = smul.addr %s244, 4
      %s246 = scalar_lea.vmem %s4, %s245
      %s247 = smul.u32 2, %s15
      %v249 = vld [vmem:[%s228] sm:$0xff]
      %v250 = vld [vmem:[%s228 + $0x8] sm:$0xff]
      %v251 = vld [vmem:[%s228 + $0x10] sm:$0xff]
      %v252 = vld [vmem:[%s228 + $0x18] sm:$0xff]
      %v253 = vld [vmem:[%s228 + $0x20] sm:$0xff]
      %v254 = vld [vmem:[%s228 + $0x28] sm:$0xff]
      %v255 = vld [vmem:[%s228 + $0x30] sm:$0xff]
      %v256 = vld [vmem:[%s228 + $0x38] sm:$0xff]
      %v257 = vld [vmem:[%s228 + $0x40] sm:$0xff]
      %v258 = vld [vmem:[%s228 + $0x48] sm:$0xff]
      %v259 = vld [vmem:[%s228 + $0x50] sm:$0xff]
      %v260 = vld [vmem:[%s228 + $0x58] sm:$0xff]
      %v261 = vld [vmem:[%s228 + $0x60] sm:$0xff]
      %v262 = vld [vmem:[%s228 + $0x68] sm:$0xff]
      %v263 = vld [vmem:[%s228 + $0x70] sm:$0xff]
      %v264 = vld [vmem:[%s228 + $0x78] sm:$0xff]
      %v265 = vpack.c.bf16 %v257, %v249
      %v266 = vpack.c.bf16 %v258, %v250
      %v267 = vpack.c.bf16 %v259, %v251
      %v268 = vpack.c.bf16 %v260, %v252
      %v269 = vpack.c.bf16 %v261, %v253
      %v270 = vpack.c.bf16 %v262, %v254
      %v271 = vpack.c.bf16 %v263, %v255
      %v272 = vpack.c.bf16 %v264, %v256
      %v273 = vld [vmem:[%s1] sm:$0xf]
      %v274 = vld [vmem:[%s1 + $0x4] sm:$0xf]
      %v275 = vld [vmem:[%s1 + $0x8] sm:$0xf]
      %v276 = vld [vmem:[%s1 + $0xc] sm:$0xf]
      %v277 = vld [vmem:[%s1 + $0x10] sm:$0xf]
      %v278 = vld [vmem:[%s1 + $0x14] sm:$0xf]
      %v279 = vld [vmem:[%s1 + $0x18] sm:$0xf]
      %v280 = vld [vmem:[%s1 + $0x1c] sm:$0xf]
      %v281 = vld [vmem:[%s1 + $0x20] sm:$0xf]
      %v282 = vld [vmem:[%s1 + $0x24] sm:$0xf]
      %v283 = vld [vmem:[%s1 + $0x28] sm:$0xf]
      %v284 = vld [vmem:[%s1 + $0x2c] sm:$0xf]
      %v285 = vld [vmem:[%s1 + $0x30] sm:$0xf]
      %v286 = vld [vmem:[%s1 + $0x34] sm:$0xf]
      %v287 = vld [vmem:[%s1 + $0x38] sm:$0xf]
      %v288 = vld [vmem:[%s1 + $0x3c] sm:$0xf]
      %v289 = vld [vmem:[%s1 + $0x40] sm:$0xf]
      %v290 = vld [vmem:[%s1 + $0x44] sm:$0xf]
      %v291 = vld [vmem:[%s1 + $0x48] sm:$0xf]
      %v292 = vld [vmem:[%s1 + $0x4c] sm:$0xf]
      %v293 = vld [vmem:[%s1 + $0x50] sm:$0xf]
      %v294 = vld [vmem:[%s1 + $0x54] sm:$0xf]
      %v295 = vld [vmem:[%s1 + $0x58] sm:$0xf]
      %v296 = vld [vmem:[%s1 + $0x5c] sm:$0xf]
      %v297 = vld [vmem:[%s1 + $0x60] sm:$0xf]
      %v298 = vld [vmem:[%s1 + $0x64] sm:$0xf]
      %v299 = vld [vmem:[%s1 + $0x68] sm:$0xf]
      %v300 = vld [vmem:[%s1 + $0x6c] sm:$0xf]
      %v301 = vld [vmem:[%s1 + $0x70] sm:$0xf]
      %v302 = vld [vmem:[%s1 + $0x74] sm:$0xf]
      %v303 = vld [vmem:[%s1 + $0x78] sm:$0xf]
      %v304 = vld [vmem:[%s1 + $0x7c] sm:$0xf]
      %v305 = vld [vmem:[%s1 + $0x80] sm:$0xf]
      %v306 = vld [vmem:[%s1 + $0x84] sm:$0xf]
      %v307 = vld [vmem:[%s1 + $0x88] sm:$0xf]
      %v308 = vld [vmem:[%s1 + $0x8c] sm:$0xf]
      %v309 = vld [vmem:[%s1 + $0x90] sm:$0xf]
      %v310 = vld [vmem:[%s1 + $0x94] sm:$0xf]
      %v311 = vld [vmem:[%s1 + $0x98] sm:$0xf]
      %v312 = vld [vmem:[%s1 + $0x9c] sm:$0xf]
      %v313 = vld [vmem:[%s1 + $0xa0] sm:$0xf]
      %v314 = vld [vmem:[%s1 + $0xa4] sm:$0xf]
      %v315 = vld [vmem:[%s1 + $0xa8] sm:$0xf]
      %v316 = vld [vmem:[%s1 + $0xac] sm:$0xf]
      %v317 = vld [vmem:[%s1 + $0xb0] sm:$0xf]
      %v318 = vld [vmem:[%s1 + $0xb4] sm:$0xf]
      %v319 = vld [vmem:[%s1 + $0xb8] sm:$0xf]
      %v320 = vld [vmem:[%s1 + $0xbc] sm:$0xf]
      %v321 = vld [vmem:[%s1 + $0xc0] sm:$0xf]
      %v322 = vld [vmem:[%s1 + $0xc4] sm:$0xf]
      %v323 = vld [vmem:[%s1 + $0xc8] sm:$0xf]
      %v324 = vld [vmem:[%s1 + $0xcc] sm:$0xf]
      %v325 = vld [vmem:[%s1 + $0xd0] sm:$0xf]
      %v326 = vld [vmem:[%s1 + $0xd4] sm:$0xf]
      %v327 = vld [vmem:[%s1 + $0xd8] sm:$0xf]
      %v328 = vld [vmem:[%s1 + $0xdc] sm:$0xf]
      %v329 = vld [vmem:[%s1 + $0xe0] sm:$0xf]
      %v330 = vld [vmem:[%s1 + $0xe4] sm:$0xf]
      %v331 = vld [vmem:[%s1 + $0xe8] sm:$0xf]
      %v332 = vld [vmem:[%s1 + $0xec] sm:$0xf]
      %v333 = vld [vmem:[%s1 + $0xf0] sm:$0xf]
      %v334 = vld [vmem:[%s1 + $0xf4] sm:$0xf]
      %v335 = vld [vmem:[%s1 + $0xf8] sm:$0xf]
      %v336 = vld [vmem:[%s1 + $0xfc] sm:$0xf]
      %v337 = vld [vmem:[%s1 + $0x100] sm:$0xf]
      %v338 = vld [vmem:[%s1 + $0x104] sm:$0xf]
      %v339 = vld [vmem:[%s1 + $0x108] sm:$0xf]
      %v340 = vld [vmem:[%s1 + $0x10c] sm:$0xf]
      %v341 = vld [vmem:[%s1 + $0x110] sm:$0xf]
      %v342 = vld [vmem:[%s1 + $0x114] sm:$0xf]
      %v343 = vld [vmem:[%s1 + $0x118] sm:$0xf]
      %v344 = vld [vmem:[%s1 + $0x11c] sm:$0xf]
      %v345 = vld [vmem:[%s1 + $0x120] sm:$0xf]
      %v346 = vld [vmem:[%s1 + $0x124] sm:$0xf]
      %v347 = vld [vmem:[%s1 + $0x128] sm:$0xf]
      %v348 = vld [vmem:[%s1 + $0x12c] sm:$0xf]
      %v349 = vld [vmem:[%s1 + $0x130] sm:$0xf]
      %v350 = vld [vmem:[%s1 + $0x134] sm:$0xf]
      %v351 = vld [vmem:[%s1 + $0x138] sm:$0xf]
      %v352 = vld [vmem:[%s1 + $0x13c] sm:$0xf]
      %v353 = vld [vmem:[%s1 + $0x140] sm:$0xf]
      %v354 = vld [vmem:[%s1 + $0x144] sm:$0xf]
      %v355 = vld [vmem:[%s1 + $0x148] sm:$0xf]
      %v356 = vld [vmem:[%s1 + $0x14c] sm:$0xf]
      %v357 = vld [vmem:[%s1 + $0x150] sm:$0xf]
      %v358 = vld [vmem:[%s1 + $0x154] sm:$0xf]
      %v359 = vld [vmem:[%s1 + $0x158] sm:$0xf]
      %v360 = vld [vmem:[%s1 + $0x15c] sm:$0xf]
      %v361 = vld [vmem:[%s1 + $0x160] sm:$0xf]
      %v362 = vld [vmem:[%s1 + $0x164] sm:$0xf]
      %v363 = vld [vmem:[%s1 + $0x168] sm:$0xf]
      %v364 = vld [vmem:[%s1 + $0x16c] sm:$0xf]
      %v365 = vld [vmem:[%s1 + $0x170] sm:$0xf]
      %v366 = vld [vmem:[%s1 + $0x174] sm:$0xf]
      %v367 = vld [vmem:[%s1 + $0x178] sm:$0xf]
      %v368 = vld [vmem:[%s1 + $0x17c] sm:$0xf]
      %v369 = vld [vmem:[%s1 + $0x180] sm:$0xf]
      %v370 = vld [vmem:[%s1 + $0x184] sm:$0xf]
      %v371 = vld [vmem:[%s1 + $0x188] sm:$0xf]
      %v372 = vld [vmem:[%s1 + $0x18c] sm:$0xf]
      %v373 = vld [vmem:[%s1 + $0x190] sm:$0xf]
      %v374 = vld [vmem:[%s1 + $0x194] sm:$0xf]
      %v375 = vld [vmem:[%s1 + $0x198] sm:$0xf]
      %v376 = vld [vmem:[%s1 + $0x19c] sm:$0xf]
      %v377 = vld [vmem:[%s1 + $0x1a0] sm:$0xf]
      %v378 = vld [vmem:[%s1 + $0x1a4] sm:$0xf]
      %v379 = vld [vmem:[%s1 + $0x1a8] sm:$0xf]
      %v380 = vld [vmem:[%s1 + $0x1ac] sm:$0xf]
      %v381 = vld [vmem:[%s1 + $0x1b0] sm:$0xf]
      %v382 = vld [vmem:[%s1 + $0x1b4] sm:$0xf]
      %v383 = vld [vmem:[%s1 + $0x1b8] sm:$0xf]
      %v384 = vld [vmem:[%s1 + $0x1bc] sm:$0xf]
      %v385 = vld [vmem:[%s1 + $0x1c0] sm:$0xf]
      %v386 = vld [vmem:[%s1 + $0x1c4] sm:$0xf]
      %v387 = vld [vmem:[%s1 + $0x1c8] sm:$0xf]
      %v388 = vld [vmem:[%s1 + $0x1cc] sm:$0xf]
      %v389 = vld [vmem:[%s1 + $0x1d0] sm:$0xf]
      %v390 = vld [vmem:[%s1 + $0x1d4] sm:$0xf]
      %v391 = vld [vmem:[%s1 + $0x1d8] sm:$0xf]
      %v392 = vld [vmem:[%s1 + $0x1dc] sm:$0xf]
      %v393 = vld [vmem:[%s1 + $0x1e0] sm:$0xf]
      %v394 = vld [vmem:[%s1 + $0x1e4] sm:$0xf]
      %v395 = vld [vmem:[%s1 + $0x1e8] sm:$0xf]
      %v396 = vld [vmem:[%s1 + $0x1ec] sm:$0xf]
      %v397 = vld [vmem:[%s1 + $0x1f0] sm:$0xf]
      %v398 = vld [vmem:[%s1 + $0x1f4] sm:$0xf]
      %v399 = vld [vmem:[%s1 + $0x1f8] sm:$0xf]
      %v400 = vld [vmem:[%s1 + $0x1fc] sm:$0xf]
      %v529 = vunpack.c.l.b16 %v273
      %v530 = vunpack.c.l.b16 %v274
      %v531 = vunpack.c.l.b16 %v275
      %v532 = vunpack.c.l.b16 %v276
      %v533 = vunpack.c.l.b16 %v277
      %v534 = vunpack.c.l.b16 %v278
      %v535 = vunpack.c.l.b16 %v279
      %v536 = vunpack.c.l.b16 %v280
      %v537 = vunpack.c.l.b16 %v281
      %v538 = vunpack.c.l.b16 %v282
      %v539 = vunpack.c.l.b16 %v283
      %v540 = vunpack.c.l.b16 %v284
      %v541 = vunpack.c.l.b16 %v285
      %v542 = vunpack.c.l.b16 %v286
      %v543 = vunpack.c.l.b16 %v287
      %v544 = vunpack.c.l.b16 %v288
      %v545 = vunpack.c.l.b16 %v289
      %v546 = vunpack.c.l.b16 %v290
      %v547 = vunpack.c.l.b16 %v291
      %v548 = vunpack.c.l.b16 %v292
      %v549 = vunpack.c.l.b16 %v293
      %v550 = vunpack.c.l.b16 %v294
      %v551 = vunpack.c.l.b16 %v295
      %v552 = vunpack.c.l.b16 %v296
      %v553 = vunpack.c.l.b16 %v297
      %v554 = vunpack.c.l.b16 %v298
      %v555 = vunpack.c.l.b16 %v299
      %v556 = vunpack.c.l.b16 %v300
      %v557 = vunpack.c.l.b16 %v301
      %v558 = vunpack.c.l.b16 %v302
      %v559 = vunpack.c.l.b16 %v303
      %v560 = vunpack.c.l.b16 %v304
      %v561 = vunpack.c.l.b16 %v305
      %v562 = vunpack.c.l.b16 %v306
      %v563 = vunpack.c.l.b16 %v307
      %v564 = vunpack.c.l.b16 %v308
      %v565 = vunpack.c.l.b16 %v309
      %v566 = vunpack.c.l.b16 %v310
      %v567 = vunpack.c.l.b16 %v311
      %v568 = vunpack.c.l.b16 %v312
      %v569 = vunpack.c.l.b16 %v313
      %v570 = vunpack.c.l.b16 %v314
      %v571 = vunpack.c.l.b16 %v315
      %v572 = vunpack.c.l.b16 %v316
      %v573 = vunpack.c.l.b16 %v317
      %v574 = vunpack.c.l.b16 %v318
      %v575 = vunpack.c.l.b16 %v319
      %v576 = vunpack.c.l.b16 %v320
      %v577 = vunpack.c.l.b16 %v321
      %v578 = vunpack.c.l.b16 %v322
      %v579 = vunpack.c.l.b16 %v323
      %v580 = vunpack.c.l.b16 %v324
      %v581 = vunpack.c.l.b16 %v325
      %v582 = vunpack.c.l.b16 %v326
      %v583 = vunpack.c.l.b16 %v327
      %v584 = vunpack.c.l.b16 %v328
      %v585 = vunpack.c.l.b16 %v329
      %v586 = vunpack.c.l.b16 %v330
      %v587 = vunpack.c.l.b16 %v331
      %v588 = vunpack.c.l.b16 %v332
      %v589 = vunpack.c.l.b16 %v333
      %v590 = vunpack.c.l.b16 %v334
      %v591 = vunpack.c.l.b16 %v335
      %v592 = vunpack.c.l.b16 %v336
      %v593 = vunpack.c.l.b16 %v337
      %v594 = vunpack.c.l.b16 %v338
      %v595 = vunpack.c.l.b16 %v339
      %v596 = vunpack.c.l.b16 %v340
      %v597 = vunpack.c.l.b16 %v341
      %v598 = vunpack.c.l.b16 %v342
      %v599 = vunpack.c.l.b16 %v343
      %v600 = vunpack.c.l.b16 %v344
      %v601 = vunpack.c.l.b16 %v345
      %v602 = vunpack.c.l.b16 %v346
      %v603 = vunpack.c.l.b16 %v347
      %v604 = vunpack.c.l.b16 %v348
      %v605 = vunpack.c.l.b16 %v349
      %v606 = vunpack.c.l.b16 %v350
      %v607 = vunpack.c.l.b16 %v351
      %v608 = vunpack.c.l.b16 %v352
      %v609 = vunpack.c.l.b16 %v353
      %v610 = vunpack.c.l.b16 %v354
      %v611 = vunpack.c.l.b16 %v355
      %v612 = vunpack.c.l.b16 %v356
      %v613 = vunpack.c.l.b16 %v357
      %v614 = vunpack.c.l.b16 %v358
      %v615 = vunpack.c.l.b16 %v359
      %v616 = vunpack.c.l.b16 %v360
      %v617 = vunpack.c.l.b16 %v361
      %v618 = vunpack.c.l.b16 %v362
      %v619 = vunpack.c.l.b16 %v363
      %v620 = vunpack.c.l.b16 %v364
      %v621 = vunpack.c.l.b16 %v365
      %v622 = vunpack.c.l.b16 %v366
      %v623 = vunpack.c.l.b16 %v367
      %v624 = vunpack.c.l.b16 %v368
      %v625 = vunpack.c.l.b16 %v369
      %v626 = vunpack.c.l.b16 %v370
      %v627 = vunpack.c.l.b16 %v371
      %v628 = vunpack.c.l.b16 %v372
      %v629 = vunpack.c.l.b16 %v373
      %v630 = vunpack.c.l.b16 %v374
      %v631 = vunpack.c.l.b16 %v375
      %v632 = vunpack.c.l.b16 %v376
      %v633 = vunpack.c.l.b16 %v377
      %v634 = vunpack.c.l.b16 %v378
      %v635 = vunpack.c.l.b16 %v379
      %v636 = vunpack.c.l.b16 %v380
      %v637 = vunpack.c.l.b16 %v381
      %v638 = vunpack.c.l.b16 %v382
      %v639 = vunpack.c.l.b16 %v383
      %v640 = vunpack.c.l.b16 %v384
      %v641 = vunpack.c.l.b16 %v385
      %v642 = vunpack.c.l.b16 %v386
      %v643 = vunpack.c.l.b16 %v387
      %v644 = vunpack.c.l.b16 %v388
      %v645 = vunpack.c.l.b16 %v389
      %v646 = vunpack.c.l.b16 %v390
      %v647 = vunpack.c.l.b16 %v391
      %v648 = vunpack.c.l.b16 %v392
      %v649 = vunpack.c.l.b16 %v393
      %v650 = vunpack.c.l.b16 %v394
      %v651 = vunpack.c.l.b16 %v395
      %v652 = vunpack.c.l.b16 %v396
      %v653 = vunpack.c.l.b16 %v397
      %v654 = vunpack.c.l.b16 %v398
      %v655 = vunpack.c.l.b16 %v399
      %v656 = vunpack.c.l.b16 %v400
      %v657 = vpack.c.b16 %v530, %v529
      %v658 = vpack.c.b16 %v532, %v531
      %v659 = vpack.c.b16 %v534, %v533
      %v660 = vpack.c.b16 %v536, %v535
      %v661 = vpack.c.b16 %v538, %v537
      %v662 = vpack.c.b16 %v540, %v539
      %v663 = vpack.c.b16 %v542, %v541
      %v664 = vpack.c.b16 %v544, %v543
      %v665 = vpack.c.b16 %v546, %v545
      %v666 = vpack.c.b16 %v548, %v547
      %v667 = vpack.c.b16 %v550, %v549
      %v668 = vpack.c.b16 %v552, %v551
      %v669 = vpack.c.b16 %v554, %v553
      %v670 = vpack.c.b16 %v556, %v555
      %v671 = vpack.c.b16 %v558, %v557
      %v672 = vpack.c.b16 %v560, %v559
      %v673 = vpack.c.b16 %v562, %v561
      %v674 = vpack.c.b16 %v564, %v563
      %v675 = vpack.c.b16 %v566, %v565
      %v676 = vpack.c.b16 %v568, %v567
      %v677 = vpack.c.b16 %v570, %v569
      %v678 = vpack.c.b16 %v572, %v571
      %v679 = vpack.c.b16 %v574, %v573
      %v680 = vpack.c.b16 %v576, %v575
      %v681 = vpack.c.b16 %v578, %v577
      %v682 = vpack.c.b16 %v580, %v579
      %v683 = vpack.c.b16 %v582, %v581
      %v684 = vpack.c.b16 %v584, %v583
      %v685 = vpack.c.b16 %v586, %v585
      %v686 = vpack.c.b16 %v588, %v587
      %v687 = vpack.c.b16 %v590, %v589
      %v688 = vpack.c.b16 %v592, %v591
      %v689 = vpack.c.b16 %v594, %v593
      %v690 = vpack.c.b16 %v596, %v595
      %v691 = vpack.c.b16 %v598, %v597
      %v692 = vpack.c.b16 %v600, %v599
      %v693 = vpack.c.b16 %v602, %v601
      %v694 = vpack.c.b16 %v604, %v603
      %v695 = vpack.c.b16 %v606, %v605
      %v696 = vpack.c.b16 %v608, %v607
      %v697 = vpack.c.b16 %v610, %v609
      %v698 = vpack.c.b16 %v612, %v611
      %v699 = vpack.c.b16 %v614, %v613
      %v700 = vpack.c.b16 %v616, %v615
      %v701 = vpack.c.b16 %v618, %v617
      %v702 = vpack.c.b16 %v620, %v619
      %v703 = vpack.c.b16 %v622, %v621
      %v704 = vpack.c.b16 %v624, %v623
      %v705 = vpack.c.b16 %v626, %v625
      %v706 = vpack.c.b16 %v628, %v627
      %v707 = vpack.c.b16 %v630, %v629
      %v708 = vpack.c.b16 %v632, %v631
      %v709 = vpack.c.b16 %v634, %v633
      %v710 = vpack.c.b16 %v636, %v635
      %v711 = vpack.c.b16 %v638, %v637
      %v712 = vpack.c.b16 %v640, %v639
      %v713 = vpack.c.b16 %v642, %v641
      %v714 = vpack.c.b16 %v644, %v643
      %v715 = vpack.c.b16 %v646, %v645
      %v716 = vpack.c.b16 %v648, %v647
      %v717 = vpack.c.b16 %v650, %v649
      %v718 = vpack.c.b16 %v652, %v651
      %v719 = vpack.c.b16 %v654, %v653
      %v720 = vpack.c.b16 %v656, %v655
      %785 = vmatprep.subr.bf16.mxu0 0
      %786 = vmatpush1.bf16.msra.mxu0 %v657
      %787 = vmatprep.subr.bf16.mxu0 0
      %788 = vmatpush1.bf16.msra.mxu0 %v658
      %789 = vmatprep.subr.bf16.mxu0 0
      %790 = vmatpush1.bf16.msra.mxu0 %v659
      %791 = vmatprep.subr.bf16.mxu0 0
      %792 = vmatpush1.bf16.msra.mxu0 %v660
      %793 = vmatprep.subr.bf16.mxu0 0
      %794 = vmatpush1.bf16.msra.mxu0 %v661
      %795 = vmatprep.subr.bf16.mxu0 0
      %796 = vmatpush1.bf16.msra.mxu0 %v662
      %797 = vmatprep.subr.bf16.mxu0 0
      %798 = vmatpush1.bf16.msra.mxu0 %v663
      %799 = vmatprep.subr.bf16.mxu0 0
      %800 = vmatpush1.bf16.msra.mxu0 %v664
      %801 = vmatprep.subr.bf16.mxu0 0
      %802 = vmatpush1.bf16.msra.mxu0 %v665
      %803 = vmatprep.subr.bf16.mxu0 0
      %804 = vmatpush1.bf16.msra.mxu0 %v666
      %805 = vmatprep.subr.bf16.mxu0 0
      %806 = vmatpush1.bf16.msra.mxu0 %v667
      %807 = vmatprep.subr.bf16.mxu0 0
      %808 = vmatpush1.bf16.msra.mxu0 %v668
      %809 = vmatprep.subr.bf16.mxu0 0
      %810 = vmatpush1.bf16.msra.mxu0 %v669
      %811 = vmatprep.subr.bf16.mxu0 0
      %812 = vmatpush1.bf16.msra.mxu0 %v670
      %813 = vmatprep.subr.bf16.mxu0 0
      %814 = vmatpush1.bf16.msra.mxu0 %v671
      %815 = vmatprep.subr.bf16.mxu0 0
      %816 = vmatpush1.bf16.msra.mxu0 %v672
      %817 = vmatprep.mubr.bf16.mxu0 %v266
      %818 = vmatmul.mubr.bf16.gmra.mrb[0].mxu0 %v265
      %v819 = vpop.f32.mrb[0].mxu0
      %v820 = vadd.f32 0.0, %v819
      %v821 = vpop.f32.mrb[0].mxu0
      %v822 = vpop.f32.mrb[0].mxu0
      %v823 = vadd.f32 0.0, %v822
      %v824 = vpop.f32.mrb[0].mxu0
      %825 = vdwg.mxu0
      %826 = vmatprep.subr.bf16.mxu0 0
      %827 = vmatpush1.bf16.msra.mxu0 %v673
      %828 = vmatprep.subr.bf16.mxu0 0
      %829 = vmatpush1.bf16.msra.mxu0 %v674
      %830 = vmatprep.subr.bf16.mxu0 0
      %831 = vmatpush1.bf16.msra.mxu0 %v675
      %832 = vmatprep.subr.bf16.mxu0 0
      %833 = vmatpush1.bf16.msra.mxu0 %v676
      %834 = vmatprep.subr.bf16.mxu0 0
      %835 = vmatpush1.bf16.msra.mxu0 %v677
      %836 = vmatprep.subr.bf16.mxu0 0
      %837 = vmatpush1.bf16.msra.mxu0 %v678
      %838 = vmatprep.subr.bf16.mxu0 0
      %839 = vmatpush1.bf16.msra.mxu0 %v679
      %840 = vmatprep.subr.bf16.mxu0 0
      %841 = vmatpush1.bf16.msra.mxu0 %v680
      %842 = vmatprep.subr.bf16.mxu0 0
      %843 = vmatpush1.bf16.msra.mxu0 %v681
      %844 = vmatprep.subr.bf16.mxu0 0
      %845 = vmatpush1.bf16.msra.mxu0 %v682
      %846 = vmatprep.subr.bf16.mxu0 0
      %847 = vmatpush1.bf16.msra.mxu0 %v683
      %848 = vmatprep.subr.bf16.mxu0 0
      %849 = vmatpush1.bf16.msra.mxu0 %v684
      %850 = vmatprep.subr.bf16.mxu0 0
      %851 = vmatpush1.bf16.msra.mxu0 %v685
      %852 = vmatprep.subr.bf16.mxu0 0
      %853 = vmatpush1.bf16.msra.mxu0 %v686
      %854 = vmatprep.subr.bf16.mxu0 0
      %855 = vmatpush1.bf16.msra.mxu0 %v687
      %856 = vmatprep.subr.bf16.mxu0 0
      %857 = vmatpush1.bf16.msra.mxu0 %v688
      %858 = vmatprep.mubr.bf16.mxu0 %v268
      %859 = vmatmul.mubr.bf16.gmra.mrb[0].mxu0 %v267
      %v860 = vpop.f32.mrb[0].mxu0
      %v861 = vadd.f32 %v820, %v860
      %v862 = vpop.f32.mrb[0].mxu0
      %v863 = vpop.f32.mrb[0].mxu0
      %v864 = vadd.f32 %v823, %v863
      %v865 = vpop.f32.mrb[0].mxu0
      %866 = vdwg.mxu0
      %867 = vmatprep.subr.bf16.mxu0 0
      %868 = vmatpush1.bf16.msra.mxu0 %v689
      %869 = vmatprep.subr.bf16.mxu0 0
      %870 = vmatpush1.bf16.msra.mxu0 %v690
      %871 = vmatprep.subr.bf16.mxu0 0
      %872 = vmatpush1.bf16.msra.mxu0 %v691
      %873 = vmatprep.subr.bf16.mxu0 0
      %874 = vmatpush1.bf16.msra.mxu0 %v692
      %875 = vmatprep.subr.bf16.mxu0 0
      %876 = vmatpush1.bf16.msra.mxu0 %v693
      %877 = vmatprep.subr.bf16.mxu0 0
      %878 = vmatpush1.bf16.msra.mxu0 %v694
      %879 = vmatprep.subr.bf16.mxu0 0
      %880 = vmatpush1.bf16.msra.mxu0 %v695
      %881 = vmatprep.subr.bf16.mxu0 0
      %882 = vmatpush1.bf16.msra.mxu0 %v696
      %883 = vmatprep.subr.bf16.mxu0 0
      %884 = vmatpush1.bf16.msra.mxu0 %v697
      %885 = vmatprep.subr.bf16.mxu0 0
      %886 = vmatpush1.bf16.msra.mxu0 %v698
      %887 = vmatprep.subr.bf16.mxu0 0
      %888 = vmatpush1.bf16.msra.mxu0 %v699
      %889 = vmatprep.subr.bf16.mxu0 0
      %890 = vmatpush1.bf16.msra.mxu0 %v700
      %891 = vmatprep.subr.bf16.mxu0 0
      %892 = vmatpush1.bf16.msra.mxu0 %v701
      %893 = vmatprep.subr.bf16.mxu0 0
      %894 = vmatpush1.bf16.msra.mxu0 %v702
      %895 = vmatprep.subr.bf16.mxu0 0
      %896 = vmatpush1.bf16.msra.mxu0 %v703
      %897 = vmatprep.subr.bf16.mxu0 0
      %898 = vmatpush1.bf16.msra.mxu0 %v704
      %899 = vmatprep.mubr.bf16.mxu0 %v270
      %900 = vmatmul.mubr.bf16.gmra.mrb[0].mxu0 %v269
      %v901 = vpop.f32.mrb[0].mxu0
      %v902 = vadd.f32 %v861, %v901
      %v903 = vpop.f32.mrb[0].mxu0
      %v904 = vpop.f32.mrb[0].mxu0
      %v905 = vadd.f32 %v864, %v904
      %v906 = vpop.f32.mrb[0].mxu0
      %907 = vdwg.mxu0
      %908 = vmatprep.subr.bf16.mxu0 0
      %909 = vmatpush1.bf16.msra.mxu0 %v705
      %910 = vmatprep.subr.bf16.mxu0 0
      %911 = vmatpush1.bf16.msra.mxu0 %v706
      %912 = vmatprep.subr.bf16.mxu0 0
      %913 = vmatpush1.bf16.msra.mxu0 %v707
      %914 = vmatprep.subr.bf16.mxu0 0
      %915 = vmatpush1.bf16.msra.mxu0 %v708
      %916 = vmatprep.subr.bf16.mxu0 0
      %917 = vmatpush1.bf16.msra.mxu0 %v709
      %918 = vmatprep.subr.bf16.mxu0 0
      %919 = vmatpush1.bf16.msra.mxu0 %v710
      %920 = vmatprep.subr.bf16.mxu0 0
      %921 = vmatpush1.bf16.msra.mxu0 %v711
      %922 = vmatprep.subr.bf16.mxu0 0
      %923 = vmatpush1.bf16.msra.mxu0 %v712
      %924 = vmatprep.subr.bf16.mxu0 0
      %925 = vmatpush1.bf16.msra.mxu0 %v713
      %926 = vmatprep.subr.bf16.mxu0 0
      %927 = vmatpush1.bf16.msra.mxu0 %v714
      %928 = vmatprep.subr.bf16.mxu0 0
      %929 = vmatpush1.bf16.msra.mxu0 %v715
      %930 = vmatprep.subr.bf16.mxu0 0
      %931 = vmatpush1.bf16.msra.mxu0 %v716
      %932 = vmatprep.subr.bf16.mxu0 0
      %933 = vmatpush1.bf16.msra.mxu0 %v717
      %934 = vmatprep.subr.bf16.mxu0 0
      %935 = vmatpush1.bf16.msra.mxu0 %v718
      %936 = vmatprep.subr.bf16.mxu0 0
      %937 = vmatpush1.bf16.msra.mxu0 %v719
      %938 = vmatprep.subr.bf16.mxu0 0
      %939 = vmatpush1.bf16.msra.mxu0 %v720
      %940 = vmatprep.mubr.bf16.mxu0 %v272
      %941 = vmatmul.mubr.bf16.gmra.mrb[0].mxu0 %v271
      %v942 = vpop.f32.mrb[0].mxu0
      %v943 = vadd.f32 %v902, %v942
      %v944 = vpop.f32.mrb[0].mxu0
      %v945 = vpop.f32.mrb[0].mxu0
      %v946 = vadd.f32 %v905, %v945
      %v947 = vpop.f32.mrb[0].mxu0
      %948 = vdwg.mxu0
      %vm949 = vcmask 261120
      %v950 = vsel %vm949, %v943, 0.0
      %951 = vadd.xlane.f32.xlu0 %v950
      %v952 = vpop.xlane.xlu0 %951
      %v953 = vsel %vm949, %v946, 0.0
      %954 = vadd.xlane.f32.xlu0 %v953
      %v955 = vpop.xlane.xlu0 %954
      %v956 = vmul.f32 %v952, 0.03125
      %v957 = vmul.f32 %v955, 0.03125
      %v958 = vmul.f32 %v943, %v943
      %v959 = vmul.f32 %v946, %v946
      %v960 = vsel %vm949, %v958, 0.0
      %961 = vadd.xlane.f32.xlu0 %v960
      %v962 = vpop.xlane.xlu0 %961
      %v963 = vsel %vm949, %v959, 0.0
      %964 = vadd.xlane.f32.xlu0 %v963
      %v965 = vpop.xlane.xlu0 %964
      %v966 = vmul.f32 %v962, 0.03125
      %v967 = vmul.f32 %v965, 0.03125
      %v968 = vmul.f32 %v956, %v956
      %v969 = vmul.f32 %v957, %v957
      %v970 = vsub.f32 %v966, %v968
      %v971 = vsub.f32 %v967, %v969
      %v972 = vmax.f32 %v970, 0.0
      %v973 = vmax.f32 %v971, 0.0
      %v974 = vld [vmem:[%s234] sm:$0xff]
      %v975 = vld [vmem:[%s234 + $0x8] sm:$0xff]
      %v976 = vadd.f32 %v972, 1e-05
      %v977 = vadd.f32 %v973, 1e-05
      %v978 = vrsqrt.pop %v976
      %v979 = vrsqrt.pop %v977
      %v980 = vmul.f32 %v974, %v978
      %v981 = vmul.f32 %v975, %v979
      %v982 = vld [vmem:[%s240] sm:$0xff]
      %v983 = vld [vmem:[%s240 + $0x8] sm:$0xff]
      %v984 = vmul.f32 %v956, %v980
      %v985 = vmul.f32 %v957, %v981
      %v986 = vsub.f32 %v982, %v984
      %v987 = vsub.f32 %v983, %v985
      %989 = vset.pattern.permute.xlu0 0
      %990 = vperm.xlu0 %989, %v980
      %v991 = vpop.permute.xlu0 %990
      %994 = vset.pattern.permute.xlu0 0
      %995 = vperm.xlu0 %994, %v981
      %v996 = vpop.permute.xlu0 %995
      %v998 = vmul.f32 %v943, %v991
      %v999 = vmul.f32 %v946, %v996
      %1001 = vset.pattern.permute.xlu0 0
      %1002 = vperm.xlu0 %1001, %v986
      %v1003 = vpop.permute.xlu0 %1002
      %1006 = vset.pattern.permute.xlu0 0
      %1007 = vperm.xlu0 %1006, %v987
      %v1008 = vpop.permute.xlu0 %1007
      %v1010 = vadd.f32 %v998, %v1003
      %v1011 = vadd.f32 %v999, %v1008
      %vm1012 = vcmp.gt.f32.partialorder %v1010, 0.0
      %vm1013 = vcmp.gt.f32.partialorder %v1011, 0.0
      %v1014 = vmul.f32 %v1010, 0.2
      %v1015 = vmul.f32 %v1011, 0.2
      %v1016 = vsel %vm1012, %v1010, %v1014
      %v1017 = vsel %vm1013, %v1011, %v1015
      %v1018 = vpack.c.bf16 %v1017, %v1016
      %v1020 = vunpack.c.l.b16 %v1018
      %v1021 = vunpack.c.h.b16 %v1018
      %v1022 = vpack.c.b16 %v1020, %v1020
      %v1023 = vpack.c.b16 %v1021, %v1021
      %vm1026 = vcmask 257024
      %1027 = vst.msk [vmem:[%s246] sm:$0xf] %vm1026, %v1022
      %1028 = vst.msk [vmem:[%s246 + $0x4] sm:$0xf] %vm1026, %v1023
      %s1029 = smul.u32 2, %s15
      %p1030 = scmp.lt.s32.totalorder %s1029, 3
      %s1031 = scalar_select %p1030, %s1029, 3
      %s1032 = smul.addr %s1031, 4
      %s1033 = scalar_lea.vmem %s4, %s1032
      // Predicated region
      $region37: #{discriminator128_forward.10} parent=35 // pred_check
        %p1034 = pneg %p132
      $region38: #{discriminator128_forward.10} parent=35 // pred_check_branch
        %1036 = sbr.rel (%p1034) target = $region40
      $region39: #{discriminator128_forward.10} parent=35 // pred_region
        %s1037 = smul.u32 2, %s15
      $region40: #{discriminator128_forward.10} parent=35 // pred_fallthru
        _
    $region36: #{discriminator128_forward.10} parent=5 // pred_fallthru
      _
    %p1038 = scmp.le.s32.totalorder 2, %s10
    // Predicated region
    $region41: #{discriminator128_forward.10} parent=5 // pred_check
      %p1039 = pneg %p1038
    $region42: #{discriminator128_forward.10} parent=5 // pred_check_branch
      %1041 = sbr.rel (%p1039) target = $region44
    $region43: #{discriminator128_forward.10} parent=5 // pred_region
      %s1042 = ssub.s32 %s10, 2
      // Predicated region
      $region45: #{discriminator128_forward.10} parent=43 // pred_check
        %p1043 = pneg %p138
      $region46: #{discriminator128_forward.10} parent=43 // pred_check_branch
        %1045 = sbr.rel (%p1043) target = $region48
      $region47: #{discriminator128_forward.10} parent=43 // pred_region
        %s1046 = smul.u32 2, %s16
        %p1047 = scmp.lt.s32.totalorder %s1046, 3
        %s1048 = scalar_select %p1047, %s1046, 3
        %s1049 = smul.addr %s1048, 4
        %s1050 = scalar_lea.vmem %s4, %s1049
      $region48: #{discriminator128_forward.10} parent=43 // pred_fallthru
        _
    $region44: #{discriminator128_forward.10} parent=5 // pred_fallthru
      _
  $region6: #{discriminator128_forward.10} parent=0 // loop_footer
    %s14 = sadd.s32 1, %s10
  $region7: #{discriminator128_forward.10} parent=0 // loop_footer_branch
    %9 = sbr.rel target = $region3
  $region8: #{discriminator128_forward.10} parent=0 // loop_exit
    _

// kernel: discriminator128_forward.11
$region0: #{discriminator128_forward.11}
  #allocation0 [shape = 'u32[]', space=smem, size = 0x4, offset = 0x4, fixed_abs, tag = 'smem constant byte address 0x4 - core index']
  #allocation1 [shape = 'u32[144,128]{1,0:T(1,128)}', space=vmem, size = 0x12000, scoped, tag = 'internal scratch']
  %s0 = inlined_call_operand.vmem [shape: f32[1,512], index: 0, kind: input, shape index: {}]
  %s1 = inlined_call_operand.vmem [shape: bf16[512,2], index: 1, kind: input, shape index: {}]
  %s2 = inlined_call_operand.hbm [shape: f32[1,2], index: 2, kind: output, shape index: {}]
  %s3 = sld [smem:[#allocation0]]
  $region18: #{discriminator128_forward.11} parent=0
    _
  %s5 = ssub.s32 1, %s3
  %s6 = scalar_select 0, %s5, %s3
  $region1: #{discriminator128_forward.11} parent=0
    #allocation2 [shape = 'u8[512]{0}', space=vmem, size = 0x400, scoped, tag = 'output window, operand 0, single buffered']
    #allocation3 [shape = 's32[1]{0}', space=sflag, size = 0x4, scoped, tag = 'scoped memory for discriminator128_forward.11']
    %7 = vsyncpa [#allocation3], 0
    // Predicated region
    $region2: #{discriminator128_forward.11} parent=1 // pred_check
      _
    $region3: #{discriminator128_forward.11} parent=1 // pred_check_branch
      %9 = sbr.rel (0) target = $region5
    $region4: #{discriminator128_forward.11} parent=1 // pred_region
      _
    $region5: #{discriminator128_forward.11} parent=1 // pred_fallthru
      _
    // Predicated region
    $region6: #{discriminator128_forward.11} parent=1 // pred_check
      _
    $region7: #{discriminator128_forward.11} parent=1 // pred_check_branch
      %11 = sbr.rel (0) target = $region9
    $region8: #{discriminator128_forward.11} parent=1 // pred_region
      _
    $region9: #{discriminator128_forward.11} parent=1 // pred_fallthru
      _
    %v13 = vld [vmem:[%s0] sm:$0xf]
    %v15 = vlaneseq
    %v16 = vshrl.u32 %v15, 7
    %v17 = vsub.s32 0, %v16
    %v18 = vrot.slane %v13, %v17
    %v19 = vlaneseq
    %v20 = vshrl.u32 %v19, 7
    %v21 = vsub.s32 1, %v20
    %v22 = vrot.slane %v13, %v21
    %v23 = vlaneseq
    %v24 = vshrl.u32 %v23, 7
    %v25 = vsub.s32 2, %v24
    %v26 = vrot.slane %v13, %v25
    %v27 = vlaneseq
    %v28 = vshrl.u32 %v27, 7
    %v29 = vsub.s32 3, %v28
    %v30 = vrot.slane %v13, %v29
    %v35 = vpack.c.bf16 %v18, %v18
    %v36 = vpack.c.bf16 %v22, %v22
    %v37 = vpack.c.bf16 %v26, %v26
    %v38 = vpack.c.bf16 %v30, %v30
    %v39 = vld [vmem:[%s1] sm:$0xf]
    %v40 = vld [vmem:[%s1 + $0x4] sm:$0xf]
    %v41 = vld [vmem:[%s1 + $0x8] sm:$0xf]
    %v42 = vld [vmem:[%s1 + $0xc] sm:$0xf]
    %v43 = vld [vmem:[%s1 + $0x10] sm:$0xf]
    %v44 = vld [vmem:[%s1 + $0x14] sm:$0xf]
    %v45 = vld [vmem:[%s1 + $0x18] sm:$0xf]
    %v46 = vld [vmem:[%s1 + $0x1c] sm:$0xf]
    %v47 = vld [vmem:[%s1 + $0x20] sm:$0xf]
    %v48 = vld [vmem:[%s1 + $0x24] sm:$0xf]
    %v49 = vld [vmem:[%s1 + $0x28] sm:$0xf]
    %v50 = vld [vmem:[%s1 + $0x2c] sm:$0xf]
    %v51 = vld [vmem:[%s1 + $0x30] sm:$0xf]
    %v52 = vld [vmem:[%s1 + $0x34] sm:$0xf]
    %v53 = vld [vmem:[%s1 + $0x38] sm:$0xf]
    %v54 = vld [vmem:[%s1 + $0x3c] sm:$0xf]
    %v55 = vld [vmem:[%s1 + $0x40] sm:$0xf]
    %v56 = vld [vmem:[%s1 + $0x44] sm:$0xf]
    %v57 = vld [vmem:[%s1 + $0x48] sm:$0xf]
    %v58 = vld [vmem:[%s1 + $0x4c] sm:$0xf]
    %v59 = vld [vmem:[%s1 + $0x50] sm:$0xf]
    %v60 = vld [vmem:[%s1 + $0x54] sm:$0xf]
    %v61 = vld [vmem:[%s1 + $0x58] sm:$0xf]
    %v62 = vld [vmem:[%s1 + $0x5c] sm:$0xf]
    %v63 = vld [vmem:[%s1 + $0x60] sm:$0xf]
    %v64 = vld [vmem:[%s1 + $0x64] sm:$0xf]
    %v65 = vld [vmem:[%s1 + $0x68] sm:$0xf]
    %v66 = vld [vmem:[%s1 + $0x6c] sm:$0xf]
    %v67 = vld [vmem:[%s1 + $0x70] sm:$0xf]
    %v68 = vld [vmem:[%s1 + $0x74] sm:$0xf]
    %v69 = vld [vmem:[%s1 + $0x78] sm:$0xf]
    %v70 = vld [vmem:[%s1 + $0x7c] sm:$0xf]
    %v71 = vld [vmem:[%s1 + $0x80] sm:$0xf]
    %v72 = vld [vmem:[%s1 + $0x84] sm:$0xf]
    %v73 = vld [vmem:[%s1 + $0x88] sm:$0xf]
    %v74 = vld [vmem:[%s1 + $0x8c] sm:$0xf]
    %v75 = vld [vmem:[%s1 + $0x90] sm:$0xf]
    %v76 = vld [vmem:[%s1 + $0x94] sm:$0xf]
    %v77 = vld [vmem:[%s1 + $0x98] sm:$0xf]
    %v78 = vld [vmem:[%s1 + $0x9c] sm:$0xf]
    %v79 = vld [vmem:[%s1 + $0xa0] sm:$0xf]
    %v80 = vld [vmem:[%s1 + $0xa4] sm:$0xf]
    %v81 = vld [vmem:[%s1 + $0xa8] sm:$0xf]
    %v82 = vld [vmem:[%s1 + $0xac] sm:$0xf]
    %v83 = vld [vmem:[%s1 + $0xb0] sm:$0xf]
    %v84 = vld [vmem:[%s1 + $0xb4] sm:$0xf]
    %v85 = vld [vmem:[%s1 + $0xb8] sm:$0xf]
    %v86 = vld [vmem:[%s1 + $0xbc] sm:$0xf]
    %v87 = vld [vmem:[%s1 + $0xc0] sm:$0xf]
    %v88 = vld [vmem:[%s1 + $0xc4] sm:$0xf]
    %v89 = vld [vmem:[%s1 + $0xc8] sm:$0xf]
    %v90 = vld [vmem:[%s1 + $0xcc] sm:$0xf]
    %v91 = vld [vmem:[%s1 + $0xd0] sm:$0xf]
    %v92 = vld [vmem:[%s1 + $0xd4] sm:$0xf]
    %v93 = vld [vmem:[%s1 + $0xd8] sm:$0xf]
    %v94 = vld [vmem:[%s1 + $0xdc] sm:$0xf]
    %v95 = vld [vmem:[%s1 + $0xe0] sm:$0xf]
    %v96 = vld [vmem:[%s1 + $0xe4] sm:$0xf]
    %v97 = vld [vmem:[%s1 + $0xe8] sm:$0xf]
    %v98 = vld [vmem:[%s1 + $0xec] sm:$0xf]
    %v99 = vld [vmem:[%s1 + $0xf0] sm:$0xf]
    %v100 = vld [vmem:[%s1 + $0xf4] sm:$0xf]
    %v101 = vld [vmem:[%s1 + $0xf8] sm:$0xf]
    %v102 = vld [vmem:[%s1 + $0xfc] sm:$0xf]
    %v167 = vunpack.c.l.b16 %v39
    %v168 = vunpack.c.l.b16 %v40
    %v169 = vunpack.c.l.b16 %v41
    %v170 = vunpack.c.l.b16 %v42
    %v171 = vunpack.c.l.b16 %v43
    %v172 = vunpack.c.l.b16 %v44
    %v173 = vunpack.c.l.b16 %v45
    %v174 = vunpack.c.l.b16 %v46
    %v175 = vunpack.c.l.b16 %v47
    %v176 = vunpack.c.l.b16 %v48
    %v177 = vunpack.c.l.b16 %v49
    %v178 = vunpack.c.l.b16 %v50
    %v179 = vunpack.c.l.b16 %v51
    %v180 = vunpack.c.l.b16 %v52
    %v181 = vunpack.c.l.b16 %v53
    %v182 = vunpack.c.l.b16 %v54
    %v183 = vunpack.c.l.b16 %v55
    %v184 = vunpack.c.l.b16 %v56
    %v185 = vunpack.c.l.b16 %v57
    %v186 = vunpack.c.l.b16 %v58
    %v187 = vunpack.c.l.b16 %v59
    %v188 = vunpack.c.l.b16 %v60
    %v189 = vunpack.c.l.b16 %v61
    %v190 = vunpack.c.l.b16 %v62
    %v191 = vunpack.c.l.b16 %v63
    %v192 = vunpack.c.l.b16 %v64
    %v193 = vunpack.c.l.b16 %v65
    %v194 = vunpack.c.l.b16 %v66
    %v195 = vunpack.c.l.b16 %v67
    %v196 = vunpack.c.l.b16 %v68
    %v197 = vunpack.c.l.b16 %v69
    %v198 = vunpack.c.l.b16 %v70
    %v199 = vunpack.c.l.b16 %v71
    %v200 = vunpack.c.l.b16 %v72
    %v201 = vunpack.c.l.b16 %v73
    %v202 = vunpack.c.l.b16 %v74
    %v203 = vunpack.c.l.b16 %v75
    %v204 = vunpack.c.l.b16 %v76
    %v205 = vunpack.c.l.b16 %v77
    %v206 = vunpack.c.l.b16 %v78
    %v207 = vunpack.c.l.b16 %v79
    %v208 = vunpack.c.l.b16 %v80
    %v209 = vunpack.c.l.b16 %v81
    %v210 = vunpack.c.l.b16 %v82
    %v211 = vunpack.c.l.b16 %v83
    %v212 = vunpack.c.l.b16 %v84
    %v213 = vunpack.c.l.b16 %v85
    %v214 = vunpack.c.l.b16 %v86
    %v215 = vunpack.c.l.b16 %v87
    %v216 = vunpack.c.l.b16 %v88
    %v217 = vunpack.c.l.b16 %v89
    %v218 = vunpack.c.l.b16 %v90
    %v219 = vunpack.c.l.b16 %v91
    %v220 = vunpack.c.l.b16 %v92
    %v221 = vunpack.c.l.b16 %v93
    %v222 = vunpack.c.l.b16 %v94
    %v223 = vunpack.c.l.b16 %v95
    %v224 = vunpack.c.l.b16 %v96
    %v225 = vunpack.c.l.b16 %v97
    %v226 = vunpack.c.l.b16 %v98
    %v227 = vunpack.c.l.b16 %v99
    %v228 = vunpack.c.l.b16 %v100
    %v229 = vunpack.c.l.b16 %v101
    %v230 = vunpack.c.l.b16 %v102
    %v231 = vpack.c.b16 %v168, %v167
    %v232 = vpack.c.b16 %v170, %v169
    %v233 = vpack.c.b16 %v172, %v171
    %v234 = vpack.c.b16 %v174, %v173
    %v235 = vpack.c.b16 %v176, %v175
    %v236 = vpack.c.b16 %v178, %v177
    %v237 = vpack.c.b16 %v180, %v179
    %v238 = vpack.c.b16 %v182, %v181
    %v239 = vpack.c.b16 %v184, %v183
    %v240 = vpack.c.b16 %v186, %v185
    %v241 = vpack.c.b16 %v188, %v187
    %v242 = vpack.c.b16 %v190, %v189
    %v243 = vpack.c.b16 %v192, %v191
    %v244 = vpack.c.b16 %v194, %v193
    %v245 = vpack.c.b16 %v196, %v195
    %v246 = vpack.c.b16 %v198, %v197
    %v247 = vpack.c.b16 %v200, %v199
    %v248 = vpack.c.b16 %v202, %v201
    %v249 = vpack.c.b16 %v204, %v203
    %v250 = vpack.c.b16 %v206, %v205
    %v251 = vpack.c.b16 %v208, %v207
    %v252 = vpack.c.b16 %v210, %v209
    %v253 = vpack.c.b16 %v212, %v211
    %v254 = vpack.c.b16 %v214, %v213
    %v255 = vpack.c.b16 %v216, %v215
    %v256 = vpack.c.b16 %v218, %v217
    %v257 = vpack.c.b16 %v220, %v219
    %v258 = vpack.c.b16 %v222, %v221
    %v259 = vpack.c.b16 %v224, %v223
    %v260 = vpack.c.b16 %v226, %v225
    %v261 = vpack.c.b16 %v228, %v227
    %v262 = vpack.c.b16 %v230, %v229
    %295 = vmatprep.subr.bf16.mxu0 0
    %296 = vmatpush1.bf16.msra.mxu0 %v231
    %297 = vmatprep.subr.bf16.mxu0 0
    %298 = vmatpush1.bf16.msra.mxu0 %v232
    %299 = vmatprep.subr.bf16.mxu0 0
    %300 = vmatpush1.bf16.msra.mxu0 %v233
    %301 = vmatprep.subr.bf16.mxu0 0
    %302 = vmatpush1.bf16.msra.mxu0 %v234
    %303 = vmatprep.subr.bf16.mxu0 0
    %304 = vmatpush1.bf16.msra.mxu0 %v235
    %305 = vmatprep.subr.bf16.mxu0 0
    %306 = vmatpush1.bf16.msra.mxu0 %v236
    %307 = vmatprep.subr.bf16.mxu0 0
    %308 = vmatpush1.bf16.msra.mxu0 %v237
    %309 = vmatprep.subr.bf16.mxu0 0
    %310 = vmatpush1.bf16.msra.mxu0 %v238
    %311 = vmatprep.subr.bf16.mxu0 0
    %312 = vmatpush1.bf16.msra.mxu0 %v239
    %313 = vmatprep.subr.bf16.mxu0 0
    %314 = vmatpush1.bf16.msra.mxu0 %v240
    %315 = vmatprep.subr.bf16.mxu0 0
    %316 = vmatpush1.bf16.msra.mxu0 %v241
    %317 = vmatprep.subr.bf16.mxu0 0
    %318 = vmatpush1.bf16.msra.mxu0 %v242
    %319 = vmatprep.subr.bf16.mxu0 0
    %320 = vmatpush1.bf16.msra.mxu0 %v243
    %321 = vmatprep.subr.bf16.mxu0 0
    %322 = vmatpush1.bf16.msra.mxu0 %v244
    %323 = vmatprep.subr.bf16.mxu0 0
    %324 = vmatpush1.bf16.msra.mxu0 %v245
    %325 = vmatprep.subr.bf16.mxu0 0
    %326 = vmatpush1.bf16.msra.mxu0 %v246
    %327 = vmatprep.mubr.bf16.mxu0 %v36
    %328 = vmatmul.mubr.bf16.gmra.mrb[0].mxu0 %v35
    %v329 = vpop.f32.mrb[0].mxu0
    %v330 = vadd.f32 0.0, %v329
    %v331 = vpop.f32.mrb[0].mxu0
    %v332 = vpop.f32.mrb[0].mxu0
    %v333 = vpop.f32.mrb[0].mxu0
    %334 = vdwg.mxu0
    %335 = vmatprep.subr.bf16.mxu0 0
    %336 = vmatpush1.bf16.msra.mxu0 %v247
    %337 = vmatprep.subr.bf16.mxu0 0
    %338 = vmatpush1.bf16.msra.mxu0 %v248
    %339 = vmatprep.subr.bf16.mxu0 0
    %340 = vmatpush1.bf16.msra.mxu0 %v249
    %341 = vmatprep.subr.bf16.mxu0 0
    %342 = vmatpush1.bf16.msra.mxu0 %v250
    %343 = vmatprep.subr.bf16.mxu0 0
    %344 = vmatpush1.bf16.msra.mxu0 %v251
    %345 = vmatprep.subr.bf16.mxu0 0
    %346 = vmatpush1.bf16.msra.mxu0 %v252
    %347 = vmatprep.subr.bf16.mxu0 0
    %348 = vmatpush1.bf16.msra.mxu0 %v253
    %349 = vmatprep.subr.bf16.mxu0 0
    %350 = vmatpush1.bf16.msra.mxu0 %v254
    %351 = vmatprep.subr.bf16.mxu0 0
    %352 = vmatpush1.bf16.msra.mxu0 %v255
    %353 = vmatprep.subr.bf16.mxu0 0
    %354 = vmatpush1.bf16.msra.mxu0 %v256
    %355 = vmatprep.subr.bf16.mxu0 0
    %356 = vmatpush1.bf16.msra.mxu0 %v257
    %357 = vmatprep.subr.bf16.mxu0 0
    %358 = vmatpush1.bf16.msra.mxu0 %v258
    %359 = vmatprep.subr.bf16.mxu0 0
    %360 = vmatpush1.bf16.msra.mxu0 %v259
    %361 = vmatprep.subr.bf16.mxu0 0
    %362 = vmatpush1.bf16.msra.mxu0 %v260
    %363 = vmatprep.subr.bf16.mxu0 0
    %364 = vmatpush1.bf16.msra.mxu0 %v261
    %365 = vmatprep.subr.bf16.mxu0 0
    %366 = vmatpush1.bf16.msra.mxu0 %v262
    %367 = vmatprep.mubr.bf16.mxu0 %v38
    %368 = vmatmul.mubr.bf16.gmra.mrb[0].mxu0 %v37
    %v369 = vpop.f32.mrb[0].mxu0
    %v370 = vadd.f32 %v330, %v369
    %v371 = vpop.f32.mrb[0].mxu0
    %v372 = vpop.f32.mrb[0].mxu0
    %v373 = vpop.f32.mrb[0].mxu0
    %374 = vdwg.mxu0
    %v375 = vxor.u32 %v370, 2147483648
    %v376 = vmul.f32 %v375, 1.442695
    %v377 = vpow.pop %v376
    %v378 = vadd.f32 %v377, 1.0
    %v379 = vrcp.pop %v378
    %v380 = vmul.f32 1.0, %v379
    %vm381 = vcmask 8192
    %382 = vst.msk [vmem:[#allocation2] sm:$0x1] %vm381, %v380
    // Predicated region
    $region10: #{discriminator128_forward.11} parent=1 // pred_check
      _
    $region11: #{discriminator128_forward.11} parent=1 // pred_check_branch
      %384 = sbr.rel (0) target = $region13
    $region12: #{discriminator128_forward.11} parent=1 // pred_region
      %s386 = ssub.s32 16, 16
      %387 = vsyncadd [#allocation3], %s386
      %s389 = sshll.u32 [#allocation2], 4
      %s390 = int_to_ptr.vmem [resolvable:$true] %s389
      %392 = dma.vmem_to_hbm [thread:$0]  %s390, 16, %s2, [#allocation3]
    $region13: #{discriminator128_forward.11} parent=1 // pred_fallthru
      _
    // Predicated region
    $region14: #{discriminator128_forward.11} parent=1 // pred_check
      _
    $region15: #{discriminator128_forward.11} parent=1 // pred_check_branch
      %394 = sbr.rel (0) target = $region17
    $region16: #{discriminator128_forward.11} parent=1 // pred_region
      %395 = dma.done [#allocation3], 16
    $region17: #{discriminator128_forward.11} parent=1 // pred_fallthru
      _
    %396 = vsyncpa [#allocation3], 1

</llo_original>
